<compile_context>
chip_gen: v5e
topology: v5e:2x2
jax: 0.10.0
libtpu: 0.0.40
codegen_flags: <defaults>
</compile_context>

<pallas_src>
import jax
import jax.numpy as jnp
from jax.experimental import pallas as pl
from jax.experimental.pallas import tpu as pltpu


_PARALLEL = pltpu.CompilerParams(dimension_semantics=("parallel",))


def _round_up(v, m):
    return ((v + m - 1) // m) * m


# ----------------------------------------------------------------------------
# Pallas kernels
# ----------------------------------------------------------------------------
def _pool_col_selectors(w):
    """One-hot (w, w//2) selectors picking even / odd columns (bf16, exact)."""
    col = jax.lax.broadcasted_iota(jnp.int32, (w, w // 2), 0)
    tgt = jax.lax.broadcasted_iota(jnp.int32, (w, w // 2), 1)
    sel_e = (col == 2 * tgt).astype(jnp.bfloat16)
    sel_o = (col == 2 * tgt + 1).astype(jnp.bfloat16)
    return sel_e, sel_o


def _conv_stage_kernel(x_ref, a1_ref, b1_ref, a2_ref, b2_ref, o_ref,
                       s1_ref, s2_ref):
    """Fused conv1+ReLU+pool1+conv2+ReLU+pool2 for one batch tile.

    LeNet shapes:
      x_ref : (bt, 32, 32)  bf16   raw input (C_in=1 folded into H rows)
      a1_ref: (5, 168, 32)  bf16   banded conv1 weights, rows = (oc, oh)
      b1_ref: (168, 1)      f32
      a2_ref: (5, 160, 84)  bf16   banded conv2 weights, cols = (c, h) of pool1
      b2_ref: (160, 1)      f32
      o_ref : (bt*80, 5)    bf16   pooled conv2 features, rows = (sample, c, h)
      s1/s2 : VMEM scratch (168, 28) / (160, 10) f32
    """
    bt = x_ref.shape[0]
    k = a1_ref.shape[0]
    m1, ow1 = s1_ref.shape            # (OC1*OH1, OW1) = (168, 28)
    m2, ow2 = s2_ref.shape            # (OC2*OH2, OW2) = (160, 10)
    r1 = m1 // 2                      # rows after pool1 = OC1*PH1 = 84
    r2 = m2 // 2                      # rows after pool2 = OC2*PH2 = 80

    # Tiny one-hot column selectors, generated in-kernel (no extra DMAs).
    sel1e, sel1o = _pool_col_selectors(ow1)
    sel2e, sel2o = _pool_col_selectors(ow2)

    def body(s, carry):
        x = x_ref[s]                                              # (32, 32) bf16

        # ---- conv1 + bias + ReLU: banded matmuls over the H (sublane) axis.
        y1 = jnp.dot(a1_ref[0], x[:, 0:ow1],
                     preferred_element_type=jnp.float32)
        for j in range(1, k):
            y1 = y1 + jnp.dot(a1_ref[j], x[:, j:j + ow1],
                              preferred_element_type=jnp.float32)
        s1_ref[...] = jnp.maximum(y1 + b1_ref[...], 0.0)          # (168, 28)

        # ---- 2x2/s2 max-pool: row pairs via stride-2 sublane reads, column
        #      pairs via one-hot selector matmuls (exact for bf16 inputs).
        v1 = jnp.maximum(s1_ref[pl.ds(0, r1, stride=2), :],
                         s1_ref[pl.ds(1, r1, stride=2), :]).astype(jnp.bfloat16)
        p1 = jnp.maximum(
            jnp.dot(v1, sel1e, preferred_element_type=jnp.float32),
            jnp.dot(v1, sel1o, preferred_element_type=jnp.float32),
        ).astype(jnp.bfloat16)                                    # (84, 14)

        # ---- conv2 + bias + ReLU (contracts over (c, h) of pool1 output).
        y2 = jnp.dot(a2_ref[0], p1[:, 0:ow2],
                     preferred_element_type=jnp.float32)
        for j in range(1, k):
            y2 = y2 + jnp.dot(a2_ref[j], p1[:, j:j + ow2],
                              preferred_element_type=jnp.float32)
        s2_ref[...] = jnp.maximum(y2 + b2_ref[...], 0.0)          # (160, 10)

        # ---- pool2.
        v2 = jnp.maximum(s2_ref[pl.ds(0, r2, stride=2), :],
                         s2_ref[pl.ds(1, r2, stride=2), :]).astype(jnp.bfloat16)
        p2 = jnp.maximum(
            jnp.dot(v2, sel2e, preferred_element_type=jnp.float32),
            jnp.dot(v2, sel2o, preferred_element_type=jnp.float32),
        ).astype(jnp.bfloat16)                                    # (80, 5)

        row = pl.multiple_of(s * r2, 8)
        o_ref[pl.ds(row, r2), :] = p2
        return carry

    jax.lax.fori_loop(0, bt, body, 0)


def _fc_stack_kernel(x_ref, w1_ref, b1_ref, w2_ref, b2_ref, w3_ref, b3_ref,
                     o_ref):
    """Fused fc1+ReLU -> fc2+ReLU -> fc3; all weights resident in VMEM."""
    h = jnp.dot(x_ref[...], w1_ref[...], preferred_element_type=jnp.float32)
    h = jnp.maximum(h + b1_ref[...], 0.0).astype(w2_ref.dtype)
    h = jnp.dot(h, w2_ref[...], preferred_element_type=jnp.float32)
    h = jnp.maximum(h + b2_ref[...], 0.0).astype(w3_ref.dtype)
    out = jnp.dot(h, w3_ref[...], preferred_element_type=jnp.float32)
    o_ref[...] = (out + b3_ref[...]).astype(o_ref.dtype)


# ----------------------------------------------------------------------------
# Wrappers
# ----------------------------------------------------------------------------
def _banded_conv_weights(w, out_h, in_h):
    """Rewrite a KxK valid conv as K banded matrices acting on the H axis.

    w: (OC, C, K, K).  Returns A of shape (K, OC*out_h, C*in_h) with
      A[j, oc*out_h + o, c*in_h + h] = w[oc, c, h-o, j]  if 0 <= h-o < K else 0
    so that, for x laid out as (C*in_h, in_w),
      conv(x)[oc, o, :] = sum_j (A[j] @ x[:, j:j+out_w])[oc*out_h + o, :].
    """
    oc, c, k, _ = w.shape
    o = jnp.arange(out_h)[:, None]
    h = jnp.arange(in_h)[None, :]
    rel = h - o                                    # (out_h, in_h)
    valid = (rel >= 0) & (rel < k)
    relc = jnp.clip(rel, 0, k - 1)
    wg = w[:, :, relc, :]                          # (OC, C, out_h, in_h, K)
    wg = jnp.where(valid[None, None, :, :, None], wg, 0.0)
    a = jnp.transpose(wg, (4, 0, 2, 1, 3))         # (K, OC, out_h, C, in_h)
    return a.reshape(k, oc * out_h, c * in_h)


def conv_features(x, w1, b1, w2, b2, *, batch_tile=32):
    """x: (N, 1, 32, 32) f32 -> (N, 400) bf16 pooled conv2 features."""
    n, cin, ih1, iw1 = x.shape
    oc1, _, k, _ = w1.shape
    oh1, ow1 = ih1 - k + 1, iw1 - k + 1            # 28, 28
    ph1, pw1 = oh1 // 2, ow1 // 2                  # 14, 14
    oc2 = w2.shape[0]
    oh2, ow2 = ph1 - k + 1, pw1 - k + 1            # 10, 10
    ph2, pw2 = oh2 // 2, ow2 // 2                  # 5, 5
    m1, m2 = oc1 * oh1, oc2 * oh2                  # 168, 160
    feat_rows = oc2 * ph2                          # 80

    bt = min(batch_tile, _round_up(n, 8))
    n_pad = _round_up(n, bt)

    xs = x.reshape(n, cin * ih1, iw1).astype(jnp.bfloat16)
    if n_pad != n:
        xs = jnp.pad(xs, ((0, n_pad - n), (0, 0), (0, 0)))

    a1 = _banded_conv_weights(w1, oh1, ih1).astype(jnp.bfloat16)   # (5, 168, 32)
    a2 = _banded_conv_weights(w2, oh2, ph1).astype(jnp.bfloat16)   # (5, 160, 84)
    b1r = jnp.repeat(b1.astype(jnp.float32), oh1)[:, None]         # (168, 1)
    b2r = jnp.repeat(b2.astype(jnp.float32), oh2)[:, None]         # (160, 1)

    out = pl.pallas_call(
        _conv_stage_kernel,
        out_shape=jax.ShapeDtypeStruct((n_pad * feat_rows, pw2), jnp.bfloat16),
        grid_spec=pltpu.PrefetchScalarGridSpec(
            num_scalar_prefetch=0,
            grid=(n_pad // bt,),
            in_specs=[
                pl.BlockSpec((bt, cin * ih1, iw1), lambda i: (i, 0, 0)),
                pl.BlockSpec(a1.shape, lambda i: (0, 0, 0)),       # resident
                pl.BlockSpec((m1, 1), lambda i: (0, 0)),
                pl.BlockSpec(a2.shape, lambda i: (0, 0, 0)),       # resident
                pl.BlockSpec((m2, 1), lambda i: (0, 0)),
            ],
            out_specs=pl.BlockSpec((bt * feat_rows, pw2), lambda i: (i, 0)),
            scratch_shapes=[pltpu.VMEM((m1, ow1), jnp.float32),
                            pltpu.VMEM((m2, ow2), jnp.float32)],
        ),
        compiler_params=_PARALLEL,
        cost_estimate=pl.CostEstimate(
            flops=2 * n_pad * (k * m1 * (cin * ih1) * ow1
                               + k * m2 * (oc1 * ph1) * ow2
                               + 2 * (m1 // 2) * ow1 * pw1
                               + 2 * (m2 // 2) * ow2 * pw2),
            transcendentals=0,
            bytes_accessed=(xs.size * 2 + a1.size * 2 + a2.size * 2
                            + (b1r.size + b2r.size) * 4
                            + n_pad * feat_rows * pw2 * 2)),
    )(xs, a1, b1r, a2, b2r)

    # (n_pad*80, 5) -> (n_pad, 400); row-major == torch's (C, H, W) .view order.
    return out.reshape(n_pad, feat_rows * pw2)[:n]


def fc_stack(x, w1, b1, w2, b2, w3, b3):
    """Fused fc1/fc2/fc3 in a single pallas_call.  x: (N, 400) -> (N, 10)."""
    n, kin = x.shape
    d1, d2, d3 = w1.shape[1], w2.shape[1], w3.shape[1]
    tm = min(256, _round_up(n, 8))                 # 256-row M tile (v6e/v7x MXU)
    n_pad = _round_up(n, tm)
    xb = x.astype(jnp.bfloat16)
    if n_pad != n:
        xb = jnp.pad(xb, ((0, n_pad - n), (0, 0)))
    w1b = w1.astype(jnp.bfloat16)
    w2b = w2.astype(jnp.bfloat16)
    w3b = w3.astype(jnp.bfloat16)
    b1r = b1.reshape(1, d1).astype(jnp.float32)
    b2r = b2.reshape(1, d2).astype(jnp.float32)
    b3r = b3.reshape(1, d3).astype(jnp.float32)

    out = pl.pallas_call(
        _fc_stack_kernel,
        out_shape=jax.ShapeDtypeStruct((n_pad, d3), jnp.float32),
        grid_spec=pltpu.PrefetchScalarGridSpec(
            num_scalar_prefetch=0,
            grid=(n_pad // tm,),
            in_specs=[
                pl.BlockSpec((tm, kin), lambda i: (i, 0)),
                pl.BlockSpec((kin, d1), lambda i: (0, 0)),         # resident
                pl.BlockSpec((1, d1), lambda i: (0, 0)),
                pl.BlockSpec((d1, d2), lambda i: (0, 0)),
                pl.BlockSpec((1, d2), lambda i: (0, 0)),
                pl.BlockSpec((d2, d3), lambda i: (0, 0)),
                pl.BlockSpec((1, d3), lambda i: (0, 0)),
            ],
            out_specs=pl.BlockSpec((tm, d3), lambda i: (i, 0)),
        ),
        compiler_params=_PARALLEL,
        cost_estimate=pl.CostEstimate(
            flops=2 * n_pad * (kin * d1 + d1 * d2 + d2 * d3),
            transcendentals=0,
            bytes_accessed=(xb.size * 2
                            + (w1b.size + w2b.size + w3b.size) * 2
                            + (b1r.size + b2r.size + b3r.size) * 4
                            + n_pad * d3 * 4)),
    )(xb, w1b, b1r, w2b, b2r, w3b, b3r)
    return out[:n]


# ----------------------------------------------------------------------------
# LeNet forward / params / pure-JAX reference
# ----------------------------------------------------------------------------
def init_lenet_params(key):
    def u(k, shape, fan_in):
        bound = 1.0 / jnp.sqrt(float(fan_in))
        return jax.random.uniform(k, shape, jnp.float32, -bound, bound)

    ks = jax.random.split(key, 10)
    return {
        "conv1_w": u(ks[0], (6, 1, 5, 5), 25),
        "conv1_b": u(ks[1], (6,), 25),
        "conv2_w": u(ks[2], (16, 6, 5, 5), 150),
        "conv2_b": u(ks[3], (16,), 150),
        "fc1_w": u(ks[4], (400, 120), 400),
        "fc1_b": u(ks[5], (120,), 400),
        "fc2_w": u(ks[6], (120, 84), 120),
        "fc2_b": u(ks[7], (84,), 120),
        "fc3_w": u(ks[8], (84, 10), 84),
        "fc3_b": u(ks[9], (10,), 84),
    }


def lenet_forward(params, x):
    # x: (N, 1, 32, 32) f32
    feats = conv_features(x, params["conv1_w"], params["conv1_b"],
                          params["conv2_w"], params["conv2_b"])    # (N, 400) bf16
    return fc_stack(feats, params["fc1_w"], params["fc1_b"],
                    params["fc2_w"], params["fc2_b"],
                    params["fc3_w"], params["fc3_b"])              # (N, 10) f32


def lenet_reference(params, x):
    """Pure-JAX f32 reference used only for a loose correctness check."""
    dn = ("NCHW", "OIHW", "NCHW")
    hi = jax.lax.Precision.HIGHEST
    y = jax.lax.conv_general_dilated(x, params["conv1_w"], (1, 1), "VALID",
                                     dimension_numbers=dn, precision=hi)
    y = jax.nn.relu(y + params["conv1_b"].reshape(1, -1, 1, 1))
    y = jax.lax.reduce_window(y, -jnp.inf, jax.lax.max, (1, 1, 2, 2),
                              (1, 1, 2, 2), "VALID")
    y = jax.lax.conv_general_dilated(y, params["conv2_w"], (1, 1), "VALID",
                                     dimension_numbers=dn, precision=hi)
    y = jax.nn.relu(y + params["conv2_b"].reshape(1, -1, 1, 1))
    y = jax.lax.reduce_window(y, -jnp.inf, jax.lax.max, (1, 1, 2, 2),
                              (1, 1, 2, 2), "VALID")
    y = y.reshape(y.shape[0], -1)
    y = jax.nn.relu(jnp.dot(y, params["fc1_w"], precision=hi) + params["fc1_b"])
    y = jax.nn.relu(jnp.dot(y, params["fc2_w"], precision=hi) + params["fc2_b"])
    return jnp.dot(y, params["fc3_w"], precision=hi) + params["fc3_b"]


if __name__ == "__main__":
    key = jax.random.PRNGKey(0)
    k_param, k_x = jax.random.split(key)
    params = init_lenet_params(k_param)
    x = jax.random.normal(k_x, (2, 1, 32, 32), jnp.float32)

    logits = jax.jit(lenet_forward)(params, x)
    jax.block_until_ready(logits)

    assert logits.shape == (2, 10), logits.shape
    assert logits.dtype == jnp.float32

    # Loose tolerance: the Pallas path uses bf16 MXU matmuls (f32 accumulation)
    # and bf16 inter-layer activations.
    ref = jax.jit(lenet_reference)(params, x)
    err = float(jnp.max(jnp.abs(logits - ref)))
    scale = float(jnp.max(jnp.abs(ref))) + 1e-6
    assert err <= 0.05 + 0.05 * scale, f"mismatch vs reference: err={err} scale={scale}"

    print("KERNEL_OK")
</pallas_src>

<mosaic_0001>
module attributes {stable_mosaic.version = 11 : i64} {
  func.func @_conv_stage_kernel(%arg0: i32, %arg1: memref<8x32x32xbf16, #tpu.memory_space<vmem>>, %arg2: memref<5x168x32xbf16, #tpu.memory_space<vmem>>, %arg3: memref<168x1xf32, #tpu.memory_space<vmem>>, %arg4: memref<5x160x84xbf16, #tpu.memory_space<vmem>>, %arg5: memref<160x1xf32, #tpu.memory_space<vmem>>, %arg6: memref<640x5xbf16, #tpu.memory_space<vmem>>, %arg7: memref<168x28xf32, #tpu.memory_space<vmem>>, %arg8: memref<160x10xf32, #tpu.memory_space<vmem>>) attributes {dimension_semantics = [#tpu.dimension_semantics<parallel>], iteration_bounds = array<i64: 1>, scalar_prefetch = 0 : i64, scratch_operands = 2 : i64, tpu.core_type = #tpu.core_type<tc>, window_params = [{transform_indices = @transform_0, window_bounds = array<i64: 8, 32, 32>}, {pipeline_mode = #tpu.pipeline_mode<synchronous>, transform_indices = @transform_1, window_bounds = array<i64: 5, 168, 32>}, {pipeline_mode = #tpu.pipeline_mode<synchronous>, transform_indices = @transform_2, window_bounds = array<i64: 168, 1>}, {pipeline_mode = #tpu.pipeline_mode<synchronous>, transform_indices = @transform_3, window_bounds = array<i64: 5, 160, 84>}, {pipeline_mode = #tpu.pipeline_mode<synchronous>, transform_indices = @transform_4, window_bounds = array<i64: 160, 1>}, {transform_indices = @transform_5, window_bounds = array<i64: 640, 5>}]} {
    %0 = tpu.iota {dimensions = array<i32: 0>} : vector<28x14xi32>
    %1 = tpu.iota {dimensions = array<i32: 1>} : vector<28x14xi32>
    %c2_i32 = arith.constant 2 : i32
    %2 = vector.broadcast %c2_i32 : i32 to vector<28x14xi32>
    %3 = arith.muli %2, %1 : vector<28x14xi32>
    %4 = arith.cmpi eq, %0, %3 : vector<28x14xi32>
    %5 = arith.extui %4 : vector<28x14xi1> to vector<28x14xi32>
    %6 = arith.sitofp %5 : vector<28x14xi32> to vector<28x14xf32>
    %7 = arith.truncf %6 : vector<28x14xf32> to vector<28x14xbf16>
    %c2_i32_0 = arith.constant 2 : i32
    %8 = vector.broadcast %c2_i32_0 : i32 to vector<28x14xi32>
    %9 = arith.muli %8, %1 : vector<28x14xi32>
    %c1_i32 = arith.constant 1 : i32
    %10 = vector.broadcast %c1_i32 : i32 to vector<28x14xi32>
    %11 = arith.addi %9, %10 : vector<28x14xi32>
    %12 = arith.cmpi eq, %0, %11 : vector<28x14xi32>
    %13 = arith.extui %12 : vector<28x14xi1> to vector<28x14xi32>
    %14 = arith.sitofp %13 : vector<28x14xi32> to vector<28x14xf32>
    %15 = arith.truncf %14 : vector<28x14xf32> to vector<28x14xbf16>
    %16 = tpu.iota {dimensions = array<i32: 0>} : vector<10x5xi32>
    %17 = tpu.iota {dimensions = array<i32: 1>} : vector<10x5xi32>
    %c2_i32_1 = arith.constant 2 : i32
    %18 = vector.broadcast %c2_i32_1 : i32 to vector<10x5xi32>
    %19 = arith.muli %18, %17 : vector<10x5xi32>
    %20 = arith.cmpi eq, %16, %19 : vector<10x5xi32>
    %21 = arith.extui %20 : vector<10x5xi1> to vector<10x5xi32>
    %22 = arith.sitofp %21 : vector<10x5xi32> to vector<10x5xf32>
    %23 = arith.truncf %22 : vector<10x5xf32> to vector<10x5xbf16>
    %c2_i32_2 = arith.constant 2 : i32
    %24 = vector.broadcast %c2_i32_2 : i32 to vector<10x5xi32>
    %25 = arith.muli %24, %17 : vector<10x5xi32>
    %c1_i32_3 = arith.constant 1 : i32
    %26 = vector.broadcast %c1_i32_3 : i32 to vector<10x5xi32>
    %27 = arith.addi %25, %26 : vector<10x5xi32>
    %28 = arith.cmpi eq, %16, %27 : vector<10x5xi32>
    %29 = arith.extui %28 : vector<10x5xi1> to vector<10x5xi32>
    %30 = arith.sitofp %29 : vector<10x5xi32> to vector<10x5xf32>
    %31 = arith.truncf %30 : vector<10x5xf32> to vector<10x5xbf16>
    %c0_i32 = arith.constant 0 : i32
    %c8_i32 = arith.constant 8 : i32
    %32 = arith.addi %c0_i32, %c8_i32 : i32
    %c1_i32_4 = arith.constant 1 : i32
    scf.for %arg9 = %c0_i32 to %32 step %c1_i32_4  : i32 {
      %33 = arith.index_cast %arg9 : i32 to index
      %c0 = arith.constant 0 : index
      %c0_6 = arith.constant 0 : index
      %34 = vector.load %arg1[%33, %c0, %c0_6] : memref<8x32x32xbf16, #tpu.memory_space<vmem>>, vector<1x32x32xbf16>
      %35 = vector.shape_cast %34 : vector<1x32x32xbf16> to vector<32x32xbf16>
      %c0_7 = arith.constant 0 : index
      %c0_8 = arith.constant 0 : index
      %c0_9 = arith.constant 0 : index
      %36 = vector.load %arg2[%c0_7, %c0_8, %c0_9] : memref<5x168x32xbf16, #tpu.memory_space<vmem>>, vector<1x168x32xbf16>
      %37 = vector.shape_cast %36 : vector<1x168x32xbf16> to vector<168x32xbf16>
      %38 = vector.extract_strided_slice %35 {offsets = [0, 0], sizes = [32, 28], strides = [1, 1]} : vector<32x32xbf16> to vector<32x28xbf16>
      %cst = arith.constant dense<0.000000e+00> : vector<168x28xf32>
      %39 = tpu.matmul %37, %38, %cst {dimension_numbers = #tpu.dot_dimension_numbers<[1], [0], [0], [1], [0, 0, 1, 1], [], []>} : vector<168x32xbf16>, vector<32x28xbf16>, vector<168x28xf32> -> vector<168x28xf32>
      %c1 = arith.constant 1 : index
      %c0_10 = arith.constant 0 : index
      %c0_11 = arith.constant 0 : index
      %40 = vector.load %arg2[%c1, %c0_10, %c0_11] : memref<5x168x32xbf16, #tpu.memory_space<vmem>>, vector<1x168x32xbf16>
      %41 = vector.shape_cast %40 : vector<1x168x32xbf16> to vector<168x32xbf16>
      %42 = vector.extract_strided_slice %35 {offsets = [0, 1], sizes = [32, 28], strides = [1, 1]} : vector<32x32xbf16> to vector<32x28xbf16>
      %cst_12 = arith.constant dense<0.000000e+00> : vector<168x28xf32>
      %43 = tpu.matmul %41, %42, %cst_12 {dimension_numbers = #tpu.dot_dimension_numbers<[1], [0], [0], [1], [0, 0, 1, 1], [], []>} : vector<168x32xbf16>, vector<32x28xbf16>, vector<168x28xf32> -> vector<168x28xf32>
      %44 = arith.addf %39, %43 : vector<168x28xf32>
      %c2 = arith.constant 2 : index
      %c0_13 = arith.constant 0 : index
      %c0_14 = arith.constant 0 : index
      %45 = vector.load %arg2[%c2, %c0_13, %c0_14] : memref<5x168x32xbf16, #tpu.memory_space<vmem>>, vector<1x168x32xbf16>
      %46 = vector.shape_cast %45 : vector<1x168x32xbf16> to vector<168x32xbf16>
      %47 = vector.extract_strided_slice %35 {offsets = [0, 2], sizes = [32, 28], strides = [1, 1]} : vector<32x32xbf16> to vector<32x28xbf16>
      %cst_15 = arith.constant dense<0.000000e+00> : vector<168x28xf32>
      %48 = tpu.matmul %46, %47, %cst_15 {dimension_numbers = #tpu.dot_dimension_numbers<[1], [0], [0], [1], [0, 0, 1, 1], [], []>} : vector<168x32xbf16>, vector<32x28xbf16>, vector<168x28xf32> -> vector<168x28xf32>
      %49 = arith.addf %44, %48 : vector<168x28xf32>
      %c3 = arith.constant 3 : index
      %c0_16 = arith.constant 0 : index
      %c0_17 = arith.constant 0 : index
      %50 = vector.load %arg2[%c3, %c0_16, %c0_17] : memref<5x168x32xbf16, #tpu.memory_space<vmem>>, vector<1x168x32xbf16>
      %51 = vector.shape_cast %50 : vector<1x168x32xbf16> to vector<168x32xbf16>
      %52 = vector.extract_strided_slice %35 {offsets = [0, 3], sizes = [32, 28], strides = [1, 1]} : vector<32x32xbf16> to vector<32x28xbf16>
      %cst_18 = arith.constant dense<0.000000e+00> : vector<168x28xf32>
      %53 = tpu.matmul %51, %52, %cst_18 {dimension_numbers = #tpu.dot_dimension_numbers<[1], [0], [0], [1], [0, 0, 1, 1], [], []>} : vector<168x32xbf16>, vector<32x28xbf16>, vector<168x28xf32> -> vector<168x28xf32>
      %54 = arith.addf %49, %53 : vector<168x28xf32>
      %c4 = arith.constant 4 : index
      %c0_19 = arith.constant 0 : index
      %c0_20 = arith.constant 0 : index
      %55 = vector.load %arg2[%c4, %c0_19, %c0_20] : memref<5x168x32xbf16, #tpu.memory_space<vmem>>, vector<1x168x32xbf16>
      %56 = vector.shape_cast %55 : vector<1x168x32xbf16> to vector<168x32xbf16>
      %57 = vector.extract_strided_slice %35 {offsets = [0, 4], sizes = [32, 28], strides = [1, 1]} : vector<32x32xbf16> to vector<32x28xbf16>
      %cst_21 = arith.constant dense<0.000000e+00> : vector<168x28xf32>
      %58 = tpu.matmul %56, %57, %cst_21 {dimension_numbers = #tpu.dot_dimension_numbers<[1], [0], [0], [1], [0, 0, 1, 1], [], []>} : vector<168x32xbf16>, vector<32x28xbf16>, vector<168x28xf32> -> vector<168x28xf32>
      %59 = arith.addf %54, %58 : vector<168x28xf32>
      %c0_22 = arith.constant 0 : index
      %c0_23 = arith.constant 0 : index
      %60 = vector.load %arg3[%c0_22, %c0_23] : memref<168x1xf32, #tpu.memory_space<vmem>>, vector<168x1xf32>
      %61 = vector.broadcast %60 : vector<168x1xf32> to vector<168x28xf32>
      %62 = arith.addf %59, %61 : vector<168x28xf32>
      %cst_24 = arith.constant 0.000000e+00 : f32
      %63 = vector.broadcast %cst_24 : f32 to vector<168x28xf32>
      %64 = arith.maximumf %62, %63 : vector<168x28xf32>
      %c0_25 = arith.constant 0 : index
      %c0_26 = arith.constant 0 : index
      %65 = vector.load %arg7[%c0_25, %c0_26] : memref<168x28xf32, #tpu.memory_space<vmem>>, vector<168x28xf32>
      tpu.vector_store %arg7[%c0_25, %c0_26], %64 {strides = array<i32>} : memref<168x28xf32, #tpu.memory_space<vmem>>, vector<168x28xf32>,
      %c0_27 = arith.constant 0 : index
      %c0_28 = arith.constant 0 : index
      %66 = tpu.strided_load %arg7[%c0_27, %c0_28] {strides = array<i32: 2, 1>} : memref<168x28xf32, #tpu.memory_space<vmem>>, vector<84x28xf32>
      %c1_29 = arith.constant 1 : index
      %c0_30 = arith.constant 0 : index
      %67 = tpu.strided_load %arg7[%c1_29, %c0_30] {strides = array<i32: 2, 1>} : memref<168x28xf32, #tpu.memory_space<vmem>>, vector<84x28xf32>
      %68 = arith.maximumf %66, %67 : vector<84x28xf32>
      %69 = arith.truncf %68 : vector<84x28xf32> to vector<84x28xbf16>
      %cst_31 = arith.constant dense<0.000000e+00> : vector<84x14xf32>
      %70 = tpu.matmul %69, %7, %cst_31 {dimension_numbers = #tpu.dot_dimension_numbers<[1], [0], [0], [1], [0, 0, 1, 1], [], []>} : vector<84x28xbf16>, vector<28x14xbf16>, vector<84x14xf32> -> vector<84x14xf32>
      %cst_32 = arith.constant dense<0.000000e+00> : vector<84x14xf32>
      %71 = tpu.matmul %69, %15, %cst_32 {dimension_numbers = #tpu.dot_dimension_numbers<[1], [0], [0], [1], [0, 0, 1, 1], [], []>} : vector<84x28xbf16>, vector<28x14xbf16>, vector<84x14xf32> -> vector<84x14xf32>
      %72 = arith.maximumf %70, %71 : vector<84x14xf32>
      %73 = arith.truncf %72 : vector<84x14xf32> to vector<84x14xbf16>
      %c0_33 = arith.constant 0 : index
      %c0_34 = arith.constant 0 : index
      %c0_35 = arith.constant 0 : index
      %74 = vector.load %arg4[%c0_33, %c0_34, %c0_35] : memref<5x160x84xbf16, #tpu.memory_space<vmem>>, vector<1x160x84xbf16>
      %75 = vector.shape_cast %74 : vector<1x160x84xbf16> to vector<160x84xbf16>
      %76 = vector.extract_strided_slice %73 {offsets = [0, 0], sizes = [84, 10], strides = [1, 1]} : vector<84x14xbf16> to vector<84x10xbf16>
      %cst_36 = arith.constant dense<0.000000e+00> : vector<160x10xf32>
      %77 = tpu.matmul %75, %76, %cst_36 {dimension_numbers = #tpu.dot_dimension_numbers<[1], [0], [0], [1], [0, 0, 1, 1], [], []>} : vector<160x84xbf16>, vector<84x10xbf16>, vector<160x10xf32> -> vector<160x10xf32>
      %c1_37 = arith.constant 1 : index
      %c0_38 = arith.constant 0 : index
      %c0_39 = arith.constant 0 : index
      %78 = vector.load %arg4[%c1_37, %c0_38, %c0_39] : memref<5x160x84xbf16, #tpu.memory_space<vmem>>, vector<1x160x84xbf16>
      %79 = vector.shape_cast %78 : vector<1x160x84xbf16> to vector<160x84xbf16>
      %80 = vector.extract_strided_slice %73 {offsets = [0, 1], sizes = [84, 10], strides = [1, 1]} : vector<84x14xbf16> to vector<84x10xbf16>
      %cst_40 = arith.constant dense<0.000000e+00> : vector<160x10xf32>
      %81 = tpu.matmul %79, %80, %cst_40 {dimension_numbers = #tpu.dot_dimension_numbers<[1], [0], [0], [1], [0, 0, 1, 1], [], []>} : vector<160x84xbf16>, vector<84x10xbf16>, vector<160x10xf32> -> vector<160x10xf32>
      %82 = arith.addf %77, %81 : vector<160x10xf32>
      %c2_41 = arith.constant 2 : index
      %c0_42 = arith.constant 0 : index
      %c0_43 = arith.constant 0 : index
      %83 = vector.load %arg4[%c2_41, %c0_42, %c0_43] : memref<5x160x84xbf16, #tpu.memory_space<vmem>>, vector<1x160x84xbf16>
      %84 = vector.shape_cast %83 : vector<1x160x84xbf16> to vector<160x84xbf16>
      %85 = vector.extract_strided_slice %73 {offsets = [0, 2], sizes = [84, 10], strides = [1, 1]} : vector<84x14xbf16> to vector<84x10xbf16>
      %cst_44 = arith.constant dense<0.000000e+00> : vector<160x10xf32>
      %86 = tpu.matmul %84, %85, %cst_44 {dimension_numbers = #tpu.dot_dimension_numbers<[1], [0], [0], [1], [0, 0, 1, 1], [], []>} : vector<160x84xbf16>, vector<84x10xbf16>, vector<160x10xf32> -> vector<160x10xf32>
      %87 = arith.addf %82, %86 : vector<160x10xf32>
      %c3_45 = arith.constant 3 : index
      %c0_46 = arith.constant 0 : index
      %c0_47 = arith.constant 0 : index
      %88 = vector.load %arg4[%c3_45, %c0_46, %c0_47] : memref<5x160x84xbf16, #tpu.memory_space<vmem>>, vector<1x160x84xbf16>
      %89 = vector.shape_cast %88 : vector<1x160x84xbf16> to vector<160x84xbf16>
      %90 = vector.extract_strided_slice %73 {offsets = [0, 3], sizes = [84, 10], strides = [1, 1]} : vector<84x14xbf16> to vector<84x10xbf16>
      %cst_48 = arith.constant dense<0.000000e+00> : vector<160x10xf32>
      %91 = tpu.matmul %89, %90, %cst_48 {dimension_numbers = #tpu.dot_dimension_numbers<[1], [0], [0], [1], [0, 0, 1, 1], [], []>} : vector<160x84xbf16>, vector<84x10xbf16>, vector<160x10xf32> -> vector<160x10xf32>
      %92 = arith.addf %87, %91 : vector<160x10xf32>
      %c4_49 = arith.constant 4 : index
      %c0_50 = arith.constant 0 : index
      %c0_51 = arith.constant 0 : index
      %93 = vector.load %arg4[%c4_49, %c0_50, %c0_51] : memref<5x160x84xbf16, #tpu.memory_space<vmem>>, vector<1x160x84xbf16>
      %94 = vector.shape_cast %93 : vector<1x160x84xbf16> to vector<160x84xbf16>
      %95 = vector.extract_strided_slice %73 {offsets = [0, 4], sizes = [84, 10], strides = [1, 1]} : vector<84x14xbf16> to vector<84x10xbf16>
      %cst_52 = arith.constant dense<0.000000e+00> : vector<160x10xf32>
      %96 = tpu.matmul %94, %95, %cst_52 {dimension_numbers = #tpu.dot_dimension_numbers<[1], [0], [0], [1], [0, 0, 1, 1], [], []>} : vector<160x84xbf16>, vector<84x10xbf16>, vector<160x10xf32> -> vector<160x10xf32>
      %97 = arith.addf %92, %96 : vector<160x10xf32>
      %c0_53 = arith.constant 0 : index
      %c0_54 = arith.constant 0 : index
      %98 = vector.load %arg5[%c0_53, %c0_54] : memref<160x1xf32, #tpu.memory_space<vmem>>, vector<160x1xf32>
      %99 = vector.broadcast %98 : vector<160x1xf32> to vector<160x10xf32>
      %100 = arith.addf %97, %99 : vector<160x10xf32>
      %cst_55 = arith.constant 0.000000e+00 : f32
      %101 = vector.broadcast %cst_55 : f32 to vector<160x10xf32>
      %102 = arith.maximumf %100, %101 : vector<160x10xf32>
      %c0_56 = arith.constant 0 : index
      %c0_57 = arith.constant 0 : index
      %103 = vector.load %arg8[%c0_56, %c0_57] : memref<160x10xf32, #tpu.memory_space<vmem>>, vector<160x10xf32>
      tpu.vector_store %arg8[%c0_56, %c0_57], %102 {strides = array<i32>} : memref<160x10xf32, #tpu.memory_space<vmem>>, vector<160x10xf32>,
      %c0_58 = arith.constant 0 : index
      %c0_59 = arith.constant 0 : index
      %104 = tpu.strided_load %arg8[%c0_58, %c0_59] {strides = array<i32: 2, 1>} : memref<160x10xf32, #tpu.memory_space<vmem>>, vector<80x10xf32>
      %c1_60 = arith.constant 1 : index
      %c0_61 = arith.constant 0 : index
      %105 = tpu.strided_load %arg8[%c1_60, %c0_61] {strides = array<i32: 2, 1>} : memref<160x10xf32, #tpu.memory_space<vmem>>, vector<80x10xf32>
      %106 = arith.maximumf %104, %105 : vector<80x10xf32>
      %107 = arith.truncf %106 : vector<80x10xf32> to vector<80x10xbf16>
      %cst_62 = arith.constant dense<0.000000e+00> : vector<80x5xf32>
      %108 = tpu.matmul %107, %23, %cst_62 {dimension_numbers = #tpu.dot_dimension_numbers<[1], [0], [0], [1], [0, 0, 1, 1], [], []>} : vector<80x10xbf16>, vector<10x5xbf16>, vector<80x5xf32> -> vector<80x5xf32>
      %cst_63 = arith.constant dense<0.000000e+00> : vector<80x5xf32>
      %109 = tpu.matmul %107, %31, %cst_63 {dimension_numbers = #tpu.dot_dimension_numbers<[1], [0], [0], [1], [0, 0, 1, 1], [], []>} : vector<80x10xbf16>, vector<10x5xbf16>, vector<80x5xf32> -> vector<80x5xf32>
      %110 = arith.maximumf %108, %109 : vector<80x5xf32>
      %111 = arith.truncf %110 : vector<80x5xf32> to vector<80x5xbf16>
      %c80_i32 = arith.constant 80 : i32
      %112 = arith.muli %arg9, %c80_i32 : i32
      %113 = tpu.assume_multiple %112, 8 : i32
      %114 = arith.index_cast %113 : i32 to index
      %c0_64 = arith.constant 0 : index
      %115 = vector.load %arg6[%114, %c0_64] : memref<640x5xbf16, #tpu.memory_space<vmem>>, vector<80x5xbf16>
      tpu.vector_store %arg6[%114, %c0_64], %111 {strides = array<i32>} : memref<640x5xbf16, #tpu.memory_space<vmem>>, vector<80x5xbf16>,
    }
    %c8_i32_5 = arith.constant 8 : i32
    return
  }
  func.func @transform_0(%arg0: i32) -> (i32, i32, i32) {
    %c0_i32 = arith.constant 0 : i32
    %c0_i32_0 = arith.constant 0 : i32
    %c0_i32_1 = arith.constant 0 : i32
    return %arg0, %c0_i32, %c0_i32_0 : i32, i32, i32
  }
  func.func @transform_1(%arg0: i32) -> (i32, i32, i32) {
    %c0_i32 = arith.constant 0 : i32
    %c0_i32_0 = arith.constant 0 : i32
    %c0_i32_1 = arith.constant 0 : i32
    %c0_i32_2 = arith.constant 0 : i32
    return %c0_i32, %c0_i32_0, %c0_i32_1 : i32, i32, i32
  }
  func.func @transform_2(%arg0: i32) -> (i32, i32) {
    %c0_i32 = arith.constant 0 : i32
    %c0_i32_0 = arith.constant 0 : i32
    %c0_i32_1 = arith.constant 0 : i32
    return %c0_i32, %c0_i32_0 : i32, i32
  }
  func.func @transform_3(%arg0: i32) -> (i32, i32, i32) {
    %c0_i32 = arith.constant 0 : i32
    %c0_i32_0 = arith.constant 0 : i32
    %c0_i32_1 = arith.constant 0 : i32
    %c0_i32_2 = arith.constant 0 : i32
    return %c0_i32, %c0_i32_0, %c0_i32_1 : i32, i32, i32
  }
  func.func @transform_4(%arg0: i32) -> (i32, i32) {
    %c0_i32 = arith.constant 0 : i32
    %c0_i32_0 = arith.constant 0 : i32
    %c0_i32_1 = arith.constant 0 : i32
    return %c0_i32, %c0_i32_0 : i32, i32
  }
  func.func @transform_5(%arg0: i32) -> (i32, i32) {
    %c0_i32 = arith.constant 0 : i32
    %c0_i32_0 = arith.constant 0 : i32
    return %arg0, %c0_i32 : i32, i32
  }
}

module attributes {stable_mosaic.version = 11 : i64} {
  func.func @_fc_stack_kernel(%arg0: i32, %arg1: memref<8x400xbf16, #tpu.memory_space<vmem>>, %arg2: memref<400x120xbf16, #tpu.memory_space<vmem>>, %arg3: memref<1x120xf32, #tpu.memory_space<vmem>>, %arg4: memref<120x84xbf16, #tpu.memory_space<vmem>>, %arg5: memref<1x84xf32, #tpu.memory_space<vmem>>, %arg6: memref<84x10xbf16, #tpu.memory_space<vmem>>, %arg7: memref<1x10xf32, #tpu.memory_space<vmem>>, %arg8: memref<8x10xf32, #tpu.memory_space<vmem>>) attributes {dimension_semantics = [#tpu.dimension_semantics<parallel>], iteration_bounds = array<i64: 1>, scalar_prefetch = 0 : i64, scratch_operands = 0 : i64, tpu.core_type = #tpu.core_type<tc>, window_params = [{transform_indices = @transform_0, window_bounds = array<i64: 8, 400>}, {pipeline_mode = #tpu.pipeline_mode<synchronous>, transform_indices = @transform_1, window_bounds = array<i64: 400, 120>}, {pipeline_mode = #tpu.pipeline_mode<synchronous>, transform_indices = @transform_2, window_bounds = array<i64: 1, 120>}, {pipeline_mode = #tpu.pipeline_mode<synchronous>, transform_indices = @transform_3, window_bounds = array<i64: 120, 84>}, {pipeline_mode = #tpu.pipeline_mode<synchronous>, transform_indices = @transform_4, window_bounds = array<i64: 1, 84>}, {pipeline_mode = #tpu.pipeline_mode<synchronous>, transform_indices = @transform_5, window_bounds = array<i64: 84, 10>}, {pipeline_mode = #tpu.pipeline_mode<synchronous>, transform_indices = @transform_6, window_bounds = array<i64: 1, 10>}, {transform_indices = @transform_7, window_bounds = array<i64: 8, 10>}]} {
    %c0 = arith.constant 0 : index
    %c0_0 = arith.constant 0 : index
    %0 = vector.load %arg1[%c0, %c0_0] : memref<8x400xbf16, #tpu.memory_space<vmem>>, vector<8x400xbf16>
    %c0_1 = arith.constant 0 : index
    %c0_2 = arith.constant 0 : index
    %1 = vector.load %arg2[%c0_1, %c0_2] : memref<400x120xbf16, #tpu.memory_space<vmem>>, vector<400x120xbf16>
    %cst = arith.constant dense<0.000000e+00> : vector<8x120xf32>
    %2 = tpu.matmul %0, %1, %cst {dimension_numbers = #tpu.dot_dimension_numbers<[1], [0], [0], [1], [0, 0, 1, 1], [], []>} : vector<8x400xbf16>, vector<400x120xbf16>, vector<8x120xf32> -> vector<8x120xf32>
    %c0_3 = arith.constant 0 : index
    %c0_4 = arith.constant 0 : index
    %3 = vector.load %arg3[%c0_3, %c0_4] : memref<1x120xf32, #tpu.memory_space<vmem>>, vector<1x120xf32>
    %4 = vector.broadcast %3 : vector<1x120xf32> to vector<8x120xf32>
    %5 = arith.addf %2, %4 : vector<8x120xf32>
    %cst_5 = arith.constant 0.000000e+00 : f32
    %6 = vector.broadcast %cst_5 : f32 to vector<8x120xf32>
    %7 = arith.maximumf %5, %6 : vector<8x120xf32>
    %8 = arith.truncf %7 : vector<8x120xf32> to vector<8x120xbf16>
    %c0_6 = arith.constant 0 : index
    %c0_7 = arith.constant 0 : index
    %9 = vector.load %arg4[%c0_6, %c0_7] : memref<120x84xbf16, #tpu.memory_space<vmem>>, vector<120x84xbf16>
    %cst_8 = arith.constant dense<0.000000e+00> : vector<8x84xf32>
    %10 = tpu.matmul %8, %9, %cst_8 {dimension_numbers = #tpu.dot_dimension_numbers<[1], [0], [0], [1], [0, 0, 1, 1], [], []>} : vector<8x120xbf16>, vector<120x84xbf16>, vector<8x84xf32> -> vector<8x84xf32>
    %c0_9 = arith.constant 0 : index
    %c0_10 = arith.constant 0 : index
    %11 = vector.load %arg5[%c0_9, %c0_10] : memref<1x84xf32, #tpu.memory_space<vmem>>, vector<1x84xf32>
    %12 = vector.broadcast %11 : vector<1x84xf32> to vector<8x84xf32>
    %13 = arith.addf %10, %12 : vector<8x84xf32>
    %cst_11 = arith.constant 0.000000e+00 : f32
    %14 = vector.broadcast %cst_11 : f32 to vector<8x84xf32>
    %15 = arith.maximumf %13, %14 : vector<8x84xf32>
    %16 = arith.truncf %15 : vector<8x84xf32> to vector<8x84xbf16>
    %c0_12 = arith.constant 0 : index
    %c0_13 = arith.constant 0 : index
    %17 = vector.load %arg6[%c0_12, %c0_13] : memref<84x10xbf16, #tpu.memory_space<vmem>>, vector<84x10xbf16>
    %cst_14 = arith.constant dense<0.000000e+00> : vector<8x10xf32>
    %18 = tpu.matmul %16, %17, %cst_14 {dimension_numbers = #tpu.dot_dimension_numbers<[1], [0], [0], [1], [0, 0, 1, 1], [], []>} : vector<8x84xbf16>, vector<84x10xbf16>, vector<8x10xf32> -> vector<8x10xf32>
    %c0_15 = arith.constant 0 : index
    %c0_16 = arith.constant 0 : index
    %19 = vector.load %arg7[%c0_15, %c0_16] : memref<1x10xf32, #tpu.memory_space<vmem>>, vector<1x10xf32>
    %20 = vector.broadcast %19 : vector<1x10xf32> to vector<8x10xf32>
    %21 = arith.addf %18, %20 : vector<8x10xf32>
    %c0_17 = arith.constant 0 : index
    %c0_18 = arith.constant 0 : index
    %22 = vector.load %arg8[%c0_17, %c0_18] : memref<8x10xf32, #tpu.memory_space<vmem>>, vector<8x10xf32>
    tpu.vector_store %arg8[%c0_17, %c0_18], %21 {strides = array<i32>} : memref<8x10xf32, #tpu.memory_space<vmem>>, vector<8x10xf32>,
    return
  }
  func.func @transform_0(%arg0: i32) -> (i32, i32) {
    %c0_i32 = arith.constant 0 : i32
    %c0_i32_0 = arith.constant 0 : i32
    return %arg0, %c0_i32 : i32, i32
  }
  func.func @transform_1(%arg0: i32) -> (i32, i32) {
    %c0_i32 = arith.constant 0 : i32
    %c0_i32_0 = arith.constant 0 : i32
    %c0_i32_1 = arith.constant 0 : i32
    return %c0_i32, %c0_i32_0 : i32, i32
  }
  func.func @transform_2(%arg0: i32) -> (i32, i32) {
    %c0_i32 = arith.constant 0 : i32
    %c0_i32_0 = arith.constant 0 : i32
    %c0_i32_1 = arith.constant 0 : i32
    return %c0_i32, %c0_i32_0 : i32, i32
  }
  func.func @transform_3(%arg0: i32) -> (i32, i32) {
    %c0_i32 = arith.constant 0 : i32
    %c0_i32_0 = arith.constant 0 : i32
    %c0_i32_1 = arith.constant 0 : i32
    return %c0_i32, %c0_i32_0 : i32, i32
  }
  func.func @transform_4(%arg0: i32) -> (i32, i32) {
    %c0_i32 = arith.constant 0 : i32
    %c0_i32_0 = arith.constant 0 : i32
    %c0_i32_1 = arith.constant 0 : i32
    return %c0_i32, %c0_i32_0 : i32, i32
  }
  func.func @transform_5(%arg0: i32) -> (i32, i32) {
    %c0_i32 = arith.constant 0 : i32
    %c0_i32_0 = arith.constant 0 : i32
    %c0_i32_1 = arith.constant 0 : i32
    return %c0_i32, %c0_i32_0 : i32, i32
  }
  func.func @transform_6(%arg0: i32) -> (i32, i32) {
    %c0_i32 = arith.constant 0 : i32
    %c0_i32_0 = arith.constant 0 : i32
    %c0_i32_1 = arith.constant 0 : i32
    return %c0_i32, %c0_i32_0 : i32, i32
  }
  func.func @transform_7(%arg0: i32) -> (i32, i32) {
    %c0_i32 = arith.constant 0 : i32
    %c0_i32_0 = arith.constant 0 : i32
    return %arg0, %c0_i32 : i32, i32
  }
}

</mosaic_0001>

<llo_original>
// kernel: lenet_forward.3
$region0: #{lenet_forward.3}
  #allocation0 [shape = 'u32[]', space=smem, size = 0x4, offset = 0x4, fixed_abs, tag = 'smem constant byte address 0x4 - core index']
  #allocation1 [shape = 'u32[72,128]{1,0:T(1,128)}', space=vmem, size = 0x9000, scoped, tag = 'internal scratch']
  %s0 = inlined_call_operand.vmem [shape: bf16[8,400], index: 0, kind: input, shape index: {}]
  %s1 = inlined_call_operand.vmem [shape: bf16[400,120], index: 1, kind: input, shape index: {}]
  %s2 = inlined_call_operand.vmem [shape: f32[1,120], index: 2, kind: input, shape index: {}]
  %s3 = inlined_call_operand.vmem [shape: bf16[120,84], index: 3, kind: input, shape index: {}]
  %s4 = inlined_call_operand.vmem [shape: f32[1,84], index: 4, kind: input, shape index: {}]
  %s5 = inlined_call_operand.vmem [shape: bf16[84,10], index: 5, kind: input, shape index: {}]
  %s6 = inlined_call_operand.vmem [shape: f32[1,10], index: 6, kind: input, shape index: {}]
  %s7 = inlined_call_operand.vmem [shape: f32[8,10], index: 7, kind: output, shape index: {}]
  %s8 = sld [smem:[#allocation0]]
  $region38: #{lenet_forward.3} parent=0
    _
  %s10 = ssub.s32 1, %s8
  %s11 = scalar_select 0, %s10, %s8
  // Predicated region
  $region2: #{lenet_forward.3} parent=0 // pred_check
    _
  $region3: #{lenet_forward.3} parent=0 // pred_check_branch
    %13 = sbr.rel (0) target = $region5
  $region4: #{lenet_forward.3} parent=0 // pred_region
    _
  $region5: #{lenet_forward.3} parent=0 // pred_fallthru
    _
  // Predicated region
  $region6: #{lenet_forward.3} parent=0 // pred_check
    _
  $region7: #{lenet_forward.3} parent=0 // pred_check_branch
    %15 = sbr.rel (0) target = $region9
  $region8: #{lenet_forward.3} parent=0 // pred_region
    _
  $region9: #{lenet_forward.3} parent=0 // pred_fallthru
    _
  // Predicated region
  $region10: #{lenet_forward.3} parent=0 // pred_check
    _
  $region11: #{lenet_forward.3} parent=0 // pred_check_branch
    %17 = sbr.rel (0) target = $region13
  $region12: #{lenet_forward.3} parent=0 // pred_region
    _
  $region13: #{lenet_forward.3} parent=0 // pred_fallthru
    _
  // Predicated region
  $region14: #{lenet_forward.3} parent=0 // pred_check
    _
  $region15: #{lenet_forward.3} parent=0 // pred_check_branch
    %19 = sbr.rel (0) target = $region17
  $region16: #{lenet_forward.3} parent=0 // pred_region
    _
  $region17: #{lenet_forward.3} parent=0 // pred_fallthru
    _
  // Predicated region
  $region18: #{lenet_forward.3} parent=0 // pred_check
    _
  $region19: #{lenet_forward.3} parent=0 // pred_check_branch
    %21 = sbr.rel (0) target = $region21
  $region20: #{lenet_forward.3} parent=0 // pred_region
    _
  $region21: #{lenet_forward.3} parent=0 // pred_fallthru
    _
  // Predicated region
  $region22: #{lenet_forward.3} parent=0 // pred_check
    _
  $region23: #{lenet_forward.3} parent=0 // pred_check_branch
    %23 = sbr.rel (0) target = $region25
  $region24: #{lenet_forward.3} parent=0 // pred_region
    _
  $region25: #{lenet_forward.3} parent=0 // pred_fallthru
    _
  // Predicated region
  $region26: #{lenet_forward.3} parent=0 // pred_check
    _
  $region27: #{lenet_forward.3} parent=0 // pred_check_branch
    %25 = sbr.rel (0) target = $region29
  $region28: #{lenet_forward.3} parent=0 // pred_region
    _
  $region29: #{lenet_forward.3} parent=0 // pred_fallthru
    _
  %v27 = vld [vmem:[%s0] sm:$0xff]
  %v28 = vld [vmem:[%s0 + $0x8] sm:$0xff]
  %v29 = vld [vmem:[%s1] sm:$0xf]
  %v30 = vld [vmem:[%s1 + $0x4] sm:$0xf]
  %v31 = vld [vmem:[%s1 + $0x8] sm:$0xf]
  %v32 = vld [vmem:[%s1 + $0xc] sm:$0xf]
  %v33 = vld [vmem:[%s1 + $0x10] sm:$0xf]
  %v34 = vld [vmem:[%s1 + $0x14] sm:$0xf]
  %v35 = vld [vmem:[%s1 + $0x18] sm:$0xf]
  %v36 = vld [vmem:[%s1 + $0x1c] sm:$0xf]
  %v37 = vld [vmem:[%s1 + $0x20] sm:$0xf]
  %v38 = vld [vmem:[%s1 + $0x24] sm:$0xf]
  %v39 = vld [vmem:[%s1 + $0x28] sm:$0xf]
  %v40 = vld [vmem:[%s1 + $0x2c] sm:$0xf]
  %v41 = vld [vmem:[%s1 + $0x30] sm:$0xf]
  %v42 = vld [vmem:[%s1 + $0x34] sm:$0xf]
  %v43 = vld [vmem:[%s1 + $0x38] sm:$0xf]
  %v44 = vld [vmem:[%s1 + $0x3c] sm:$0xf]
  %v45 = vld [vmem:[%s1 + $0x40] sm:$0xf]
  %v46 = vld [vmem:[%s1 + $0x44] sm:$0xf]
  %v47 = vld [vmem:[%s1 + $0x48] sm:$0xf]
  %v48 = vld [vmem:[%s1 + $0x4c] sm:$0xf]
  %v49 = vld [vmem:[%s1 + $0x50] sm:$0xf]
  %v50 = vld [vmem:[%s1 + $0x54] sm:$0xf]
  %v51 = vld [vmem:[%s1 + $0x58] sm:$0xf]
  %v52 = vld [vmem:[%s1 + $0x5c] sm:$0xf]
  %v53 = vld [vmem:[%s1 + $0x60] sm:$0xf]
  %v54 = vld [vmem:[%s1 + $0x64] sm:$0xf]
  %v55 = vld [vmem:[%s1 + $0x68] sm:$0xf]
  %v56 = vld [vmem:[%s1 + $0x6c] sm:$0xf]
  %v57 = vld [vmem:[%s1 + $0x70] sm:$0xf]
  %v58 = vld [vmem:[%s1 + $0x74] sm:$0xf]
  %v59 = vld [vmem:[%s1 + $0x78] sm:$0xf]
  %v60 = vld [vmem:[%s1 + $0x7c] sm:$0xf]
  %v61 = vld [vmem:[%s1 + $0x80] sm:$0xf]
  %v62 = vld [vmem:[%s1 + $0x84] sm:$0xf]
  %v63 = vld [vmem:[%s1 + $0x88] sm:$0xf]
  %v64 = vld [vmem:[%s1 + $0x8c] sm:$0xf]
  %v65 = vld [vmem:[%s1 + $0x90] sm:$0xf]
  %v66 = vld [vmem:[%s1 + $0x94] sm:$0xf]
  %v67 = vld [vmem:[%s1 + $0x98] sm:$0xf]
  %v68 = vld [vmem:[%s1 + $0x9c] sm:$0xf]
  %v69 = vld [vmem:[%s1 + $0xa0] sm:$0xf]
  %v70 = vld [vmem:[%s1 + $0xa4] sm:$0xf]
  %v71 = vld [vmem:[%s1 + $0xa8] sm:$0xf]
  %v72 = vld [vmem:[%s1 + $0xac] sm:$0xf]
  %v73 = vld [vmem:[%s1 + $0xb0] sm:$0xf]
  %v74 = vld [vmem:[%s1 + $0xb4] sm:$0xf]
  %v75 = vld [vmem:[%s1 + $0xb8] sm:$0xf]
  %v76 = vld [vmem:[%s1 + $0xbc] sm:$0xf]
  %v77 = vld [vmem:[%s1 + $0xc0] sm:$0xf]
  %v78 = vld [vmem:[%s1 + $0xc4] sm:$0xf]
  %v79 = vld [vmem:[%s2] sm:$0x1]
  %v81 = vperm.slane %v79, 0
  %v85 = vunpack.c.l.b16 %v27
  %v86 = vunpack.c.h.b16 %v27
  %v87 = vunpack.c.l.b16 %v28
  %v88 = vunpack.c.h.b16 %v28
  %v89 = vpack.c.b16 %v85, %v85
  %v90 = vpack.c.b16 %v86, %v86
  %v91 = vpack.c.b16 %v87, %v87
  %v92 = vpack.c.b16 %v88, %v88
  %v146 = vunpack.c.l.b16 %v29
  %v147 = vunpack.c.l.b16 %v30
  %v148 = vunpack.c.l.b16 %v31
  %v149 = vunpack.c.l.b16 %v32
  %v150 = vunpack.c.l.b16 %v33
  %v151 = vunpack.c.l.b16 %v34
  %v152 = vunpack.c.l.b16 %v35
  %v153 = vunpack.c.l.b16 %v36
  %v154 = vunpack.c.l.b16 %v37
  %v155 = vunpack.c.l.b16 %v38
  %v156 = vunpack.c.l.b16 %v39
  %v157 = vunpack.c.l.b16 %v40
  %v158 = vunpack.c.l.b16 %v41
  %v159 = vunpack.c.l.b16 %v42
  %v160 = vunpack.c.l.b16 %v43
  %v161 = vunpack.c.l.b16 %v44
  %v162 = vunpack.c.l.b16 %v45
  %v163 = vunpack.c.l.b16 %v46
  %v164 = vunpack.c.l.b16 %v47
  %v165 = vunpack.c.l.b16 %v48
  %v166 = vunpack.c.l.b16 %v49
  %v167 = vunpack.c.l.b16 %v50
  %v168 = vunpack.c.l.b16 %v51
  %v169 = vunpack.c.l.b16 %v52
  %v170 = vunpack.c.l.b16 %v53
  %v171 = vunpack.c.l.b16 %v54
  %v172 = vunpack.c.l.b16 %v55
  %v173 = vunpack.c.l.b16 %v56
  %v174 = vunpack.c.l.b16 %v57
  %v175 = vunpack.c.l.b16 %v58
  %v176 = vunpack.c.l.b16 %v59
  %v177 = vunpack.c.l.b16 %v60
  %v178 = vunpack.c.l.b16 %v61
  %v179 = vunpack.c.l.b16 %v62
  %v180 = vunpack.c.l.b16 %v63
  %v181 = vunpack.c.l.b16 %v64
  %v182 = vunpack.c.l.b16 %v65
  %v183 = vunpack.c.l.b16 %v66
  %v184 = vunpack.c.l.b16 %v67
  %v185 = vunpack.c.l.b16 %v68
  %v186 = vunpack.c.l.b16 %v69
  %v187 = vunpack.c.l.b16 %v70
  %v188 = vunpack.c.l.b16 %v71
  %v189 = vunpack.c.l.b16 %v72
  %v190 = vunpack.c.l.b16 %v73
  %v191 = vunpack.c.l.b16 %v74
  %v192 = vunpack.c.l.b16 %v75
  %v193 = vunpack.c.l.b16 %v76
  %v194 = vunpack.c.l.b16 %v77
  %v195 = vunpack.c.l.b16 %v78
  %v196 = vpack.c.b16 %v147, %v146
  %v197 = vpack.c.b16 %v149, %v148
  %v198 = vpack.c.b16 %v151, %v150
  %v199 = vpack.c.b16 %v153, %v152
  %v200 = vpack.c.b16 %v155, %v154
  %v201 = vpack.c.b16 %v157, %v156
  %v202 = vpack.c.b16 %v159, %v158
  %v203 = vpack.c.b16 %v161, %v160
  %v204 = vpack.c.b16 %v163, %v162
  %v205 = vpack.c.b16 %v165, %v164
  %v206 = vpack.c.b16 %v167, %v166
  %v207 = vpack.c.b16 %v169, %v168
  %v208 = vpack.c.b16 %v171, %v170
  %v209 = vpack.c.b16 %v173, %v172
  %v210 = vpack.c.b16 %v175, %v174
  %v211 = vpack.c.b16 %v177, %v176
  %v212 = vpack.c.b16 %v179, %v178
  %v213 = vpack.c.b16 %v181, %v180
  %v214 = vpack.c.b16 %v183, %v182
  %v215 = vpack.c.b16 %v185, %v184
  %v216 = vpack.c.b16 %v187, %v186
  %v217 = vpack.c.b16 %v189, %v188
  %v218 = vpack.c.b16 %v191, %v190
  %v219 = vpack.c.b16 %v193, %v192
  %v220 = vpack.c.b16 %v195, %v194
  %vm246 = vcmask 130048
  %v248 = vsel %vm246, %v92, 0
  %250 = vmatpush.bf16.msra.mxu0 %v203
  %251 = vmatpush.bf16.msra.mxu0 %v202
  %252 = vmatpush.bf16.msra.mxu0 %v201
  %253 = vmatpush.bf16.msra.mxu0 %v200
  %254 = vmatpush.bf16.msra.mxu0 %v199
  %255 = vmatpush.bf16.msra.mxu0 %v198
  %256 = vmatpush.bf16.msra.mxu0 %v197
  %257 = vmatpush.bf16.msra.mxu0 %v196
  %258 = vmatmul.bf16.gmra.mxu0 %v89
  %v259 = vpop.f32.mrf.mxu0
  %v260 = vadd.f32 %v81, %v259
  %v261 = vpop.f32.mrf.mxu0
  %262 = vdwg.mxu0
  %263 = vmatpush.bf16.msra.mxu0 %v211
  %264 = vmatpush.bf16.msra.mxu0 %v210
  %265 = vmatpush.bf16.msra.mxu0 %v209
  %266 = vmatpush.bf16.msra.mxu0 %v208
  %267 = vmatpush.bf16.msra.mxu0 %v207
  %268 = vmatpush.bf16.msra.mxu0 %v206
  %269 = vmatpush.bf16.msra.mxu0 %v205
  %270 = vmatpush.bf16.msra.mxu0 %v204
  %271 = vmatmul.bf16.gmra.mxu0 %v90
  %v272 = vpop.f32.mrf.mxu0
  %v273 = vadd.f32 %v260, %v272
  %v274 = vpop.f32.mrf.mxu0
  %275 = vdwg.mxu0
  %276 = vmatpush.bf16.msra.mxu0 %v219
  %277 = vmatpush.bf16.msra.mxu0 %v218
  %278 = vmatpush.bf16.msra.mxu0 %v217
  %279 = vmatpush.bf16.msra.mxu0 %v216
  %280 = vmatpush.bf16.msra.mxu0 %v215
  %281 = vmatpush.bf16.msra.mxu0 %v214
  %282 = vmatpush.bf16.msra.mxu0 %v213
  %283 = vmatpush.bf16.msra.mxu0 %v212
  %284 = vmatmul.bf16.gmra.mxu0 %v91
  %v285 = vpop.f32.mrf.mxu0
  %v286 = vadd.f32 %v273, %v285
  %v287 = vpop.f32.mrf.mxu0
  %288 = vdwg.mxu0
  %289 = vmatpush.bf16.msra.mxu0 0
  %290 = vmatpush.bf16.msra.mxu0 0
  %291 = vmatpush.bf16.msra.mxu0 0
  %292 = vmatpush.bf16.msra.mxu0 0
  %293 = vmatpush.bf16.msra.mxu0 0
  %294 = vmatpush.bf16.msra.mxu0 0
  %295 = vmatpush.bf16.msra.mxu0 0
  %296 = vmatpush.bf16.msra.mxu0 %v220
  %297 = vmatmul.bf16.gmra.mxu0 %v248
  %v298 = vpop.f32.mrf.mxu0
  %v299 = vadd.f32 %v286, %v298
  %v300 = vpop.f32.mrf.mxu0
  %301 = vdwg.mxu0
  %v302 = vmax.f32 %v299, 0.0
  %v303 = vpack.c.bf16 %v302, %v302
  %v304 = vld [vmem:[%s3] sm:$0xf]
  %v305 = vld [vmem:[%s3 + $0x4] sm:$0xf]
  %v306 = vld [vmem:[%s3 + $0x8] sm:$0xf]
  %v307 = vld [vmem:[%s3 + $0xc] sm:$0xf]
  %v308 = vld [vmem:[%s3 + $0x10] sm:$0xf]
  %v309 = vld [vmem:[%s3 + $0x14] sm:$0xf]
  %v310 = vld [vmem:[%s3 + $0x18] sm:$0xf]
  %v311 = vld [vmem:[%s3 + $0x1c] sm:$0xf]
  %v312 = vld [vmem:[%s3 + $0x20] sm:$0xf]
  %v313 = vld [vmem:[%s3 + $0x24] sm:$0xf]
  %v314 = vld [vmem:[%s3 + $0x28] sm:$0xf]
  %v315 = vld [vmem:[%s3 + $0x2c] sm:$0xf]
  %v316 = vld [vmem:[%s3 + $0x30] sm:$0xf]
  %v317 = vld [vmem:[%s3 + $0x34] sm:$0xf]
  %v318 = vld [vmem:[%s3 + $0x38] sm:$0xf]
  %v319 = vld [vmem:[%s4] sm:$0x1]
  %v321 = vperm.slane %v319, 0
  %v338 = vunpack.c.l.b16 %v304
  %v339 = vunpack.c.l.b16 %v305
  %v340 = vunpack.c.l.b16 %v306
  %v341 = vunpack.c.l.b16 %v307
  %v342 = vunpack.c.l.b16 %v308
  %v343 = vunpack.c.l.b16 %v309
  %v344 = vunpack.c.l.b16 %v310
  %v345 = vunpack.c.l.b16 %v311
  %v346 = vunpack.c.l.b16 %v312
  %v347 = vunpack.c.l.b16 %v313
  %v348 = vunpack.c.l.b16 %v314
  %v349 = vunpack.c.l.b16 %v315
  %v350 = vunpack.c.l.b16 %v316
  %v351 = vunpack.c.l.b16 %v317
  %v352 = vunpack.c.l.b16 %v318
  %v353 = vpack.c.b16 %v339, %v338
  %v354 = vpack.c.b16 %v341, %v340
  %v355 = vpack.c.b16 %v343, %v342
  %v356 = vpack.c.b16 %v345, %v344
  %v357 = vpack.c.b16 %v347, %v346
  %v358 = vpack.c.b16 %v349, %v348
  %v359 = vpack.c.b16 %v351, %v350
  %v360 = vpack.c.b16 %v352, %v352
  %vm368 = vcmask 982016
  %v370 = vsel %vm368, %v303, 0
  %vm372 = vcmask 1043456
  %v374 = vsel %vm372, %v360, 0
  %376 = vmatpush.bf16.msra.mxu0 %v374
  %377 = vmatpush.bf16.msra.mxu0 %v359
  %378 = vmatpush.bf16.msra.mxu0 %v358
  %379 = vmatpush.bf16.msra.mxu0 %v357
  %380 = vmatpush.bf16.msra.mxu0 %v356
  %381 = vmatpush.bf16.msra.mxu0 %v355
  %382 = vmatpush.bf16.msra.mxu0 %v354
  %383 = vmatpush.bf16.msra.mxu0 %v353
  %384 = vmatmul.bf16.gmra.mxu0 %v370
  %v385 = vpop.f32.mrf.mxu0
  %v386 = vadd.f32 %v321, %v385
  %v387 = vpop.f32.mrf.mxu0
  %388 = vdwg.mxu0
  %v389 = vmax.f32 %v386, 0.0
  %v390 = vpack.c.bf16 %v389, %v389
  %v391 = vld [vmem:[%s5] sm:$0xf]
  %v392 = vld [vmem:[%s5 + $0x4] sm:$0xf]
  %v393 = vld [vmem:[%s5 + $0x8] sm:$0xf]
  %v394 = vld [vmem:[%s5 + $0xc] sm:$0xf]
  %v395 = vld [vmem:[%s5 + $0x10] sm:$0xf]
  %v396 = vld [vmem:[%s5 + $0x14] sm:$0xf]
  %v397 = vld [vmem:[%s5 + $0x18] sm:$0xf]
  %v398 = vld [vmem:[%s5 + $0x1c] sm:$0xf]
  %v399 = vld [vmem:[%s5 + $0x20] sm:$0xf]
  %v400 = vld [vmem:[%s5 + $0x24] sm:$0xf]
  %v401 = vld [vmem:[%s5 + $0x28] sm:$0x3]
  %v402 = vld [vmem:[%s6] sm:$0x1]
  %v404 = vperm.slane %v402, 0
  %v417 = vunpack.c.l.b16 %v391
  %v418 = vunpack.c.l.b16 %v392
  %v419 = vunpack.c.l.b16 %v393
  %v420 = vunpack.c.l.b16 %v394
  %v421 = vunpack.c.l.b16 %v395
  %v422 = vunpack.c.l.b16 %v396
  %v423 = vunpack.c.l.b16 %v397
  %v424 = vunpack.c.l.b16 %v398
  %v425 = vunpack.c.l.b16 %v399
  %v426 = vunpack.c.l.b16 %v400
  %v427 = vunpack.c.l.b16 %v401
  %v428 = vpack.c.b16 %v418, %v417
  %v429 = vpack.c.b16 %v420, %v419
  %v430 = vpack.c.b16 %v422, %v421
  %v431 = vpack.c.b16 %v424, %v423
  %v432 = vpack.c.b16 %v426, %v425
  %v433 = vpack.c.b16 %v427, %v427
  %vm439 = vcmask 687104
  %v441 = vsel %vm439, %v390, 0
  %vm443 = vcmask 1041408
  %v445 = vsel %vm443, %v433, 0
  %447 = vmatpush.bf16.msra.mxu0 0
  %448 = vmatpush.bf16.msra.mxu0 0
  %449 = vmatpush.bf16.msra.mxu0 %v445
  %450 = vmatpush.bf16.msra.mxu0 %v432
  %451 = vmatpush.bf16.msra.mxu0 %v431
  %452 = vmatpush.bf16.msra.mxu0 %v430
  %453 = vmatpush.bf16.msra.mxu0 %v429
  %454 = vmatpush.bf16.msra.mxu0 %v428
  %455 = vmatmul.bf16.gmra.mxu0 %v441
  %v456 = vpop.f32.mrf.mxu0
  %v457 = vadd.f32 %v404, %v456
  %v458 = vpop.f32.mrf.mxu0
  %459 = vdwg.mxu0
  %vm460 = vcmask 80896
  %461 = vst.msk [vmem:[%s7] sm:$0xff] %vm460, %v457
  // Predicated region
  $region30: #{lenet_forward.3} parent=0 // pred_check
    _
  $region31: #{lenet_forward.3} parent=0 // pred_check_branch
    %463 = sbr.rel (0) target = $region33
  $region32: #{lenet_forward.3} parent=0 // pred_region
    _
  $region33: #{lenet_forward.3} parent=0 // pred_fallthru
    _
  // Predicated region
  $region34: #{lenet_forward.3} parent=0 // pred_check
    _
  $region35: #{lenet_forward.3} parent=0 // pred_check_branch
    %465 = sbr.rel (0) target = $region37
  $region36: #{lenet_forward.3} parent=0 // pred_region
    _
  $region37: #{lenet_forward.3} parent=0 // pred_fallthru
    _

// kernel: lenet_forward.2
$region0: #{lenet_forward.2}
  #allocation0 [shape = 'u32[]', space=smem, size = 0x4, offset = 0x4, fixed_abs, tag = 'smem constant byte address 0x4 - core index']
  #allocation1 [shape = 'u32[72,128]{1,0:T(1,128)}', space=vmem, size = 0x9000, scoped, tag = 'internal scratch']
  #allocation2 [shape = 'f32[168,28]{1,0:T(8,128)}', space=vmem, size = 0x15000, scoped, tag = 'scratch operand']
  #allocation3 [shape = 'f32[160,10]{1,0:T(8,128)}', space=vmem, size = 0x14000, scoped, tag = 'scratch operand']
  %s0 = inlined_call_operand.vmem [shape: bf16[8,32,32], index: 0, kind: input, shape index: {}]
  %s1 = inlined_call_operand.vmem [shape: bf16[5,168,32], index: 1, kind: input, shape index: {}]
  %s2 = inlined_call_operand.vmem [shape: f32[168,1], index: 2, kind: input, shape index: {}]
  %s3 = inlined_call_operand.vmem [shape: bf16[5,160,84], index: 3, kind: input, shape index: {}]
  %s4 = inlined_call_operand.vmem [shape: f32[160,1], index: 4, kind: input, shape index: {}]
  %s5 = inlined_call_operand.vmem [shape: bf16[640,5], index: 5, kind: output, shape index: {}]
  %s6 = sld [smem:[#allocation0]]
  $region37: #{lenet_forward.2} parent=0
    _
  %s8 = ssub.s32 1, %s6
  %s9 = scalar_select 0, %s8, %s6
  // Predicated region
  $region2: #{lenet_forward.2} parent=0 // pred_check
    _
  $region3: #{lenet_forward.2} parent=0 // pred_check_branch
    %11 = sbr.rel (0) target = $region5
  $region4: #{lenet_forward.2} parent=0 // pred_region
    _
  $region5: #{lenet_forward.2} parent=0 // pred_fallthru
    _
  // Predicated region
  $region6: #{lenet_forward.2} parent=0 // pred_check
    _
  $region7: #{lenet_forward.2} parent=0 // pred_check_branch
    %13 = sbr.rel (0) target = $region9
  $region8: #{lenet_forward.2} parent=0 // pred_region
    _
  $region9: #{lenet_forward.2} parent=0 // pred_fallthru
    _
  // Predicated region
  $region10: #{lenet_forward.2} parent=0 // pred_check
    _
  $region11: #{lenet_forward.2} parent=0 // pred_check_branch
    %15 = sbr.rel (0) target = $region13
  $region12: #{lenet_forward.2} parent=0 // pred_region
    _
  $region13: #{lenet_forward.2} parent=0 // pred_fallthru
    _
  // Predicated region
  $region14: #{lenet_forward.2} parent=0 // pred_check
    _
  $region15: #{lenet_forward.2} parent=0 // pred_check_branch
    %17 = sbr.rel (0) target = $region17
  $region16: #{lenet_forward.2} parent=0 // pred_region
    _
  $region17: #{lenet_forward.2} parent=0 // pred_fallthru
    _
  // Predicated region
  $region18: #{lenet_forward.2} parent=0 // pred_check
    _
  $region19: #{lenet_forward.2} parent=0 // pred_check_branch
    %19 = sbr.rel (0) target = $region21
  $region20: #{lenet_forward.2} parent=0 // pred_region
    _
  $region21: #{lenet_forward.2} parent=0 // pred_fallthru
    _
  %v21 = vlaneseq
  %v22 = vshrl.u32 %v21, 7
  %v23 = vadd.s32 %v22, 8
  %v24 = vadd.s32 %v22, 16
  %v25 = vadd.s32 %v22, 24
  %v26 = vlaneseq
  %v27 = vand.u32 %v26, 127
  %v28 = vmul.u32 %v27, 2
  %vm29 = vcmp.eq.s32.totalorder %v22, %v28
  %vm30 = vcmp.eq.s32.totalorder %v23, %v28
  %vm31 = vcmp.eq.s32.totalorder %v24, %v28
  %vm32 = vcmp.eq.s32.totalorder %v25, %v28
  %v33 = vsel %vm29, 1, 0
  %v34 = vsel %vm30, 1, 0
  %v35 = vsel %vm31, 1, 0
  %v36 = vsel %vm32, 1, 0
  %v37 = vcvt.s32.f32 %v33
  %v38 = vcvt.s32.f32 %v34
  %v39 = vcvt.s32.f32 %v35
  %v40 = vcvt.s32.f32 %v36
  %v41 = vpack.c.bf16 %v38, %v37
  %v42 = vpack.c.bf16 %v40, %v39
  %v43 = vadd.s32 %v28, 1
  %vm44 = vcmp.eq.s32.totalorder %v22, %v43
  %vm45 = vcmp.eq.s32.totalorder %v23, %v43
  %vm46 = vcmp.eq.s32.totalorder %v24, %v43
  %vm47 = vcmp.eq.s32.totalorder %v25, %v43
  %v48 = vsel %vm44, 1, 0
  %v49 = vsel %vm45, 1, 0
  %v50 = vsel %vm46, 1, 0
  %v51 = vsel %vm47, 1, 0
  %v52 = vcvt.s32.f32 %v48
  %v53 = vcvt.s32.f32 %v49
  %v54 = vcvt.s32.f32 %v50
  %v55 = vcvt.s32.f32 %v51
  %v56 = vpack.c.bf16 %v53, %v52
  %v57 = vpack.c.bf16 %v55, %v54
  loop: start=0, step=1, limit=8
  $region22: #{lenet_forward.2} parent=0 // loop_pre_header
    _
  $region23: #{lenet_forward.2} parent=0 // loop_header
    %s59 = sphi 0, %s63
    %p60 = scmp.ge.s32.totalorder %s59, 8
  $region24: #{lenet_forward.2} parent=0 // loop_header_branch
    %62 = sbr.rel (%p60) target = $region28
  $region25: #{lenet_forward.2} parent=0 // loop_body
    %s64 = smul.u32 %s59, 4
    %s65 = smul.addr %s64, 4
    %s66 = scalar_lea.vmem %s0, %s65
    %v67 = vld [vmem:[%s66] sm:$0xf]
    %v68 = vld [vmem:[%s66 + $0x4] sm:$0xf]
    %v69 = vld [vmem:[%s66 + $0x8] sm:$0xf]
    %v70 = vld [vmem:[%s66 + $0xc] sm:$0xf]
    %v71 = vld [vmem:[%s1] sm:$0xf]
    %v72 = vld [vmem:[%s1 + $0x4] sm:$0xf]
    %v73 = vld [vmem:[%s1 + $0x8] sm:$0xf]
    %v74 = vld [vmem:[%s1 + $0xc] sm:$0xf]
    %v75 = vld [vmem:[%s1 + $0x10] sm:$0xf]
    %v76 = vld [vmem:[%s1 + $0x14] sm:$0xf]
    %v77 = vld [vmem:[%s1 + $0x18] sm:$0xf]
    %v78 = vld [vmem:[%s1 + $0x1c] sm:$0xf]
    %v79 = vld [vmem:[%s1 + $0x20] sm:$0xf]
    %v80 = vld [vmem:[%s1 + $0x24] sm:$0xf]
    %v81 = vld [vmem:[%s1 + $0x28] sm:$0xf]
    %v82 = vld [vmem:[%s1 + $0x2c] sm:$0xf]
    %v83 = vld [vmem:[%s1 + $0x30] sm:$0xf]
    %v84 = vld [vmem:[%s1 + $0x34] sm:$0xf]
    %v85 = vld [vmem:[%s1 + $0x38] sm:$0xf]
    %v86 = vld [vmem:[%s1 + $0x3c] sm:$0xf]
    %v87 = vld [vmem:[%s1 + $0x40] sm:$0xf]
    %v88 = vld [vmem:[%s1 + $0x44] sm:$0xf]
    %v89 = vld [vmem:[%s1 + $0x48] sm:$0xf]
    %v90 = vld [vmem:[%s1 + $0x4c] sm:$0xf]
    %v91 = vld [vmem:[%s1 + $0x50] sm:$0xf]
    %s92 = scalar_lea.vmem %s1, 84
    %v93 = vld [vmem:[%s92] sm:$0xf]
    %v94 = vld [vmem:[%s92 + $0x4] sm:$0xf]
    %v95 = vld [vmem:[%s92 + $0x8] sm:$0xf]
    %v96 = vld [vmem:[%s92 + $0xc] sm:$0xf]
    %v97 = vld [vmem:[%s92 + $0x10] sm:$0xf]
    %v98 = vld [vmem:[%s92 + $0x14] sm:$0xf]
    %v99 = vld [vmem:[%s92 + $0x18] sm:$0xf]
    %v100 = vld [vmem:[%s92 + $0x1c] sm:$0xf]
    %v101 = vld [vmem:[%s92 + $0x20] sm:$0xf]
    %v102 = vld [vmem:[%s92 + $0x24] sm:$0xf]
    %v103 = vld [vmem:[%s92 + $0x28] sm:$0xf]
    %v104 = vld [vmem:[%s92 + $0x2c] sm:$0xf]
    %v105 = vld [vmem:[%s92 + $0x30] sm:$0xf]
    %v106 = vld [vmem:[%s92 + $0x34] sm:$0xf]
    %v107 = vld [vmem:[%s92 + $0x38] sm:$0xf]
    %v108 = vld [vmem:[%s92 + $0x3c] sm:$0xf]
    %v109 = vld [vmem:[%s92 + $0x40] sm:$0xf]
    %v110 = vld [vmem:[%s92 + $0x44] sm:$0xf]
    %v111 = vld [vmem:[%s92 + $0x48] sm:$0xf]
    %v112 = vld [vmem:[%s92 + $0x4c] sm:$0xf]
    %v113 = vld [vmem:[%s92 + $0x50] sm:$0xf]
    %v135 = vunpack.c.l.b16 %v93
    %v136 = vunpack.c.l.b16 %v94
    %v137 = vunpack.c.l.b16 %v95
    %v138 = vunpack.c.l.b16 %v96
    %v139 = vunpack.c.l.b16 %v97
    %v140 = vunpack.c.l.b16 %v98
    %v141 = vunpack.c.l.b16 %v99
    %v142 = vunpack.c.l.b16 %v100
    %v143 = vunpack.c.l.b16 %v101
    %v144 = vunpack.c.l.b16 %v102
    %v145 = vunpack.c.l.b16 %v103
    %v146 = vunpack.c.l.b16 %v104
    %v147 = vunpack.c.l.b16 %v105
    %v148 = vunpack.c.l.b16 %v106
    %v149 = vunpack.c.l.b16 %v107
    %v150 = vunpack.c.l.b16 %v108
    %v151 = vunpack.c.l.b16 %v109
    %v152 = vunpack.c.l.b16 %v110
    %v153 = vunpack.c.l.b16 %v111
    %v154 = vunpack.c.l.b16 %v112
    %v155 = vunpack.c.l.b16 %v113
    %v156 = vpack.c.b16 %v136, %v135
    %v157 = vpack.c.b16 %v138, %v137
    %v158 = vpack.c.b16 %v140, %v139
    %v159 = vpack.c.b16 %v142, %v141
    %v160 = vpack.c.b16 %v144, %v143
    %v161 = vpack.c.b16 %v146, %v145
    %v162 = vpack.c.b16 %v148, %v147
    %v163 = vpack.c.b16 %v150, %v149
    %v164 = vpack.c.b16 %v152, %v151
    %v165 = vpack.c.b16 %v154, %v153
    %v166 = vpack.c.b16 %v155, %v155
    %v171 = vunpack.c.l.b16 %v67
    %v172 = vunpack.c.l.b16 %v68
    %v173 = vunpack.c.l.b16 %v69
    %v174 = vunpack.c.l.b16 %v70
    %v175 = vpack.c.b16 %v172, %v171
    %v176 = vpack.c.b16 %v174, %v173
    %177 = vrot.lane.b32.xlu0 %v175, 127
    %v178 = vpop.permute.xlu0 %177
    %179 = vrot.lane.b32.xlu0 %v176, 127
    %v180 = vpop.permute.xlu0 %179
    %vm183 = vcmask 261120
    %v185 = vsel %vm183, %v156, 0
    %v188 = vsel %vm183, %v157, 0
    %v191 = vsel %vm183, %v158, 0
    %v194 = vsel %vm183, %v159, 0
    %v197 = vsel %vm183, %v160, 0
    %v200 = vsel %vm183, %v161, 0
    %v203 = vsel %vm183, %v162, 0
    %v206 = vsel %vm183, %v163, 0
    %v209 = vsel %vm183, %v164, 0
    %v212 = vsel %vm183, %v165, 0
    %v215 = vsel %vm183, %v166, 0
    %217 = vmatpush.bf16.msra.mxu0 0
    %218 = vmatpush.bf16.msra.mxu0 0
    %219 = vmatpush.bf16.msra.mxu0 0
    %220 = vmatpush.bf16.msra.mxu0 0
    %221 = vmatpush.bf16.msra.mxu0 0
    %222 = vmatpush.bf16.msra.mxu0 0
    %223 = vmatpush.bf16.msra.mxu0 %v180
    %224 = vmatpush.bf16.msra.mxu0 %v178
    %225 = vmatmul.bf16.gmra.mxu0 %v185
    %v226 = vpop.f32.mrf.mxu0
    %v227 = vadd.f32 0.0, %v226
    %v228 = vpop.f32.mrf.mxu0
    %v229 = vadd.f32 0.0, %v228
    %230 = vmatmul.bf16.gmra.mxu0 %v188
    %v231 = vpop.f32.mrf.mxu0
    %v232 = vadd.f32 0.0, %v231
    %v233 = vpop.f32.mrf.mxu0
    %v234 = vadd.f32 0.0, %v233
    %235 = vmatmul.bf16.gmra.mxu0 %v191
    %v236 = vpop.f32.mrf.mxu0
    %v237 = vadd.f32 0.0, %v236
    %v238 = vpop.f32.mrf.mxu0
    %v239 = vadd.f32 0.0, %v238
    %240 = vmatmul.bf16.gmra.mxu0 %v194
    %v241 = vpop.f32.mrf.mxu0
    %v242 = vadd.f32 0.0, %v241
    %v243 = vpop.f32.mrf.mxu0
    %v244 = vadd.f32 0.0, %v243
    %245 = vmatmul.bf16.gmra.mxu0 %v197
    %v246 = vpop.f32.mrf.mxu0
    %v247 = vadd.f32 0.0, %v246
    %v248 = vpop.f32.mrf.mxu0
    %v249 = vadd.f32 0.0, %v248
    %250 = vmatmul.bf16.gmra.mxu0 %v200
    %v251 = vpop.f32.mrf.mxu0
    %v252 = vadd.f32 0.0, %v251
    %v253 = vpop.f32.mrf.mxu0
    %v254 = vadd.f32 0.0, %v253
    %255 = vmatmul.bf16.gmra.mxu0 %v203
    %v256 = vpop.f32.mrf.mxu0
    %v257 = vadd.f32 0.0, %v256
    %v258 = vpop.f32.mrf.mxu0
    %v259 = vadd.f32 0.0, %v258
    %260 = vmatmul.bf16.gmra.mxu0 %v206
    %v261 = vpop.f32.mrf.mxu0
    %v262 = vadd.f32 0.0, %v261
    %v263 = vpop.f32.mrf.mxu0
    %v264 = vadd.f32 0.0, %v263
    %265 = vmatmul.bf16.gmra.mxu0 %v209
    %v266 = vpop.f32.mrf.mxu0
    %v267 = vadd.f32 0.0, %v266
    %v268 = vpop.f32.mrf.mxu0
    %v269 = vadd.f32 0.0, %v268
    %270 = vmatmul.bf16.gmra.mxu0 %v212
    %v271 = vpop.f32.mrf.mxu0
    %v272 = vadd.f32 0.0, %v271
    %v273 = vpop.f32.mrf.mxu0
    %v274 = vadd.f32 0.0, %v273
    %275 = vmatmul.bf16.gmra.mxu0 %v215
    %v276 = vpop.f32.mrf.mxu0
    %v277 = vadd.f32 0.0, %v276
    %v278 = vpop.f32.mrf.mxu0
    %279 = vdwg.mxu0
    %v301 = vunpack.c.l.b16 %v71
    %v302 = vunpack.c.l.b16 %v72
    %v303 = vunpack.c.l.b16 %v73
    %v304 = vunpack.c.l.b16 %v74
    %v305 = vunpack.c.l.b16 %v75
    %v306 = vunpack.c.l.b16 %v76
    %v307 = vunpack.c.l.b16 %v77
    %v308 = vunpack.c.l.b16 %v78
    %v309 = vunpack.c.l.b16 %v79
    %v310 = vunpack.c.l.b16 %v80
    %v311 = vunpack.c.l.b16 %v81
    %v312 = vunpack.c.l.b16 %v82
    %v313 = vunpack.c.l.b16 %v83
    %v314 = vunpack.c.l.b16 %v84
    %v315 = vunpack.c.l.b16 %v85
    %v316 = vunpack.c.l.b16 %v86
    %v317 = vunpack.c.l.b16 %v87
    %v318 = vunpack.c.l.b16 %v88
    %v319 = vunpack.c.l.b16 %v89
    %v320 = vunpack.c.l.b16 %v90
    %v321 = vunpack.c.l.b16 %v91
    %v322 = vpack.c.b16 %v302, %v301
    %v323 = vpack.c.b16 %v304, %v303
    %v324 = vpack.c.b16 %v306, %v305
    %v325 = vpack.c.b16 %v308, %v307
    %v326 = vpack.c.b16 %v310, %v309
    %v327 = vpack.c.b16 %v312, %v311
    %v328 = vpack.c.b16 %v314, %v313
    %v329 = vpack.c.b16 %v316, %v315
    %v330 = vpack.c.b16 %v318, %v317
    %v331 = vpack.c.b16 %v320, %v319
    %v332 = vpack.c.b16 %v321, %v321
    %v336 = vsel %vm183, %v322, 0
    %v339 = vsel %vm183, %v323, 0
    %v342 = vsel %vm183, %v324, 0
    %v345 = vsel %vm183, %v325, 0
    %v348 = vsel %vm183, %v326, 0
    %v351 = vsel %vm183, %v327, 0
    %v354 = vsel %vm183, %v328, 0
    %v357 = vsel %vm183, %v329, 0
    %v360 = vsel %vm183, %v330, 0
    %v363 = vsel %vm183, %v331, 0
    %v366 = vsel %vm183, %v332, 0
    %368 = vmatpush.bf16.msra.mxu0 0
    %369 = vmatpush.bf16.msra.mxu0 0
    %370 = vmatpush.bf16.msra.mxu0 0
    %371 = vmatpush.bf16.msra.mxu0 0
    %372 = vmatpush.bf16.msra.mxu0 0
    %373 = vmatpush.bf16.msra.mxu0 0
    %374 = vmatpush.bf16.msra.mxu0 %v176
    %375 = vmatpush.bf16.msra.mxu0 %v175
    %376 = vmatmul.bf16.gmra.mxu0 %v336
    %v377 = vpop.f32.mrf.mxu0
    %v378 = vadd.f32 %v227, %v377
    %v379 = vpop.f32.mrf.mxu0
    %v380 = vadd.f32 %v229, %v379
    %381 = vmatmul.bf16.gmra.mxu0 %v339
    %v382 = vpop.f32.mrf.mxu0
    %v383 = vadd.f32 %v232, %v382
    %v384 = vpop.f32.mrf.mxu0
    %v385 = vadd.f32 %v234, %v384
    %386 = vmatmul.bf16.gmra.mxu0 %v342
    %v387 = vpop.f32.mrf.mxu0
    %v388 = vadd.f32 %v237, %v387
    %v389 = vpop.f32.mrf.mxu0
    %v390 = vadd.f32 %v239, %v389
    %391 = vmatmul.bf16.gmra.mxu0 %v345
    %v392 = vpop.f32.mrf.mxu0
    %v393 = vadd.f32 %v242, %v392
    %v394 = vpop.f32.mrf.mxu0
    %v395 = vadd.f32 %v244, %v394
    %396 = vmatmul.bf16.gmra.mxu0 %v348
    %v397 = vpop.f32.mrf.mxu0
    %v398 = vadd.f32 %v247, %v397
    %v399 = vpop.f32.mrf.mxu0
    %v400 = vadd.f32 %v249, %v399
    %401 = vmatmul.bf16.gmra.mxu0 %v351
    %v402 = vpop.f32.mrf.mxu0
    %v403 = vadd.f32 %v252, %v402
    %v404 = vpop.f32.mrf.mxu0
    %v405 = vadd.f32 %v254, %v404
    %406 = vmatmul.bf16.gmra.mxu0 %v354
    %v407 = vpop.f32.mrf.mxu0
    %v408 = vadd.f32 %v257, %v407
    %v409 = vpop.f32.mrf.mxu0
    %v410 = vadd.f32 %v259, %v409
    %411 = vmatmul.bf16.gmra.mxu0 %v357
    %v412 = vpop.f32.mrf.mxu0
    %v413 = vadd.f32 %v262, %v412
    %v414 = vpop.f32.mrf.mxu0
    %v415 = vadd.f32 %v264, %v414
    %416 = vmatmul.bf16.gmra.mxu0 %v360
    %v417 = vpop.f32.mrf.mxu0
    %v418 = vadd.f32 %v267, %v417
    %v419 = vpop.f32.mrf.mxu0
    %v420 = vadd.f32 %v269, %v419
    %421 = vmatmul.bf16.gmra.mxu0 %v363
    %v422 = vpop.f32.mrf.mxu0
    %v423 = vadd.f32 %v272, %v422
    %v424 = vpop.f32.mrf.mxu0
    %v425 = vadd.f32 %v274, %v424
    %426 = vmatmul.bf16.gmra.mxu0 %v366
    %v427 = vpop.f32.mrf.mxu0
    %v428 = vadd.f32 %v277, %v427
    %v429 = vpop.f32.mrf.mxu0
    %430 = vdwg.mxu0
    %s431 = scalar_lea.vmem %s1, 168
    %v432 = vld [vmem:[%s431] sm:$0xf]
    %v433 = vld [vmem:[%s431 + $0x4] sm:$0xf]
    %v434 = vld [vmem:[%s431 + $0x8] sm:$0xf]
    %v435 = vld [vmem:[%s431 + $0xc] sm:$0xf]
    %v436 = vld [vmem:[%s431 + $0x10] sm:$0xf]
    %v437 = vld [vmem:[%s431 + $0x14] sm:$0xf]
    %v438 = vld [vmem:[%s431 + $0x18] sm:$0xf]
    %v439 = vld [vmem:[%s431 + $0x1c] sm:$0xf]
    %v440 = vld [vmem:[%s431 + $0x20] sm:$0xf]
    %v441 = vld [vmem:[%s431 + $0x24] sm:$0xf]
    %v442 = vld [vmem:[%s431 + $0x28] sm:$0xf]
    %v443 = vld [vmem:[%s431 + $0x2c] sm:$0xf]
    %v444 = vld [vmem:[%s431 + $0x30] sm:$0xf]
    %v445 = vld [vmem:[%s431 + $0x34] sm:$0xf]
    %v446 = vld [vmem:[%s431 + $0x38] sm:$0xf]
    %v447 = vld [vmem:[%s431 + $0x3c] sm:$0xf]
    %v448 = vld [vmem:[%s431 + $0x40] sm:$0xf]
    %v449 = vld [vmem:[%s431 + $0x44] sm:$0xf]
    %v450 = vld [vmem:[%s431 + $0x48] sm:$0xf]
    %v451 = vld [vmem:[%s431 + $0x4c] sm:$0xf]
    %v452 = vld [vmem:[%s431 + $0x50] sm:$0xf]
    %v474 = vunpack.c.l.b16 %v432
    %v475 = vunpack.c.l.b16 %v433
    %v476 = vunpack.c.l.b16 %v434
    %v477 = vunpack.c.l.b16 %v435
    %v478 = vunpack.c.l.b16 %v436
    %v479 = vunpack.c.l.b16 %v437
    %v480 = vunpack.c.l.b16 %v438
    %v481 = vunpack.c.l.b16 %v439
    %v482 = vunpack.c.l.b16 %v440
    %v483 = vunpack.c.l.b16 %v441
    %v484 = vunpack.c.l.b16 %v442
    %v485 = vunpack.c.l.b16 %v443
    %v486 = vunpack.c.l.b16 %v444
    %v487 = vunpack.c.l.b16 %v445
    %v488 = vunpack.c.l.b16 %v446
    %v489 = vunpack.c.l.b16 %v447
    %v490 = vunpack.c.l.b16 %v448
    %v491 = vunpack.c.l.b16 %v449
    %v492 = vunpack.c.l.b16 %v450
    %v493 = vunpack.c.l.b16 %v451
    %v494 = vunpack.c.l.b16 %v452
    %v495 = vpack.c.b16 %v475, %v474
    %v496 = vpack.c.b16 %v477, %v476
    %v497 = vpack.c.b16 %v479, %v478
    %v498 = vpack.c.b16 %v481, %v480
    %v499 = vpack.c.b16 %v483, %v482
    %v500 = vpack.c.b16 %v485, %v484
    %v501 = vpack.c.b16 %v487, %v486
    %v502 = vpack.c.b16 %v489, %v488
    %v503 = vpack.c.b16 %v491, %v490
    %v504 = vpack.c.b16 %v493, %v492
    %v505 = vpack.c.b16 %v494, %v494
    %506 = vrot.lane.b32.xlu0 %v175, 126
    %v507 = vpop.permute.xlu0 %506
    %508 = vrot.lane.b32.xlu0 %v176, 126
    %v509 = vpop.permute.xlu0 %508
    %v513 = vsel %vm183, %v495, 0
    %v516 = vsel %vm183, %v496, 0
    %v519 = vsel %vm183, %v497, 0
    %v522 = vsel %vm183, %v498, 0
    %v525 = vsel %vm183, %v499, 0
    %v528 = vsel %vm183, %v500, 0
    %v531 = vsel %vm183, %v501, 0
    %v534 = vsel %vm183, %v502, 0
    %v537 = vsel %vm183, %v503, 0
    %v540 = vsel %vm183, %v504, 0
    %v543 = vsel %vm183, %v505, 0
    %545 = vmatpush.bf16.msra.mxu0 0
    %546 = vmatpush.bf16.msra.mxu0 0
    %547 = vmatpush.bf16.msra.mxu0 0
    %548 = vmatpush.bf16.msra.mxu0 0
    %549 = vmatpush.bf16.msra.mxu0 0
    %550 = vmatpush.bf16.msra.mxu0 0
    %551 = vmatpush.bf16.msra.mxu0 %v509
    %552 = vmatpush.bf16.msra.mxu0 %v507
    %553 = vmatmul.bf16.gmra.mxu0 %v513
    %v554 = vpop.f32.mrf.mxu0
    %v555 = vadd.f32 0.0, %v554
    %v556 = vpop.f32.mrf.mxu0
    %v557 = vadd.f32 0.0, %v556
    %558 = vmatmul.bf16.gmra.mxu0 %v516
    %v559 = vpop.f32.mrf.mxu0
    %v560 = vadd.f32 0.0, %v559
    %v561 = vpop.f32.mrf.mxu0
    %v562 = vadd.f32 0.0, %v561
    %563 = vmatmul.bf16.gmra.mxu0 %v519
    %v564 = vpop.f32.mrf.mxu0
    %v565 = vadd.f32 0.0, %v564
    %v566 = vpop.f32.mrf.mxu0
    %v567 = vadd.f32 0.0, %v566
    %568 = vmatmul.bf16.gmra.mxu0 %v522
    %v569 = vpop.f32.mrf.mxu0
    %v570 = vadd.f32 0.0, %v569
    %v571 = vpop.f32.mrf.mxu0
    %v572 = vadd.f32 0.0, %v571
    %573 = vmatmul.bf16.gmra.mxu0 %v525
    %v574 = vpop.f32.mrf.mxu0
    %v575 = vadd.f32 0.0, %v574
    %v576 = vpop.f32.mrf.mxu0
    %v577 = vadd.f32 0.0, %v576
    %578 = vmatmul.bf16.gmra.mxu0 %v528
    %v579 = vpop.f32.mrf.mxu0
    %v580 = vadd.f32 0.0, %v579
    %v581 = vpop.f32.mrf.mxu0
    %v582 = vadd.f32 0.0, %v581
    %583 = vmatmul.bf16.gmra.mxu0 %v531
    %v584 = vpop.f32.mrf.mxu0
    %v585 = vadd.f32 0.0, %v584
    %v586 = vpop.f32.mrf.mxu0
    %v587 = vadd.f32 0.0, %v586
    %588 = vmatmul.bf16.gmra.mxu0 %v534
    %v589 = vpop.f32.mrf.mxu0
    %v590 = vadd.f32 0.0, %v589
    %v591 = vpop.f32.mrf.mxu0
    %v592 = vadd.f32 0.0, %v591
    %593 = vmatmul.bf16.gmra.mxu0 %v537
    %v594 = vpop.f32.mrf.mxu0
    %v595 = vadd.f32 0.0, %v594
    %v596 = vpop.f32.mrf.mxu0
    %v597 = vadd.f32 0.0, %v596
    %598 = vmatmul.bf16.gmra.mxu0 %v540
    %v599 = vpop.f32.mrf.mxu0
    %v600 = vadd.f32 0.0, %v599
    %v601 = vpop.f32.mrf.mxu0
    %v602 = vadd.f32 0.0, %v601
    %603 = vmatmul.bf16.gmra.mxu0 %v543
    %v604 = vpop.f32.mrf.mxu0
    %v605 = vadd.f32 0.0, %v604
    %v606 = vpop.f32.mrf.mxu0
    %607 = vdwg.mxu0
    %v608 = vadd.f32 %v378, %v555
    %v609 = vadd.f32 %v380, %v557
    %v610 = vadd.f32 %v383, %v560
    %v611 = vadd.f32 %v385, %v562
    %v612 = vadd.f32 %v388, %v565
    %v613 = vadd.f32 %v390, %v567
    %v614 = vadd.f32 %v393, %v570
    %v615 = vadd.f32 %v395, %v572
    %v616 = vadd.f32 %v398, %v575
    %v617 = vadd.f32 %v400, %v577
    %v618 = vadd.f32 %v403, %v580
    %v619 = vadd.f32 %v405, %v582
    %v620 = vadd.f32 %v408, %v585
    %v621 = vadd.f32 %v410, %v587
    %v622 = vadd.f32 %v413, %v590
    %v623 = vadd.f32 %v415, %v592
    %v624 = vadd.f32 %v418, %v595
    %v625 = vadd.f32 %v420, %v597
    %v626 = vadd.f32 %v423, %v600
    %v627 = vadd.f32 %v425, %v602
    %v628 = vadd.f32 %v428, %v605
    %s629 = scalar_lea.vmem %s1, 252
    %v630 = vld [vmem:[%s629] sm:$0xf]
    %v631 = vld [vmem:[%s629 + $0x4] sm:$0xf]
    %v632 = vld [vmem:[%s629 + $0x8] sm:$0xf]
    %v633 = vld [vmem:[%s629 + $0xc] sm:$0xf]
    %v634 = vld [vmem:[%s629 + $0x10] sm:$0xf]
    %v635 = vld [vmem:[%s629 + $0x14] sm:$0xf]
    %v636 = vld [vmem:[%s629 + $0x18] sm:$0xf]
    %v637 = vld [vmem:[%s629 + $0x1c] sm:$0xf]
    %v638 = vld [vmem:[%s629 + $0x20] sm:$0xf]
    %v639 = vld [vmem:[%s629 + $0x24] sm:$0xf]
    %v640 = vld [vmem:[%s629 + $0x28] sm:$0xf]
    %v641 = vld [vmem:[%s629 + $0x2c] sm:$0xf]
    %v642 = vld [vmem:[%s629 + $0x30] sm:$0xf]
    %v643 = vld [vmem:[%s629 + $0x34] sm:$0xf]
    %v644 = vld [vmem:[%s629 + $0x38] sm:$0xf]
    %v645 = vld [vmem:[%s629 + $0x3c] sm:$0xf]
    %v646 = vld [vmem:[%s629 + $0x40] sm:$0xf]
    %v647 = vld [vmem:[%s629 + $0x44] sm:$0xf]
    %v648 = vld [vmem:[%s629 + $0x48] sm:$0xf]
    %v649 = vld [vmem:[%s629 + $0x4c] sm:$0xf]
    %v650 = vld [vmem:[%s629 + $0x50] sm:$0xf]
    %v672 = vunpack.c.l.b16 %v630
    %v673 = vunpack.c.l.b16 %v631
    %v674 = vunpack.c.l.b16 %v632
    %v675 = vunpack.c.l.b16 %v633
    %v676 = vunpack.c.l.b16 %v634
    %v677 = vunpack.c.l.b16 %v635
    %v678 = vunpack.c.l.b16 %v636
    %v679 = vunpack.c.l.b16 %v637
    %v680 = vunpack.c.l.b16 %v638
    %v681 = vunpack.c.l.b16 %v639
    %v682 = vunpack.c.l.b16 %v640
    %v683 = vunpack.c.l.b16 %v641
    %v684 = vunpack.c.l.b16 %v642
    %v685 = vunpack.c.l.b16 %v643
    %v686 = vunpack.c.l.b16 %v644
    %v687 = vunpack.c.l.b16 %v645
    %v688 = vunpack.c.l.b16 %v646
    %v689 = vunpack.c.l.b16 %v647
    %v690 = vunpack.c.l.b16 %v648
    %v691 = vunpack.c.l.b16 %v649
    %v692 = vunpack.c.l.b16 %v650
    %v693 = vpack.c.b16 %v673, %v672
    %v694 = vpack.c.b16 %v675, %v674
    %v695 = vpack.c.b16 %v677, %v676
    %v696 = vpack.c.b16 %v679, %v678
    %v697 = vpack.c.b16 %v681, %v680
    %v698 = vpack.c.b16 %v683, %v682
    %v699 = vpack.c.b16 %v685, %v684
    %v700 = vpack.c.b16 %v687, %v686
    %v701 = vpack.c.b16 %v689, %v688
    %v702 = vpack.c.b16 %v691, %v690
    %v703 = vpack.c.b16 %v692, %v692
    %704 = vrot.lane.b32.xlu0 %v175, 125
    %v705 = vpop.permute.xlu0 %704
    %706 = vrot.lane.b32.xlu0 %v176, 125
    %v707 = vpop.permute.xlu0 %706
    %v711 = vsel %vm183, %v693, 0
    %v714 = vsel %vm183, %v694, 0
    %v717 = vsel %vm183, %v695, 0
    %v720 = vsel %vm183, %v696, 0
    %v723 = vsel %vm183, %v697, 0
    %v726 = vsel %vm183, %v698, 0
    %v729 = vsel %vm183, %v699, 0
    %v732 = vsel %vm183, %v700, 0
    %v735 = vsel %vm183, %v701, 0
    %v738 = vsel %vm183, %v702, 0
    %v741 = vsel %vm183, %v703, 0
    %743 = vmatpush.bf16.msra.mxu0 0
    %744 = vmatpush.bf16.msra.mxu0 0
    %745 = vmatpush.bf16.msra.mxu0 0
    %746 = vmatpush.bf16.msra.mxu0 0
    %747 = vmatpush.bf16.msra.mxu0 0
    %748 = vmatpush.bf16.msra.mxu0 0
    %749 = vmatpush.bf16.msra.mxu0 %v707
    %750 = vmatpush.bf16.msra.mxu0 %v705
    %751 = vmatmul.bf16.gmra.mxu0 %v711
    %v752 = vpop.f32.mrf.mxu0
    %v753 = vadd.f32 0.0, %v752
    %v754 = vpop.f32.mrf.mxu0
    %v755 = vadd.f32 0.0, %v754
    %756 = vmatmul.bf16.gmra.mxu0 %v714
    %v757 = vpop.f32.mrf.mxu0
    %v758 = vadd.f32 0.0, %v757
    %v759 = vpop.f32.mrf.mxu0
    %v760 = vadd.f32 0.0, %v759
    %761 = vmatmul.bf16.gmra.mxu0 %v717
    %v762 = vpop.f32.mrf.mxu0
    %v763 = vadd.f32 0.0, %v762
    %v764 = vpop.f32.mrf.mxu0
    %v765 = vadd.f32 0.0, %v764
    %766 = vmatmul.bf16.gmra.mxu0 %v720
    %v767 = vpop.f32.mrf.mxu0
    %v768 = vadd.f32 0.0, %v767
    %v769 = vpop.f32.mrf.mxu0
    %v770 = vadd.f32 0.0, %v769
    %771 = vmatmul.bf16.gmra.mxu0 %v723
    %v772 = vpop.f32.mrf.mxu0
    %v773 = vadd.f32 0.0, %v772
    %v774 = vpop.f32.mrf.mxu0
    %v775 = vadd.f32 0.0, %v774
    %776 = vmatmul.bf16.gmra.mxu0 %v726
    %v777 = vpop.f32.mrf.mxu0
    %v778 = vadd.f32 0.0, %v777
    %v779 = vpop.f32.mrf.mxu0
    %v780 = vadd.f32 0.0, %v779
    %781 = vmatmul.bf16.gmra.mxu0 %v729
    %v782 = vpop.f32.mrf.mxu0
    %v783 = vadd.f32 0.0, %v782
    %v784 = vpop.f32.mrf.mxu0
    %v785 = vadd.f32 0.0, %v784
    %786 = vmatmul.bf16.gmra.mxu0 %v732
    %v787 = vpop.f32.mrf.mxu0
    %v788 = vadd.f32 0.0, %v787
    %v789 = vpop.f32.mrf.mxu0
    %v790 = vadd.f32 0.0, %v789
    %791 = vmatmul.bf16.gmra.mxu0 %v735
    %v792 = vpop.f32.mrf.mxu0
    %v793 = vadd.f32 0.0, %v792
    %v794 = vpop.f32.mrf.mxu0
    %v795 = vadd.f32 0.0, %v794
    %796 = vmatmul.bf16.gmra.mxu0 %v738
    %v797 = vpop.f32.mrf.mxu0
    %v798 = vadd.f32 0.0, %v797
    %v799 = vpop.f32.mrf.mxu0
    %v800 = vadd.f32 0.0, %v799
    %801 = vmatmul.bf16.gmra.mxu0 %v741
    %v802 = vpop.f32.mrf.mxu0
    %v803 = vadd.f32 0.0, %v802
    %v804 = vpop.f32.mrf.mxu0
    %805 = vdwg.mxu0
    %v806 = vadd.f32 %v608, %v753
    %v807 = vadd.f32 %v609, %v755
    %v808 = vadd.f32 %v610, %v758
    %v809 = vadd.f32 %v611, %v760
    %v810 = vadd.f32 %v612, %v763
    %v811 = vadd.f32 %v613, %v765
    %v812 = vadd.f32 %v614, %v768
    %v813 = vadd.f32 %v615, %v770
    %v814 = vadd.f32 %v616, %v773
    %v815 = vadd.f32 %v617, %v775
    %v816 = vadd.f32 %v618, %v778
    %v817 = vadd.f32 %v619, %v780
    %v818 = vadd.f32 %v620, %v783
    %v819 = vadd.f32 %v621, %v785
    %v820 = vadd.f32 %v622, %v788
    %v821 = vadd.f32 %v623, %v790
    %v822 = vadd.f32 %v624, %v793
    %v823 = vadd.f32 %v625, %v795
    %v824 = vadd.f32 %v626, %v798
    %v825 = vadd.f32 %v627, %v800
    %v826 = vadd.f32 %v628, %v803
    %s827 = scalar_lea.vmem %s1, 336
    %v828 = vld [vmem:[%s827] sm:$0xf]
    %v829 = vld [vmem:[%s827 + $0x4] sm:$0xf]
    %v830 = vld [vmem:[%s827 + $0x8] sm:$0xf]
    %v831 = vld [vmem:[%s827 + $0xc] sm:$0xf]
    %v832 = vld [vmem:[%s827 + $0x10] sm:$0xf]
    %v833 = vld [vmem:[%s827 + $0x14] sm:$0xf]
    %v834 = vld [vmem:[%s827 + $0x18] sm:$0xf]
    %v835 = vld [vmem:[%s827 + $0x1c] sm:$0xf]
    %v836 = vld [vmem:[%s827 + $0x20] sm:$0xf]
    %v837 = vld [vmem:[%s827 + $0x24] sm:$0xf]
    %v838 = vld [vmem:[%s827 + $0x28] sm:$0xf]
    %v839 = vld [vmem:[%s827 + $0x2c] sm:$0xf]
    %v840 = vld [vmem:[%s827 + $0x30] sm:$0xf]
    %v841 = vld [vmem:[%s827 + $0x34] sm:$0xf]
    %v842 = vld [vmem:[%s827 + $0x38] sm:$0xf]
    %v843 = vld [vmem:[%s827 + $0x3c] sm:$0xf]
    %v844 = vld [vmem:[%s827 + $0x40] sm:$0xf]
    %v845 = vld [vmem:[%s827 + $0x44] sm:$0xf]
    %v846 = vld [vmem:[%s827 + $0x48] sm:$0xf]
    %v847 = vld [vmem:[%s827 + $0x4c] sm:$0xf]
    %v848 = vld [vmem:[%s827 + $0x50] sm:$0xf]
    %v870 = vunpack.c.l.b16 %v828
    %v871 = vunpack.c.l.b16 %v829
    %v872 = vunpack.c.l.b16 %v830
    %v873 = vunpack.c.l.b16 %v831
    %v874 = vunpack.c.l.b16 %v832
    %v875 = vunpack.c.l.b16 %v833
    %v876 = vunpack.c.l.b16 %v834
    %v877 = vunpack.c.l.b16 %v835
    %v878 = vunpack.c.l.b16 %v836
    %v879 = vunpack.c.l.b16 %v837
    %v880 = vunpack.c.l.b16 %v838
    %v881 = vunpack.c.l.b16 %v839
    %v882 = vunpack.c.l.b16 %v840
    %v883 = vunpack.c.l.b16 %v841
    %v884 = vunpack.c.l.b16 %v842
    %v885 = vunpack.c.l.b16 %v843
    %v886 = vunpack.c.l.b16 %v844
    %v887 = vunpack.c.l.b16 %v845
    %v888 = vunpack.c.l.b16 %v846
    %v889 = vunpack.c.l.b16 %v847
    %v890 = vunpack.c.l.b16 %v848
    %v891 = vpack.c.b16 %v871, %v870
    %v892 = vpack.c.b16 %v873, %v872
    %v893 = vpack.c.b16 %v875, %v874
    %v894 = vpack.c.b16 %v877, %v876
    %v895 = vpack.c.b16 %v879, %v878
    %v896 = vpack.c.b16 %v881, %v880
    %v897 = vpack.c.b16 %v883, %v882
    %v898 = vpack.c.b16 %v885, %v884
    %v899 = vpack.c.b16 %v887, %v886
    %v900 = vpack.c.b16 %v889, %v888
    %v901 = vpack.c.b16 %v890, %v890
    %902 = vrot.lane.b32.xlu0 %v175, 124
    %v903 = vpop.permute.xlu0 %902
    %904 = vrot.lane.b32.xlu0 %v176, 124
    %v905 = vpop.permute.xlu0 %904
    %v909 = vsel %vm183, %v891, 0
    %v912 = vsel %vm183, %v892, 0
    %v915 = vsel %vm183, %v893, 0
    %v918 = vsel %vm183, %v894, 0
    %v921 = vsel %vm183, %v895, 0
    %v924 = vsel %vm183, %v896, 0
    %v927 = vsel %vm183, %v897, 0
    %v930 = vsel %vm183, %v898, 0
    %v933 = vsel %vm183, %v899, 0
    %v936 = vsel %vm183, %v900, 0
    %v939 = vsel %vm183, %v901, 0
    %941 = vmatpush.bf16.msra.mxu0 0
    %942 = vmatpush.bf16.msra.mxu0 0
    %943 = vmatpush.bf16.msra.mxu0 0
    %944 = vmatpush.bf16.msra.mxu0 0
    %945 = vmatpush.bf16.msra.mxu0 0
    %946 = vmatpush.bf16.msra.mxu0 0
    %947 = vmatpush.bf16.msra.mxu0 %v905
    %948 = vmatpush.bf16.msra.mxu0 %v903
    %949 = vmatmul.bf16.gmra.mxu0 %v909
    %v950 = vpop.f32.mrf.mxu0
    %v951 = vadd.f32 0.0, %v950
    %v952 = vpop.f32.mrf.mxu0
    %v953 = vadd.f32 0.0, %v952
    %954 = vmatmul.bf16.gmra.mxu0 %v912
    %v955 = vpop.f32.mrf.mxu0
    %v956 = vadd.f32 0.0, %v955
    %v957 = vpop.f32.mrf.mxu0
    %v958 = vadd.f32 0.0, %v957
    %959 = vmatmul.bf16.gmra.mxu0 %v915
    %v960 = vpop.f32.mrf.mxu0
    %v961 = vadd.f32 0.0, %v960
    %v962 = vpop.f32.mrf.mxu0
    %v963 = vadd.f32 0.0, %v962
    %964 = vmatmul.bf16.gmra.mxu0 %v918
    %v965 = vpop.f32.mrf.mxu0
    %v966 = vadd.f32 0.0, %v965
    %v967 = vpop.f32.mrf.mxu0
    %v968 = vadd.f32 0.0, %v967
    %969 = vmatmul.bf16.gmra.mxu0 %v921
    %v970 = vpop.f32.mrf.mxu0
    %v971 = vadd.f32 0.0, %v970
    %v972 = vpop.f32.mrf.mxu0
    %v973 = vadd.f32 0.0, %v972
    %974 = vmatmul.bf16.gmra.mxu0 %v924
    %v975 = vpop.f32.mrf.mxu0
    %v976 = vadd.f32 0.0, %v975
    %v977 = vpop.f32.mrf.mxu0
    %v978 = vadd.f32 0.0, %v977
    %979 = vmatmul.bf16.gmra.mxu0 %v927
    %v980 = vpop.f32.mrf.mxu0
    %v981 = vadd.f32 0.0, %v980
    %v982 = vpop.f32.mrf.mxu0
    %v983 = vadd.f32 0.0, %v982
    %984 = vmatmul.bf16.gmra.mxu0 %v930
    %v985 = vpop.f32.mrf.mxu0
    %v986 = vadd.f32 0.0, %v985
    %v987 = vpop.f32.mrf.mxu0
    %v988 = vadd.f32 0.0, %v987
    %989 = vmatmul.bf16.gmra.mxu0 %v933
    %v990 = vpop.f32.mrf.mxu0
    %v991 = vadd.f32 0.0, %v990
    %v992 = vpop.f32.mrf.mxu0
    %v993 = vadd.f32 0.0, %v992
    %994 = vmatmul.bf16.gmra.mxu0 %v936
    %v995 = vpop.f32.mrf.mxu0
    %v996 = vadd.f32 0.0, %v995
    %v997 = vpop.f32.mrf.mxu0
    %v998 = vadd.f32 0.0, %v997
    %999 = vmatmul.bf16.gmra.mxu0 %v939
    %v1000 = vpop.f32.mrf.mxu0
    %v1001 = vadd.f32 0.0, %v1000
    %v1002 = vpop.f32.mrf.mxu0
    %1003 = vdwg.mxu0
    %v1004 = vadd.f32 %v806, %v951
    %v1005 = vadd.f32 %v807, %v953
    %v1006 = vadd.f32 %v808, %v956
    %v1007 = vadd.f32 %v809, %v958
    %v1008 = vadd.f32 %v810, %v961
    %v1009 = vadd.f32 %v811, %v963
    %v1010 = vadd.f32 %v812, %v966
    %v1011 = vadd.f32 %v813, %v968
    %v1012 = vadd.f32 %v814, %v971
    %v1013 = vadd.f32 %v815, %v973
    %v1014 = vadd.f32 %v816, %v976
    %v1015 = vadd.f32 %v817, %v978
    %v1016 = vadd.f32 %v818, %v981
    %v1017 = vadd.f32 %v819, %v983
    %v1018 = vadd.f32 %v820, %v986
    %v1019 = vadd.f32 %v821, %v988
    %v1020 = vadd.f32 %v822, %v991
    %v1021 = vadd.f32 %v823, %v993
    %v1022 = vadd.f32 %v824, %v996
    %v1023 = vadd.f32 %v825, %v998
    %v1024 = vadd.f32 %v826, %v1001
    %v1025 = vld [vmem:[%s2] sm:$0xff]
    %v1026 = vld [vmem:[%s2 + $0x8] sm:$0xff]
    %v1027 = vld [vmem:[%s2 + $0x10] sm:$0xff]
    %v1028 = vld [vmem:[%s2 + $0x18] sm:$0xff]
    %v1029 = vld [vmem:[%s2 + $0x20] sm:$0xff]
    %v1030 = vld [vmem:[%s2 + $0x28] sm:$0xff]
    %v1031 = vld [vmem:[%s2 + $0x30] sm:$0xff]
    %v1032 = vld [vmem:[%s2 + $0x38] sm:$0xff]
    %v1033 = vld [vmem:[%s2 + $0x40] sm:$0xff]
    %v1034 = vld [vmem:[%s2 + $0x48] sm:$0xff]
    %v1035 = vld [vmem:[%s2 + $0x50] sm:$0xff]
    %v1036 = vld [vmem:[%s2 + $0x58] sm:$0xff]
    %v1037 = vld [vmem:[%s2 + $0x60] sm:$0xff]
    %v1038 = vld [vmem:[%s2 + $0x68] sm:$0xff]
    %v1039 = vld [vmem:[%s2 + $0x70] sm:$0xff]
    %v1040 = vld [vmem:[%s2 + $0x78] sm:$0xff]
    %v1041 = vld [vmem:[%s2 + $0x80] sm:$0xff]
    %v1042 = vld [vmem:[%s2 + $0x88] sm:$0xff]
    %v1043 = vld [vmem:[%s2 + $0x90] sm:$0xff]
    %v1044 = vld [vmem:[%s2 + $0x98] sm:$0xff]
    %v1045 = vld [vmem:[%s2 + $0xa0] sm:$0xff]
    %1047 = vset.pattern.permute.xlu0 0
    %1048 = vperm.xlu0 %1047, %v1025
    %v1049 = vpop.permute.xlu0 %1048
    %1052 = vset.pattern.permute.xlu0 0
    %1053 = vperm.xlu0 %1052, %v1026
    %v1054 = vpop.permute.xlu0 %1053
    %1057 = vset.pattern.permute.xlu0 0
    %1058 = vperm.xlu0 %1057, %v1027
    %v1059 = vpop.permute.xlu0 %1058
    %1062 = vset.pattern.permute.xlu0 0
    %1063 = vperm.xlu0 %1062, %v1028
    %v1064 = vpop.permute.xlu0 %1063
    %1067 = vset.pattern.permute.xlu0 0
    %1068 = vperm.xlu0 %1067, %v1029
    %v1069 = vpop.permute.xlu0 %1068
    %1072 = vset.pattern.permute.xlu0 0
    %1073 = vperm.xlu0 %1072, %v1030
    %v1074 = vpop.permute.xlu0 %1073
    %1077 = vset.pattern.permute.xlu0 0
    %1078 = vperm.xlu0 %1077, %v1031
    %v1079 = vpop.permute.xlu0 %1078
    %1082 = vset.pattern.permute.xlu0 0
    %1083 = vperm.xlu0 %1082, %v1032
    %v1084 = vpop.permute.xlu0 %1083
    %1087 = vset.pattern.permute.xlu0 0
    %1088 = vperm.xlu0 %1087, %v1033
    %v1089 = vpop.permute.xlu0 %1088
    %1092 = vset.pattern.permute.xlu0 0
    %1093 = vperm.xlu0 %1092, %v1034
    %v1094 = vpop.permute.xlu0 %1093
    %1097 = vset.pattern.permute.xlu0 0
    %1098 = vperm.xlu0 %1097, %v1035
    %v1099 = vpop.permute.xlu0 %1098
    %1102 = vset.pattern.permute.xlu0 0
    %1103 = vperm.xlu0 %1102, %v1036
    %v1104 = vpop.permute.xlu0 %1103
    %1107 = vset.pattern.permute.xlu0 0
    %1108 = vperm.xlu0 %1107, %v1037
    %v1109 = vpop.permute.xlu0 %1108
    %1112 = vset.pattern.permute.xlu0 0
    %1113 = vperm.xlu0 %1112, %v1038
    %v1114 = vpop.permute.xlu0 %1113
    %1117 = vset.pattern.permute.xlu0 0
    %1118 = vperm.xlu0 %1117, %v1039
    %v1119 = vpop.permute.xlu0 %1118
    %1122 = vset.pattern.permute.xlu0 0
    %1123 = vperm.xlu0 %1122, %v1040
    %v1124 = vpop.permute.xlu0 %1123
    %1127 = vset.pattern.permute.xlu0 0
    %1128 = vperm.xlu0 %1127, %v1041
    %v1129 = vpop.permute.xlu0 %1128
    %1132 = vset.pattern.permute.xlu0 0
    %1133 = vperm.xlu0 %1132, %v1042
    %v1134 = vpop.permute.xlu0 %1133
    %1137 = vset.pattern.permute.xlu0 0
    %1138 = vperm.xlu0 %1137, %v1043
    %v1139 = vpop.permute.xlu0 %1138
    %1142 = vset.pattern.permute.xlu0 0
    %1143 = vperm.xlu0 %1142, %v1044
    %v1144 = vpop.permute.xlu0 %1143
    %1147 = vset.pattern.permute.xlu0 0
    %1148 = vperm.xlu0 %1147, %v1045
    %v1149 = vpop.permute.xlu0 %1148
    %v1151 = vadd.f32 %v1004, %v1049
    %v1152 = vadd.f32 %v1005, %v1054
    %v1153 = vadd.f32 %v1006, %v1059
    %v1154 = vadd.f32 %v1007, %v1064
    %v1155 = vadd.f32 %v1008, %v1069
    %v1156 = vadd.f32 %v1009, %v1074
    %v1157 = vadd.f32 %v1010, %v1079
    %v1158 = vadd.f32 %v1011, %v1084
    %v1159 = vadd.f32 %v1012, %v1089
    %v1160 = vadd.f32 %v1013, %v1094
    %v1161 = vadd.f32 %v1014, %v1099
    %v1162 = vadd.f32 %v1015, %v1104
    %v1163 = vadd.f32 %v1016, %v1109
    %v1164 = vadd.f32 %v1017, %v1114
    %v1165 = vadd.f32 %v1018, %v1119
    %v1166 = vadd.f32 %v1019, %v1124
    %v1167 = vadd.f32 %v1020, %v1129
    %v1168 = vadd.f32 %v1021, %v1134
    %v1169 = vadd.f32 %v1022, %v1139
    %v1170 = vadd.f32 %v1023, %v1144
    %v1171 = vadd.f32 %v1024, %v1149
    %v1172 = vmax.f32 %v1151, 0.0
    %v1173 = vmax.f32 %v1152, 0.0
    %v1174 = vmax.f32 %v1153, 0.0
    %v1175 = vmax.f32 %v1154, 0.0
    %v1176 = vmax.f32 %v1155, 0.0
    %v1177 = vmax.f32 %v1156, 0.0
    %v1178 = vmax.f32 %v1157, 0.0
    %v1179 = vmax.f32 %v1158, 0.0
    %v1180 = vmax.f32 %v1159, 0.0
    %v1181 = vmax.f32 %v1160, 0.0
    %v1182 = vmax.f32 %v1161, 0.0
    %v1183 = vmax.f32 %v1162, 0.0
    %v1184 = vmax.f32 %v1163, 0.0
    %v1185 = vmax.f32 %v1164, 0.0
    %v1186 = vmax.f32 %v1165, 0.0
    %v1187 = vmax.f32 %v1166, 0.0
    %v1188 = vmax.f32 %v1167, 0.0
    %v1189 = vmax.f32 %v1168, 0.0
    %v1190 = vmax.f32 %v1169, 0.0
    %v1191 = vmax.f32 %v1170, 0.0
    %v1192 = vmax.f32 %v1171, 0.0
    %vm1193 = vcmask 228352
    %1194 = vst.msk [vmem:[#allocation2] sm:$0xff] %vm1193, %v1172
    %1195 = vst.msk [vmem:[#allocation2 + $0x8] sm:$0xff] %vm1193, %v1173
    %1196 = vst.msk [vmem:[#allocation2 + $0x10] sm:$0xff] %vm1193, %v1174
    %1197 = vst.msk [vmem:[#allocation2 + $0x18] sm:$0xff] %vm1193, %v1175
    %1198 = vst.msk [vmem:[#allocation2 + $0x20] sm:$0xff] %vm1193, %v1176
    %1199 = vst.msk [vmem:[#allocation2 + $0x28] sm:$0xff] %vm1193, %v1177
    %1200 = vst.msk [vmem:[#allocation2 + $0x30] sm:$0xff] %vm1193, %v1178
    %1201 = vst.msk [vmem:[#allocation2 + $0x38] sm:$0xff] %vm1193, %v1179
    %1202 = vst.msk [vmem:[#allocation2 + $0x40] sm:$0xff] %vm1193, %v1180
    %1203 = vst.msk [vmem:[#allocation2 + $0x48] sm:$0xff] %vm1193, %v1181
    %1204 = vst.msk [vmem:[#allocation2 + $0x50] sm:$0xff] %vm1193, %v1182
    %1205 = vst.msk [vmem:[#allocation2 + $0x58] sm:$0xff] %vm1193, %v1183
    %1206 = vst.msk [vmem:[#allocation2 + $0x60] sm:$0xff] %vm1193, %v1184
    %1207 = vst.msk [vmem:[#allocation2 + $0x68] sm:$0xff] %vm1193, %v1185
    %1208 = vst.msk [vmem:[#allocation2 + $0x70] sm:$0xff] %vm1193, %v1186
    %1209 = vst.msk [vmem:[#allocation2 + $0x78] sm:$0xff] %vm1193, %v1187
    %1210 = vst.msk [vmem:[#allocation2 + $0x80] sm:$0xff] %vm1193, %v1188
    %1211 = vst.msk [vmem:[#allocation2 + $0x88] sm:$0xff] %vm1193, %v1189
    %1212 = vst.msk [vmem:[#allocation2 + $0x90] sm:$0xff] %vm1193, %v1190
    %1213 = vst.msk [vmem:[#allocation2 + $0x98] sm:$0xff] %vm1193, %v1191
    %1214 = vst.msk [vmem:[#allocation2 + $0xa0] sm:$0xff] %vm1193, %v1192
    %v1215 = vld [vmem:[#allocation2] ss:$2 sm:$0xff]
    %s1216 = scalar_lea.vmem [#allocation2], 16
    %v1217 = vld [vmem:[%s1216] ss:$2 sm:$0xff]
    %s1218 = scalar_lea.vmem [#allocation2], 32
    %v1219 = vld [vmem:[%s1218] ss:$2 sm:$0xff]
    %s1220 = scalar_lea.vmem [#allocation2], 48
    %v1221 = vld [vmem:[%s1220] ss:$2 sm:$0xff]
    %s1222 = scalar_lea.vmem [#allocation2], 64
    %v1223 = vld [vmem:[%s1222] ss:$2 sm:$0xff]
    %s1224 = scalar_lea.vmem [#allocation2], 80
    %v1225 = vld [vmem:[%s1224] ss:$2 sm:$0xff]
    %s1226 = scalar_lea.vmem [#allocation2], 96
    %v1227 = vld [vmem:[%s1226] ss:$2 sm:$0xff]
    %s1228 = scalar_lea.vmem [#allocation2], 112
    %v1229 = vld [vmem:[%s1228] ss:$2 sm:$0xff]
    %s1230 = scalar_lea.vmem [#allocation2], 128
    %v1231 = vld [vmem:[%s1230] ss:$2 sm:$0xff]
    %s1232 = scalar_lea.vmem [#allocation2], 144
    %v1233 = vld [vmem:[%s1232] ss:$2 sm:$0xff]
    %s1234 = scalar_lea.vmem [#allocation2], 160
    %v1235 = vld [vmem:[%s1234] ss:$2 sm:$0xf]
    %s1236 = scalar_lea.vmem [#allocation2], 1
    %v1237 = vld [vmem:[%s1236] ss:$2 sm:$0xff]
    %s1238 = scalar_lea.vmem [#allocation2], 17
    %v1239 = vld [vmem:[%s1238] ss:$2 sm:$0xff]
    %s1240 = scalar_lea.vmem [#allocation2], 33
    %v1241 = vld [vmem:[%s1240] ss:$2 sm:$0xff]
    %s1242 = scalar_lea.vmem [#allocation2], 49
    %v1243 = vld [vmem:[%s1242] ss:$2 sm:$0xff]
    %s1244 = scalar_lea.vmem [#allocation2], 65
    %v1245 = vld [vmem:[%s1244] ss:$2 sm:$0xff]
    %s1246 = scalar_lea.vmem [#allocation2], 81
    %v1247 = vld [vmem:[%s1246] ss:$2 sm:$0xff]
    %s1248 = scalar_lea.vmem [#allocation2], 97
    %v1249 = vld [vmem:[%s1248] ss:$2 sm:$0xff]
    %s1250 = scalar_lea.vmem [#allocation2], 113
    %v1251 = vld [vmem:[%s1250] ss:$2 sm:$0xff]
    %s1252 = scalar_lea.vmem [#allocation2], 129
    %v1253 = vld [vmem:[%s1252] ss:$2 sm:$0xff]
    %s1254 = scalar_lea.vmem [#allocation2], 145
    %v1255 = vld [vmem:[%s1254] ss:$2 sm:$0xff]
    %s1256 = scalar_lea.vmem [#allocation2], 161
    %v1257 = vld [vmem:[%s1256] ss:$2 sm:$0xf]
    %v1258 = vmax.f32 %v1215, %v1237
    %v1259 = vmax.f32 %v1217, %v1239
    %v1260 = vmax.f32 %v1219, %v1241
    %v1261 = vmax.f32 %v1221, %v1243
    %v1262 = vmax.f32 %v1223, %v1245
    %v1263 = vmax.f32 %v1225, %v1247
    %v1264 = vmax.f32 %v1227, %v1249
    %v1265 = vmax.f32 %v1229, %v1251
    %v1266 = vmax.f32 %v1231, %v1253
    %v1267 = vmax.f32 %v1233, %v1255
    %v1268 = vmax.f32 %v1235, %v1257
    %v1269 = vpack.c.bf16 %v1259, %v1258
    %v1270 = vpack.c.bf16 %v1261, %v1260
    %v1271 = vpack.c.bf16 %v1263, %v1262
    %v1272 = vpack.c.bf16 %v1265, %v1264
    %v1273 = vpack.c.bf16 %v1267, %v1266
    %v1274 = vpack.c.bf16 %v1268, %v1268
    %v1276 = vsel %vm1193, %v1269, 0
    %v1279 = vsel %vm1193, %v1270, 0
    %v1282 = vsel %vm1193, %v1271, 0
    %v1285 = vsel %vm1193, %v1272, 0
    %v1288 = vsel %vm1193, %v1273, 0
    %v1291 = vsel %vm1193, %v1274, 0
    %vm1293 = vcmask 1045504
    %v1295 = vsel %vm1293, %v42, 0
    %1297 = vmatpush.bf16.msra.mxu0 0
    %1298 = vmatpush.bf16.msra.mxu0 0
    %1299 = vmatpush.bf16.msra.mxu0 0
    %1300 = vmatpush.bf16.msra.mxu0 0
    %1301 = vmatpush.bf16.msra.mxu0 0
    %1302 = vmatpush.bf16.msra.mxu0 0
    %1303 = vmatpush.bf16.msra.mxu0 %v1295
    %1304 = vmatpush.bf16.msra.mxu0 %v41
    %1305 = vmatmul.bf16.gmra.mxu0 %v1276
    %v1306 = vpop.f32.mrf.mxu0
    %v1307 = vadd.f32 0.0, %v1306
    %v1308 = vpop.f32.mrf.mxu0
    %v1309 = vadd.f32 0.0, %v1308
    %1310 = vmatmul.bf16.gmra.mxu0 %v1279
    %v1311 = vpop.f32.mrf.mxu0
    %v1312 = vadd.f32 0.0, %v1311
    %v1313 = vpop.f32.mrf.mxu0
    %v1314 = vadd.f32 0.0, %v1313
    %1315 = vmatmul.bf16.gmra.mxu0 %v1282
    %v1316 = vpop.f32.mrf.mxu0
    %v1317 = vadd.f32 0.0, %v1316
    %v1318 = vpop.f32.mrf.mxu0
    %v1319 = vadd.f32 0.0, %v1318
    %1320 = vmatmul.bf16.gmra.mxu0 %v1285
    %v1321 = vpop.f32.mrf.mxu0
    %v1322 = vadd.f32 0.0, %v1321
    %v1323 = vpop.f32.mrf.mxu0
    %v1324 = vadd.f32 0.0, %v1323
    %1325 = vmatmul.bf16.gmra.mxu0 %v1288
    %v1326 = vpop.f32.mrf.mxu0
    %v1327 = vadd.f32 0.0, %v1326
    %v1328 = vpop.f32.mrf.mxu0
    %v1329 = vadd.f32 0.0, %v1328
    %1330 = vmatmul.bf16.gmra.mxu0 %v1291
    %v1331 = vpop.f32.mrf.mxu0
    %v1332 = vadd.f32 0.0, %v1331
    %v1333 = vpop.f32.mrf.mxu0
    %1334 = vdwg.mxu0
    %v1336 = vsel %vm1293, %v57, 0
    %1338 = vmatpush.bf16.msra.mxu0 0
    %1339 = vmatpush.bf16.msra.mxu0 0
    %1340 = vmatpush.bf16.msra.mxu0 0
    %1341 = vmatpush.bf16.msra.mxu0 0
    %1342 = vmatpush.bf16.msra.mxu0 0
    %1343 = vmatpush.bf16.msra.mxu0 0
    %1344 = vmatpush.bf16.msra.mxu0 %v1336
    %1345 = vmatpush.bf16.msra.mxu0 %v56
    %1346 = vmatmul.bf16.gmra.mxu0 %v1276
    %v1347 = vpop.f32.mrf.mxu0
    %v1348 = vadd.f32 0.0, %v1347
    %v1349 = vpop.f32.mrf.mxu0
    %v1350 = vadd.f32 0.0, %v1349
    %1351 = vmatmul.bf16.gmra.mxu0 %v1279
    %v1352 = vpop.f32.mrf.mxu0
    %v1353 = vadd.f32 0.0, %v1352
    %v1354 = vpop.f32.mrf.mxu0
    %v1355 = vadd.f32 0.0, %v1354
    %1356 = vmatmul.bf16.gmra.mxu0 %v1282
    %v1357 = vpop.f32.mrf.mxu0
    %v1358 = vadd.f32 0.0, %v1357
    %v1359 = vpop.f32.mrf.mxu0
    %v1360 = vadd.f32 0.0, %v1359
    %1361 = vmatmul.bf16.gmra.mxu0 %v1285
    %v1362 = vpop.f32.mrf.mxu0
    %v1363 = vadd.f32 0.0, %v1362
    %v1364 = vpop.f32.mrf.mxu0
    %v1365 = vadd.f32 0.0, %v1364
    %1366 = vmatmul.bf16.gmra.mxu0 %v1288
    %v1367 = vpop.f32.mrf.mxu0
    %v1368 = vadd.f32 0.0, %v1367
    %v1369 = vpop.f32.mrf.mxu0
    %v1370 = vadd.f32 0.0, %v1369
    %1371 = vmatmul.bf16.gmra.mxu0 %v1291
    %v1372 = vpop.f32.mrf.mxu0
    %v1373 = vadd.f32 0.0, %v1372
    %v1374 = vpop.f32.mrf.mxu0
    %1375 = vdwg.mxu0
    %v1376 = vmax.f32 %v1307, %v1348
    %v1377 = vmax.f32 %v1309, %v1350
    %v1378 = vmax.f32 %v1312, %v1353
    %v1379 = vmax.f32 %v1314, %v1355
    %v1380 = vmax.f32 %v1317, %v1358
    %v1381 = vmax.f32 %v1319, %v1360
    %v1382 = vmax.f32 %v1322, %v1363
    %v1383 = vmax.f32 %v1324, %v1365
    %v1384 = vmax.f32 %v1327, %v1368
    %v1385 = vmax.f32 %v1329, %v1370
    %v1386 = vmax.f32 %v1332, %v1373
    %v1387 = vpack.c.bf16 %v1376, %v1376
    %v1388 = vpack.c.bf16 %v1377, %v1377
    %v1389 = vpack.c.bf16 %v1378, %v1378
    %v1390 = vpack.c.bf16 %v1379, %v1379
    %v1391 = vpack.c.bf16 %v1380, %v1380
    %v1392 = vpack.c.bf16 %v1381, %v1381
    %v1393 = vpack.c.bf16 %v1382, %v1382
    %v1394 = vpack.c.bf16 %v1383, %v1383
    %v1395 = vpack.c.bf16 %v1384, %v1384
    %v1396 = vpack.c.bf16 %v1385, %v1385
    %v1397 = vpack.c.bf16 %v1386, %v1386
    %v1398 = vld [vmem:[%s3] sm:$0xf]
    %v1399 = vld [vmem:[%s3 + $0x4] sm:$0xf]
    %v1400 = vld [vmem:[%s3 + $0x8] sm:$0xf]
    %v1401 = vld [vmem:[%s3 + $0xc] sm:$0xf]
    %v1402 = vld [vmem:[%s3 + $0x10] sm:$0xf]
    %v1403 = vld [vmem:[%s3 + $0x14] sm:$0xf]
    %v1404 = vld [vmem:[%s3 + $0x18] sm:$0xf]
    %v1405 = vld [vmem:[%s3 + $0x1c] sm:$0xf]
    %v1406 = vld [vmem:[%s3 + $0x20] sm:$0xf]
    %v1407 = vld [vmem:[%s3 + $0x24] sm:$0xf]
    %v1408 = vld [vmem:[%s3 + $0x28] sm:$0xf]
    %v1409 = vld [vmem:[%s3 + $0x2c] sm:$0xf]
    %v1410 = vld [vmem:[%s3 + $0x30] sm:$0xf]
    %v1411 = vld [vmem:[%s3 + $0x34] sm:$0xf]
    %v1412 = vld [vmem:[%s3 + $0x38] sm:$0xf]
    %v1413 = vld [vmem:[%s3 + $0x3c] sm:$0xf]
    %v1414 = vld [vmem:[%s3 + $0x40] sm:$0xf]
    %v1415 = vld [vmem:[%s3 + $0x44] sm:$0xf]
    %v1416 = vld [vmem:[%s3 + $0x48] sm:$0xf]
    %v1417 = vld [vmem:[%s3 + $0x4c] sm:$0xf]
    %s1418 = scalar_lea.vmem %s3, 80
    %v1419 = vld [vmem:[%s1418] sm:$0xf]
    %v1420 = vld [vmem:[%s1418 + $0x4] sm:$0xf]
    %v1421 = vld [vmem:[%s1418 + $0x8] sm:$0xf]
    %v1422 = vld [vmem:[%s1418 + $0xc] sm:$0xf]
    %v1423 = vld [vmem:[%s1418 + $0x10] sm:$0xf]
    %v1424 = vld [vmem:[%s1418 + $0x14] sm:$0xf]
    %v1425 = vld [vmem:[%s1418 + $0x18] sm:$0xf]
    %v1426 = vld [vmem:[%s1418 + $0x1c] sm:$0xf]
    %v1427 = vld [vmem:[%s1418 + $0x20] sm:$0xf]
    %v1428 = vld [vmem:[%s1418 + $0x24] sm:$0xf]
    %v1429 = vld [vmem:[%s1418 + $0x28] sm:$0xf]
    %v1430 = vld [vmem:[%s1418 + $0x2c] sm:$0xf]
    %v1431 = vld [vmem:[%s1418 + $0x30] sm:$0xf]
    %v1432 = vld [vmem:[%s1418 + $0x34] sm:$0xf]
    %v1433 = vld [vmem:[%s1418 + $0x38] sm:$0xf]
    %v1434 = vld [vmem:[%s1418 + $0x3c] sm:$0xf]
    %v1435 = vld [vmem:[%s1418 + $0x40] sm:$0xf]
    %v1436 = vld [vmem:[%s1418 + $0x44] sm:$0xf]
    %v1437 = vld [vmem:[%s1418 + $0x48] sm:$0xf]
    %v1438 = vld [vmem:[%s1418 + $0x4c] sm:$0xf]
    %v1459 = vunpack.c.l.b16 %v1419
    %v1460 = vunpack.c.l.b16 %v1420
    %v1461 = vunpack.c.l.b16 %v1421
    %v1462 = vunpack.c.l.b16 %v1422
    %v1463 = vunpack.c.l.b16 %v1423
    %v1464 = vunpack.c.l.b16 %v1424
    %v1465 = vunpack.c.l.b16 %v1425
    %v1466 = vunpack.c.l.b16 %v1426
    %v1467 = vunpack.c.l.b16 %v1427
    %v1468 = vunpack.c.l.b16 %v1428
    %v1469 = vunpack.c.l.b16 %v1429
    %v1470 = vunpack.c.l.b16 %v1430
    %v1471 = vunpack.c.l.b16 %v1431
    %v1472 = vunpack.c.l.b16 %v1432
    %v1473 = vunpack.c.l.b16 %v1433
    %v1474 = vunpack.c.l.b16 %v1434
    %v1475 = vunpack.c.l.b16 %v1435
    %v1476 = vunpack.c.l.b16 %v1436
    %v1477 = vunpack.c.l.b16 %v1437
    %v1478 = vunpack.c.l.b16 %v1438
    %v1479 = vpack.c.b16 %v1460, %v1459
    %v1480 = vpack.c.b16 %v1462, %v1461
    %v1481 = vpack.c.b16 %v1464, %v1463
    %v1482 = vpack.c.b16 %v1466, %v1465
    %v1483 = vpack.c.b16 %v1468, %v1467
    %v1484 = vpack.c.b16 %v1470, %v1469
    %v1485 = vpack.c.b16 %v1472, %v1471
    %v1486 = vpack.c.b16 %v1474, %v1473
    %v1487 = vpack.c.b16 %v1476, %v1475
    %v1488 = vpack.c.b16 %v1478, %v1477
    %v1500 = vunpack.c.l.b16 %v1387
    %v1501 = vunpack.c.l.b16 %v1388
    %v1502 = vunpack.c.l.b16 %v1389
    %v1503 = vunpack.c.l.b16 %v1390
    %v1504 = vunpack.c.l.b16 %v1391
    %v1505 = vunpack.c.l.b16 %v1392
    %v1506 = vunpack.c.l.b16 %v1393
    %v1507 = vunpack.c.l.b16 %v1394
    %v1508 = vunpack.c.l.b16 %v1395
    %v1509 = vunpack.c.l.b16 %v1396
    %v1510 = vunpack.c.l.b16 %v1397
    %v1511 = vpack.c.b16 %v1501, %v1500
    %v1512 = vpack.c.b16 %v1503, %v1502
    %v1513 = vpack.c.b16 %v1505, %v1504
    %v1514 = vpack.c.b16 %v1507, %v1506
    %v1515 = vpack.c.b16 %v1509, %v1508
    %v1516 = vpack.c.b16 %v1510, %v1510
    %1517 = vrot.lane.b32.xlu0 %v1511, 127
    %v1518 = vpop.permute.xlu0 %1517
    %1519 = vrot.lane.b32.xlu0 %v1512, 127
    %v1520 = vpop.permute.xlu0 %1519
    %1521 = vrot.lane.b32.xlu0 %v1513, 127
    %v1522 = vpop.permute.xlu0 %1521
    %1523 = vrot.lane.b32.xlu0 %v1514, 127
    %v1524 = vpop.permute.xlu0 %1523
    %1525 = vrot.lane.b32.xlu0 %v1515, 127
    %v1526 = vpop.permute.xlu0 %1525
    %1527 = vrot.lane.b32.xlu0 %v1516, 127
    %v1528 = vpop.permute.xlu0 %1527
    %vm1534 = vcmask 687104
    %v1536 = vsel %vm1534, %v1479, 0
    %v1539 = vsel %vm1534, %v1480, 0
    %v1542 = vsel %vm1534, %v1481, 0
    %v1545 = vsel %vm1534, %v1482, 0
    %v1548 = vsel %vm1534, %v1483, 0
    %v1551 = vsel %vm1534, %v1484, 0
    %v1554 = vsel %vm1534, %v1485, 0
    %v1557 = vsel %vm1534, %v1486, 0
    %v1560 = vsel %vm1534, %v1487, 0
    %v1563 = vsel %vm1534, %v1488, 0
    %vm1565 = vcmask 1041408
    %v1567 = vsel %vm1565, %v1528, 0
    %1569 = vmatpush.bf16.msra.mxu0 0
    %1570 = vmatpush.bf16.msra.mxu0 0
    %1571 = vmatpush.bf16.msra.mxu0 %v1567
    %1572 = vmatpush.bf16.msra.mxu0 %v1526
    %1573 = vmatpush.bf16.msra.mxu0 %v1524
    %1574 = vmatpush.bf16.msra.mxu0 %v1522
    %1575 = vmatpush.bf16.msra.mxu0 %v1520
    %1576 = vmatpush.bf16.msra.mxu0 %v1518
    %1577 = vmatmul.bf16.gmra.mxu0 %v1536
    %v1578 = vpop.f32.mrf.mxu0
    %v1579 = vadd.f32 0.0, %v1578
    %v1580 = vpop.f32.mrf.mxu0
    %v1581 = vadd.f32 0.0, %v1580
    %1582 = vmatmul.bf16.gmra.mxu0 %v1539
    %v1583 = vpop.f32.mrf.mxu0
    %v1584 = vadd.f32 0.0, %v1583
    %v1585 = vpop.f32.mrf.mxu0
    %v1586 = vadd.f32 0.0, %v1585
    %1587 = vmatmul.bf16.gmra.mxu0 %v1542
    %v1588 = vpop.f32.mrf.mxu0
    %v1589 = vadd.f32 0.0, %v1588
    %v1590 = vpop.f32.mrf.mxu0
    %v1591 = vadd.f32 0.0, %v1590
    %1592 = vmatmul.bf16.gmra.mxu0 %v1545
    %v1593 = vpop.f32.mrf.mxu0
    %v1594 = vadd.f32 0.0, %v1593
    %v1595 = vpop.f32.mrf.mxu0
    %v1596 = vadd.f32 0.0, %v1595
    %1597 = vmatmul.bf16.gmra.mxu0 %v1548
    %v1598 = vpop.f32.mrf.mxu0
    %v1599 = vadd.f32 0.0, %v1598
    %v1600 = vpop.f32.mrf.mxu0
    %v1601 = vadd.f32 0.0, %v1600
    %1602 = vmatmul.bf16.gmra.mxu0 %v1551
    %v1603 = vpop.f32.mrf.mxu0
    %v1604 = vadd.f32 0.0, %v1603
    %v1605 = vpop.f32.mrf.mxu0
    %v1606 = vadd.f32 0.0, %v1605
    %1607 = vmatmul.bf16.gmra.mxu0 %v1554
    %v1608 = vpop.f32.mrf.mxu0
    %v1609 = vadd.f32 0.0, %v1608
    %v1610 = vpop.f32.mrf.mxu0
    %v1611 = vadd.f32 0.0, %v1610
    %1612 = vmatmul.bf16.gmra.mxu0 %v1557
    %v1613 = vpop.f32.mrf.mxu0
    %v1614 = vadd.f32 0.0, %v1613
    %v1615 = vpop.f32.mrf.mxu0
    %v1616 = vadd.f32 0.0, %v1615
    %1617 = vmatmul.bf16.gmra.mxu0 %v1560
    %v1618 = vpop.f32.mrf.mxu0
    %v1619 = vadd.f32 0.0, %v1618
    %v1620 = vpop.f32.mrf.mxu0
    %v1621 = vadd.f32 0.0, %v1620
    %1622 = vmatmul.bf16.gmra.mxu0 %v1563
    %v1623 = vpop.f32.mrf.mxu0
    %v1624 = vadd.f32 0.0, %v1623
    %v1625 = vpop.f32.mrf.mxu0
    %v1626 = vadd.f32 0.0, %v1625
    %1627 = vdwg.mxu0
    %v1648 = vunpack.c.l.b16 %v1398
    %v1649 = vunpack.c.l.b16 %v1399
    %v1650 = vunpack.c.l.b16 %v1400
    %v1651 = vunpack.c.l.b16 %v1401
    %v1652 = vunpack.c.l.b16 %v1402
    %v1653 = vunpack.c.l.b16 %v1403
    %v1654 = vunpack.c.l.b16 %v1404
    %v1655 = vunpack.c.l.b16 %v1405
    %v1656 = vunpack.c.l.b16 %v1406
    %v1657 = vunpack.c.l.b16 %v1407
    %v1658 = vunpack.c.l.b16 %v1408
    %v1659 = vunpack.c.l.b16 %v1409
    %v1660 = vunpack.c.l.b16 %v1410
    %v1661 = vunpack.c.l.b16 %v1411
    %v1662 = vunpack.c.l.b16 %v1412
    %v1663 = vunpack.c.l.b16 %v1413
    %v1664 = vunpack.c.l.b16 %v1414
    %v1665 = vunpack.c.l.b16 %v1415
    %v1666 = vunpack.c.l.b16 %v1416
    %v1667 = vunpack.c.l.b16 %v1417
    %v1668 = vpack.c.b16 %v1649, %v1648
    %v1669 = vpack.c.b16 %v1651, %v1650
    %v1670 = vpack.c.b16 %v1653, %v1652
    %v1671 = vpack.c.b16 %v1655, %v1654
    %v1672 = vpack.c.b16 %v1657, %v1656
    %v1673 = vpack.c.b16 %v1659, %v1658
    %v1674 = vpack.c.b16 %v1661, %v1660
    %v1675 = vpack.c.b16 %v1663, %v1662
    %v1676 = vpack.c.b16 %v1665, %v1664
    %v1677 = vpack.c.b16 %v1667, %v1666
    %v1684 = vsel %vm1534, %v1668, 0
    %v1687 = vsel %vm1534, %v1669, 0
    %v1690 = vsel %vm1534, %v1670, 0
    %v1693 = vsel %vm1534, %v1671, 0
    %v1696 = vsel %vm1534, %v1672, 0
    %v1699 = vsel %vm1534, %v1673, 0
    %v1702 = vsel %vm1534, %v1674, 0
    %v1705 = vsel %vm1534, %v1675, 0
    %v1708 = vsel %vm1534, %v1676, 0
    %v1711 = vsel %vm1534, %v1677, 0
    %v1714 = vsel %vm1565, %v1516, 0
    %1716 = vmatpush.bf16.msra.mxu0 0
    %1717 = vmatpush.bf16.msra.mxu0 0
    %1718 = vmatpush.bf16.msra.mxu0 %v1714
    %1719 = vmatpush.bf16.msra.mxu0 %v1515
    %1720 = vmatpush.bf16.msra.mxu0 %v1514
    %1721 = vmatpush.bf16.msra.mxu0 %v1513
    %1722 = vmatpush.bf16.msra.mxu0 %v1512
    %1723 = vmatpush.bf16.msra.mxu0 %v1511
    %1724 = vmatmul.bf16.gmra.mxu0 %v1684
    %v1725 = vpop.f32.mrf.mxu0
    %v1726 = vadd.f32 %v1579, %v1725
    %v1727 = vpop.f32.mrf.mxu0
    %v1728 = vadd.f32 %v1581, %v1727
    %1729 = vmatmul.bf16.gmra.mxu0 %v1687
    %v1730 = vpop.f32.mrf.mxu0
    %v1731 = vadd.f32 %v1584, %v1730
    %v1732 = vpop.f32.mrf.mxu0
    %v1733 = vadd.f32 %v1586, %v1732
    %1734 = vmatmul.bf16.gmra.mxu0 %v1690
    %v1735 = vpop.f32.mrf.mxu0
    %v1736 = vadd.f32 %v1589, %v1735
    %v1737 = vpop.f32.mrf.mxu0
    %v1738 = vadd.f32 %v1591, %v1737
    %1739 = vmatmul.bf16.gmra.mxu0 %v1693
    %v1740 = vpop.f32.mrf.mxu0
    %v1741 = vadd.f32 %v1594, %v1740
    %v1742 = vpop.f32.mrf.mxu0
    %v1743 = vadd.f32 %v1596, %v1742
    %1744 = vmatmul.bf16.gmra.mxu0 %v1696
    %v1745 = vpop.f32.mrf.mxu0
    %v1746 = vadd.f32 %v1599, %v1745
    %v1747 = vpop.f32.mrf.mxu0
    %v1748 = vadd.f32 %v1601, %v1747
    %1749 = vmatmul.bf16.gmra.mxu0 %v1699
    %v1750 = vpop.f32.mrf.mxu0
    %v1751 = vadd.f32 %v1604, %v1750
    %v1752 = vpop.f32.mrf.mxu0
    %v1753 = vadd.f32 %v1606, %v1752
    %1754 = vmatmul.bf16.gmra.mxu0 %v1702
    %v1755 = vpop.f32.mrf.mxu0
    %v1756 = vadd.f32 %v1609, %v1755
    %v1757 = vpop.f32.mrf.mxu0
    %v1758 = vadd.f32 %v1611, %v1757
    %1759 = vmatmul.bf16.gmra.mxu0 %v1705
    %v1760 = vpop.f32.mrf.mxu0
    %v1761 = vadd.f32 %v1614, %v1760
    %v1762 = vpop.f32.mrf.mxu0
    %v1763 = vadd.f32 %v1616, %v1762
    %1764 = vmatmul.bf16.gmra.mxu0 %v1708
    %v1765 = vpop.f32.mrf.mxu0
    %v1766 = vadd.f32 %v1619, %v1765
    %v1767 = vpop.f32.mrf.mxu0
    %v1768 = vadd.f32 %v1621, %v1767
    %1769 = vmatmul.bf16.gmra.mxu0 %v1711
    %v1770 = vpop.f32.mrf.mxu0
    %v1771 = vadd.f32 %v1624, %v1770
    %v1772 = vpop.f32.mrf.mxu0
    %v1773 = vadd.f32 %v1626, %v1772
    %1774 = vdwg.mxu0
    %s1775 = scalar_lea.vmem %s3, 160
    %v1776 = vld [vmem:[%s1775] sm:$0xf]
    %v1777 = vld [vmem:[%s1775 + $0x4] sm:$0xf]
    %v1778 = vld [vmem:[%s1775 + $0x8] sm:$0xf]
    %v1779 = vld [vmem:[%s1775 + $0xc] sm:$0xf]
    %v1780 = vld [vmem:[%s1775 + $0x10] sm:$0xf]
    %v1781 = vld [vmem:[%s1775 + $0x14] sm:$0xf]
    %v1782 = vld [vmem:[%s1775 + $0x18] sm:$0xf]
    %v1783 = vld [vmem:[%s1775 + $0x1c] sm:$0xf]
    %v1784 = vld [vmem:[%s1775 + $0x20] sm:$0xf]
    %v1785 = vld [vmem:[%s1775 + $0x24] sm:$0xf]
    %v1786 = vld [vmem:[%s1775 + $0x28] sm:$0xf]
    %v1787 = vld [vmem:[%s1775 + $0x2c] sm:$0xf]
    %v1788 = vld [vmem:[%s1775 + $0x30] sm:$0xf]
    %v1789 = vld [vmem:[%s1775 + $0x34] sm:$0xf]
    %v1790 = vld [vmem:[%s1775 + $0x38] sm:$0xf]
    %v1791 = vld [vmem:[%s1775 + $0x3c] sm:$0xf]
    %v1792 = vld [vmem:[%s1775 + $0x40] sm:$0xf]
    %v1793 = vld [vmem:[%s1775 + $0x44] sm:$0xf]
    %v1794 = vld [vmem:[%s1775 + $0x48] sm:$0xf]
    %v1795 = vld [vmem:[%s1775 + $0x4c] sm:$0xf]
    %v1816 = vunpack.c.l.b16 %v1776
    %v1817 = vunpack.c.l.b16 %v1777
    %v1818 = vunpack.c.l.b16 %v1778
    %v1819 = vunpack.c.l.b16 %v1779
    %v1820 = vunpack.c.l.b16 %v1780
    %v1821 = vunpack.c.l.b16 %v1781
    %v1822 = vunpack.c.l.b16 %v1782
    %v1823 = vunpack.c.l.b16 %v1783
    %v1824 = vunpack.c.l.b16 %v1784
    %v1825 = vunpack.c.l.b16 %v1785
    %v1826 = vunpack.c.l.b16 %v1786
    %v1827 = vunpack.c.l.b16 %v1787
    %v1828 = vunpack.c.l.b16 %v1788
    %v1829 = vunpack.c.l.b16 %v1789
    %v1830 = vunpack.c.l.b16 %v1790
    %v1831 = vunpack.c.l.b16 %v1791
    %v1832 = vunpack.c.l.b16 %v1792
    %v1833 = vunpack.c.l.b16 %v1793
    %v1834 = vunpack.c.l.b16 %v1794
    %v1835 = vunpack.c.l.b16 %v1795
    %v1836 = vpack.c.b16 %v1817, %v1816
    %v1837 = vpack.c.b16 %v1819, %v1818
    %v1838 = vpack.c.b16 %v1821, %v1820
    %v1839 = vpack.c.b16 %v1823, %v1822
    %v1840 = vpack.c.b16 %v1825, %v1824
    %v1841 = vpack.c.b16 %v1827, %v1826
    %v1842 = vpack.c.b16 %v1829, %v1828
    %v1843 = vpack.c.b16 %v1831, %v1830
    %v1844 = vpack.c.b16 %v1833, %v1832
    %v1845 = vpack.c.b16 %v1835, %v1834
    %1846 = vrot.lane.b32.xlu0 %v1511, 126
    %v1847 = vpop.permute.xlu0 %1846
    %1848 = vrot.lane.b32.xlu0 %v1512, 126
    %v1849 = vpop.permute.xlu0 %1848
    %1850 = vrot.lane.b32.xlu0 %v1513, 126
    %v1851 = vpop.permute.xlu0 %1850
    %1852 = vrot.lane.b32.xlu0 %v1514, 126
    %v1853 = vpop.permute.xlu0 %1852
    %1854 = vrot.lane.b32.xlu0 %v1515, 126
    %v1855 = vpop.permute.xlu0 %1854
    %1856 = vrot.lane.b32.xlu0 %v1516, 126
    %v1857 = vpop.permute.xlu0 %1856
    %v1864 = vsel %vm1534, %v1836, 0
    %v1867 = vsel %vm1534, %v1837, 0
    %v1870 = vsel %vm1534, %v1838, 0
    %v1873 = vsel %vm1534, %v1839, 0
    %v1876 = vsel %vm1534, %v1840, 0
    %v1879 = vsel %vm1534, %v1841, 0
    %v1882 = vsel %vm1534, %v1842, 0
    %v1885 = vsel %vm1534, %v1843, 0
    %v1888 = vsel %vm1534, %v1844, 0
    %v1891 = vsel %vm1534, %v1845, 0
    %v1894 = vsel %vm1565, %v1857, 0
    %1896 = vmatpush.bf16.msra.mxu0 0
    %1897 = vmatpush.bf16.msra.mxu0 0
    %1898 = vmatpush.bf16.msra.mxu0 %v1894
    %1899 = vmatpush.bf16.msra.mxu0 %v1855
    %1900 = vmatpush.bf16.msra.mxu0 %v1853
    %1901 = vmatpush.bf16.msra.mxu0 %v1851
    %1902 = vmatpush.bf16.msra.mxu0 %v1849
    %1903 = vmatpush.bf16.msra.mxu0 %v1847
    %1904 = vmatmul.bf16.gmra.mxu0 %v1864
    %v1905 = vpop.f32.mrf.mxu0
    %v1906 = vadd.f32 0.0, %v1905
    %v1907 = vpop.f32.mrf.mxu0
    %v1908 = vadd.f32 0.0, %v1907
    %1909 = vmatmul.bf16.gmra.mxu0 %v1867
    %v1910 = vpop.f32.mrf.mxu0
    %v1911 = vadd.f32 0.0, %v1910
    %v1912 = vpop.f32.mrf.mxu0
    %v1913 = vadd.f32 0.0, %v1912
    %1914 = vmatmul.bf16.gmra.mxu0 %v1870
    %v1915 = vpop.f32.mrf.mxu0
    %v1916 = vadd.f32 0.0, %v1915
    %v1917 = vpop.f32.mrf.mxu0
    %v1918 = vadd.f32 0.0, %v1917
    %1919 = vmatmul.bf16.gmra.mxu0 %v1873
    %v1920 = vpop.f32.mrf.mxu0
    %v1921 = vadd.f32 0.0, %v1920
    %v1922 = vpop.f32.mrf.mxu0
    %v1923 = vadd.f32 0.0, %v1922
    %1924 = vmatmul.bf16.gmra.mxu0 %v1876
    %v1925 = vpop.f32.mrf.mxu0
    %v1926 = vadd.f32 0.0, %v1925
    %v1927 = vpop.f32.mrf.mxu0
    %v1928 = vadd.f32 0.0, %v1927
    %1929 = vmatmul.bf16.gmra.mxu0 %v1879
    %v1930 = vpop.f32.mrf.mxu0
    %v1931 = vadd.f32 0.0, %v1930
    %v1932 = vpop.f32.mrf.mxu0
    %v1933 = vadd.f32 0.0, %v1932
    %1934 = vmatmul.bf16.gmra.mxu0 %v1882
    %v1935 = vpop.f32.mrf.mxu0
    %v1936 = vadd.f32 0.0, %v1935
    %v1937 = vpop.f32.mrf.mxu0
    %v1938 = vadd.f32 0.0, %v1937
    %1939 = vmatmul.bf16.gmra.mxu0 %v1885
    %v1940 = vpop.f32.mrf.mxu0
    %v1941 = vadd.f32 0.0, %v1940
    %v1942 = vpop.f32.mrf.mxu0
    %v1943 = vadd.f32 0.0, %v1942
    %1944 = vmatmul.bf16.gmra.mxu0 %v1888
    %v1945 = vpop.f32.mrf.mxu0
    %v1946 = vadd.f32 0.0, %v1945
    %v1947 = vpop.f32.mrf.mxu0
    %v1948 = vadd.f32 0.0, %v1947
    %1949 = vmatmul.bf16.gmra.mxu0 %v1891
    %v1950 = vpop.f32.mrf.mxu0
    %v1951 = vadd.f32 0.0, %v1950
    %v1952 = vpop.f32.mrf.mxu0
    %v1953 = vadd.f32 0.0, %v1952
    %1954 = vdwg.mxu0
    %v1955 = vadd.f32 %v1726, %v1906
    %v1956 = vadd.f32 %v1728, %v1908
    %v1957 = vadd.f32 %v1731, %v1911
    %v1958 = vadd.f32 %v1733, %v1913
    %v1959 = vadd.f32 %v1736, %v1916
    %v1960 = vadd.f32 %v1738, %v1918
    %v1961 = vadd.f32 %v1741, %v1921
    %v1962 = vadd.f32 %v1743, %v1923
    %v1963 = vadd.f32 %v1746, %v1926
    %v1964 = vadd.f32 %v1748, %v1928
    %v1965 = vadd.f32 %v1751, %v1931
    %v1966 = vadd.f32 %v1753, %v1933
    %v1967 = vadd.f32 %v1756, %v1936
    %v1968 = vadd.f32 %v1758, %v1938
    %v1969 = vadd.f32 %v1761, %v1941
    %v1970 = vadd.f32 %v1763, %v1943
    %v1971 = vadd.f32 %v1766, %v1946
    %v1972 = vadd.f32 %v1768, %v1948
    %v1973 = vadd.f32 %v1771, %v1951
    %v1974 = vadd.f32 %v1773, %v1953
    %s1975 = scalar_lea.vmem %s3, 240
    %v1976 = vld [vmem:[%s1975] sm:$0xf]
    %v1977 = vld [vmem:[%s1975 + $0x4] sm:$0xf]
    %v1978 = vld [vmem:[%s1975 + $0x8] sm:$0xf]
    %v1979 = vld [vmem:[%s1975 + $0xc] sm:$0xf]
    %v1980 = vld [vmem:[%s1975 + $0x10] sm:$0xf]
    %v1981 = vld [vmem:[%s1975 + $0x14] sm:$0xf]
    %v1982 = vld [vmem:[%s1975 + $0x18] sm:$0xf]
    %v1983 = vld [vmem:[%s1975 + $0x1c] sm:$0xf]
    %v1984 = vld [vmem:[%s1975 + $0x20] sm:$0xf]
    %v1985 = vld [vmem:[%s1975 + $0x24] sm:$0xf]
    %v1986 = vld [vmem:[%s1975 + $0x28] sm:$0xf]
    %v1987 = vld [vmem:[%s1975 + $0x2c] sm:$0xf]
    %v1988 = vld [vmem:[%s1975 + $0x30] sm:$0xf]
    %v1989 = vld [vmem:[%s1975 + $0x34] sm:$0xf]
    %v1990 = vld [vmem:[%s1975 + $0x38] sm:$0xf]
    %v1991 = vld [vmem:[%s1975 + $0x3c] sm:$0xf]
    %v1992 = vld [vmem:[%s1975 + $0x40] sm:$0xf]
    %v1993 = vld [vmem:[%s1975 + $0x44] sm:$0xf]
    %v1994 = vld [vmem:[%s1975 + $0x48] sm:$0xf]
    %v1995 = vld [vmem:[%s1975 + $0x4c] sm:$0xf]
    %v2016 = vunpack.c.l.b16 %v1976
    %v2017 = vunpack.c.l.b16 %v1977
    %v2018 = vunpack.c.l.b16 %v1978
    %v2019 = vunpack.c.l.b16 %v1979
    %v2020 = vunpack.c.l.b16 %v1980
    %v2021 = vunpack.c.l.b16 %v1981
    %v2022 = vunpack.c.l.b16 %v1982
    %v2023 = vunpack.c.l.b16 %v1983
    %v2024 = vunpack.c.l.b16 %v1984
    %v2025 = vunpack.c.l.b16 %v1985
    %v2026 = vunpack.c.l.b16 %v1986
    %v2027 = vunpack.c.l.b16 %v1987
    %v2028 = vunpack.c.l.b16 %v1988
    %v2029 = vunpack.c.l.b16 %v1989
    %v2030 = vunpack.c.l.b16 %v1990
    %v2031 = vunpack.c.l.b16 %v1991
    %v2032 = vunpack.c.l.b16 %v1992
    %v2033 = vunpack.c.l.b16 %v1993
    %v2034 = vunpack.c.l.b16 %v1994
    %v2035 = vunpack.c.l.b16 %v1995
    %v2036 = vpack.c.b16 %v2017, %v2016
    %v2037 = vpack.c.b16 %v2019, %v2018
    %v2038 = vpack.c.b16 %v2021, %v2020
    %v2039 = vpack.c.b16 %v2023, %v2022
    %v2040 = vpack.c.b16 %v2025, %v2024
    %v2041 = vpack.c.b16 %v2027, %v2026
    %v2042 = vpack.c.b16 %v2029, %v2028
    %v2043 = vpack.c.b16 %v2031, %v2030
    %v2044 = vpack.c.b16 %v2033, %v2032
    %v2045 = vpack.c.b16 %v2035, %v2034
    %2046 = vrot.lane.b32.xlu0 %v1511, 125
    %v2047 = vpop.permute.xlu0 %2046
    %2048 = vrot.lane.b32.xlu0 %v1512, 125
    %v2049 = vpop.permute.xlu0 %2048
    %2050 = vrot.lane.b32.xlu0 %v1513, 125
    %v2051 = vpop.permute.xlu0 %2050
    %2052 = vrot.lane.b32.xlu0 %v1514, 125
    %v2053 = vpop.permute.xlu0 %2052
    %2054 = vrot.lane.b32.xlu0 %v1515, 125
    %v2055 = vpop.permute.xlu0 %2054
    %2056 = vrot.lane.b32.xlu0 %v1516, 125
    %v2057 = vpop.permute.xlu0 %2056
    %v2064 = vsel %vm1534, %v2036, 0
    %v2067 = vsel %vm1534, %v2037, 0
    %v2070 = vsel %vm1534, %v2038, 0
    %v2073 = vsel %vm1534, %v2039, 0
    %v2076 = vsel %vm1534, %v2040, 0
    %v2079 = vsel %vm1534, %v2041, 0
    %v2082 = vsel %vm1534, %v2042, 0
    %v2085 = vsel %vm1534, %v2043, 0
    %v2088 = vsel %vm1534, %v2044, 0
    %v2091 = vsel %vm1534, %v2045, 0
    %v2094 = vsel %vm1565, %v2057, 0
    %2096 = vmatpush.bf16.msra.mxu0 0
    %2097 = vmatpush.bf16.msra.mxu0 0
    %2098 = vmatpush.bf16.msra.mxu0 %v2094
    %2099 = vmatpush.bf16.msra.mxu0 %v2055
    %2100 = vmatpush.bf16.msra.mxu0 %v2053
    %2101 = vmatpush.bf16.msra.mxu0 %v2051
    %2102 = vmatpush.bf16.msra.mxu0 %v2049
    %2103 = vmatpush.bf16.msra.mxu0 %v2047
    %2104 = vmatmul.bf16.gmra.mxu0 %v2064
    %v2105 = vpop.f32.mrf.mxu0
    %v2106 = vadd.f32 0.0, %v2105
    %v2107 = vpop.f32.mrf.mxu0
    %v2108 = vadd.f32 0.0, %v2107
    %2109 = vmatmul.bf16.gmra.mxu0 %v2067
    %v2110 = vpop.f32.mrf.mxu0
    %v2111 = vadd.f32 0.0, %v2110
    %v2112 = vpop.f32.mrf.mxu0
    %v2113 = vadd.f32 0.0, %v2112
    %2114 = vmatmul.bf16.gmra.mxu0 %v2070
    %v2115 = vpop.f32.mrf.mxu0
    %v2116 = vadd.f32 0.0, %v2115
    %v2117 = vpop.f32.mrf.mxu0
    %v2118 = vadd.f32 0.0, %v2117
    %2119 = vmatmul.bf16.gmra.mxu0 %v2073
    %v2120 = vpop.f32.mrf.mxu0
    %v2121 = vadd.f32 0.0, %v2120
    %v2122 = vpop.f32.mrf.mxu0
    %v2123 = vadd.f32 0.0, %v2122
    %2124 = vmatmul.bf16.gmra.mxu0 %v2076
    %v2125 = vpop.f32.mrf.mxu0
    %v2126 = vadd.f32 0.0, %v2125
    %v2127 = vpop.f32.mrf.mxu0
    %v2128 = vadd.f32 0.0, %v2127
    %2129 = vmatmul.bf16.gmra.mxu0 %v2079
    %v2130 = vpop.f32.mrf.mxu0
    %v2131 = vadd.f32 0.0, %v2130
    %v2132 = vpop.f32.mrf.mxu0
    %v2133 = vadd.f32 0.0, %v2132
    %2134 = vmatmul.bf16.gmra.mxu0 %v2082
    %v2135 = vpop.f32.mrf.mxu0
    %v2136 = vadd.f32 0.0, %v2135
    %v2137 = vpop.f32.mrf.mxu0
    %v2138 = vadd.f32 0.0, %v2137
    %2139 = vmatmul.bf16.gmra.mxu0 %v2085
    %v2140 = vpop.f32.mrf.mxu0
    %v2141 = vadd.f32 0.0, %v2140
    %v2142 = vpop.f32.mrf.mxu0
    %v2143 = vadd.f32 0.0, %v2142
    %2144 = vmatmul.bf16.gmra.mxu0 %v2088
    %v2145 = vpop.f32.mrf.mxu0
    %v2146 = vadd.f32 0.0, %v2145
    %v2147 = vpop.f32.mrf.mxu0
    %v2148 = vadd.f32 0.0, %v2147
    %2149 = vmatmul.bf16.gmra.mxu0 %v2091
    %v2150 = vpop.f32.mrf.mxu0
    %v2151 = vadd.f32 0.0, %v2150
    %v2152 = vpop.f32.mrf.mxu0
    %v2153 = vadd.f32 0.0, %v2152
    %2154 = vdwg.mxu0
    %v2155 = vadd.f32 %v1955, %v2106
    %v2156 = vadd.f32 %v1956, %v2108
    %v2157 = vadd.f32 %v1957, %v2111
    %v2158 = vadd.f32 %v1958, %v2113
    %v2159 = vadd.f32 %v1959, %v2116
    %v2160 = vadd.f32 %v1960, %v2118
    %v2161 = vadd.f32 %v1961, %v2121
    %v2162 = vadd.f32 %v1962, %v2123
    %v2163 = vadd.f32 %v1963, %v2126
    %v2164 = vadd.f32 %v1964, %v2128
    %v2165 = vadd.f32 %v1965, %v2131
    %v2166 = vadd.f32 %v1966, %v2133
    %v2167 = vadd.f32 %v1967, %v2136
    %v2168 = vadd.f32 %v1968, %v2138
    %v2169 = vadd.f32 %v1969, %v2141
    %v2170 = vadd.f32 %v1970, %v2143
    %v2171 = vadd.f32 %v1971, %v2146
    %v2172 = vadd.f32 %v1972, %v2148
    %v2173 = vadd.f32 %v1973, %v2151
    %v2174 = vadd.f32 %v1974, %v2153
    %s2175 = scalar_lea.vmem %s3, 320
    %v2176 = vld [vmem:[%s2175] sm:$0xf]
    %v2177 = vld [vmem:[%s2175 + $0x4] sm:$0xf]
    %v2178 = vld [vmem:[%s2175 + $0x8] sm:$0xf]
    %v2179 = vld [vmem:[%s2175 + $0xc] sm:$0xf]
    %v2180 = vld [vmem:[%s2175 + $0x10] sm:$0xf]
    %v2181 = vld [vmem:[%s2175 + $0x14] sm:$0xf]
    %v2182 = vld [vmem:[%s2175 + $0x18] sm:$0xf]
    %v2183 = vld [vmem:[%s2175 + $0x1c] sm:$0xf]
    %v2184 = vld [vmem:[%s2175 + $0x20] sm:$0xf]
    %v2185 = vld [vmem:[%s2175 + $0x24] sm:$0xf]
    %v2186 = vld [vmem:[%s2175 + $0x28] sm:$0xf]
    %v2187 = vld [vmem:[%s2175 + $0x2c] sm:$0xf]
    %v2188 = vld [vmem:[%s2175 + $0x30] sm:$0xf]
    %v2189 = vld [vmem:[%s2175 + $0x34] sm:$0xf]
    %v2190 = vld [vmem:[%s2175 + $0x38] sm:$0xf]
    %v2191 = vld [vmem:[%s2175 + $0x3c] sm:$0xf]
    %v2192 = vld [vmem:[%s2175 + $0x40] sm:$0xf]
    %v2193 = vld [vmem:[%s2175 + $0x44] sm:$0xf]
    %v2194 = vld [vmem:[%s2175 + $0x48] sm:$0xf]
    %v2195 = vld [vmem:[%s2175 + $0x4c] sm:$0xf]
    %v2216 = vunpack.c.l.b16 %v2176
    %v2217 = vunpack.c.l.b16 %v2177
    %v2218 = vunpack.c.l.b16 %v2178
    %v2219 = vunpack.c.l.b16 %v2179
    %v2220 = vunpack.c.l.b16 %v2180
    %v2221 = vunpack.c.l.b16 %v2181
    %v2222 = vunpack.c.l.b16 %v2182
    %v2223 = vunpack.c.l.b16 %v2183
    %v2224 = vunpack.c.l.b16 %v2184
    %v2225 = vunpack.c.l.b16 %v2185
    %v2226 = vunpack.c.l.b16 %v2186
    %v2227 = vunpack.c.l.b16 %v2187
    %v2228 = vunpack.c.l.b16 %v2188
    %v2229 = vunpack.c.l.b16 %v2189
    %v2230 = vunpack.c.l.b16 %v2190
    %v2231 = vunpack.c.l.b16 %v2191
    %v2232 = vunpack.c.l.b16 %v2192
    %v2233 = vunpack.c.l.b16 %v2193
    %v2234 = vunpack.c.l.b16 %v2194
    %v2235 = vunpack.c.l.b16 %v2195
    %v2236 = vpack.c.b16 %v2217, %v2216
    %v2237 = vpack.c.b16 %v2219, %v2218
    %v2238 = vpack.c.b16 %v2221, %v2220
    %v2239 = vpack.c.b16 %v2223, %v2222
    %v2240 = vpack.c.b16 %v2225, %v2224
    %v2241 = vpack.c.b16 %v2227, %v2226
    %v2242 = vpack.c.b16 %v2229, %v2228
    %v2243 = vpack.c.b16 %v2231, %v2230
    %v2244 = vpack.c.b16 %v2233, %v2232
    %v2245 = vpack.c.b16 %v2235, %v2234
    %2246 = vrot.lane.b32.xlu0 %v1511, 124
    %v2247 = vpop.permute.xlu0 %2246
    %2248 = vrot.lane.b32.xlu0 %v1512, 124
    %v2249 = vpop.permute.xlu0 %2248
    %2250 = vrot.lane.b32.xlu0 %v1513, 124
    %v2251 = vpop.permute.xlu0 %2250
    %2252 = vrot.lane.b32.xlu0 %v1514, 124
    %v2253 = vpop.permute.xlu0 %2252
    %2254 = vrot.lane.b32.xlu0 %v1515, 124
    %v2255 = vpop.permute.xlu0 %2254
    %2256 = vrot.lane.b32.xlu0 %v1516, 124
    %v2257 = vpop.permute.xlu0 %2256
    %v2264 = vsel %vm1534, %v2236, 0
    %v2267 = vsel %vm1534, %v2237, 0
    %v2270 = vsel %vm1534, %v2238, 0
    %v2273 = vsel %vm1534, %v2239, 0
    %v2276 = vsel %vm1534, %v2240, 0
    %v2279 = vsel %vm1534, %v2241, 0
    %v2282 = vsel %vm1534, %v2242, 0
    %v2285 = vsel %vm1534, %v2243, 0
    %v2288 = vsel %vm1534, %v2244, 0
    %v2291 = vsel %vm1534, %v2245, 0
    %v2294 = vsel %vm1565, %v2257, 0
    %2296 = vmatpush.bf16.msra.mxu0 0
    %2297 = vmatpush.bf16.msra.mxu0 0
    %2298 = vmatpush.bf16.msra.mxu0 %v2294
    %2299 = vmatpush.bf16.msra.mxu0 %v2255
    %2300 = vmatpush.bf16.msra.mxu0 %v2253
    %2301 = vmatpush.bf16.msra.mxu0 %v2251
    %2302 = vmatpush.bf16.msra.mxu0 %v2249
    %2303 = vmatpush.bf16.msra.mxu0 %v2247
    %2304 = vmatmul.bf16.gmra.mxu0 %v2264
    %v2305 = vpop.f32.mrf.mxu0
    %v2306 = vadd.f32 0.0, %v2305
    %v2307 = vpop.f32.mrf.mxu0
    %v2308 = vadd.f32 0.0, %v2307
    %2309 = vmatmul.bf16.gmra.mxu0 %v2267
    %v2310 = vpop.f32.mrf.mxu0
    %v2311 = vadd.f32 0.0, %v2310
    %v2312 = vpop.f32.mrf.mxu0
    %v2313 = vadd.f32 0.0, %v2312
    %2314 = vmatmul.bf16.gmra.mxu0 %v2270
    %v2315 = vpop.f32.mrf.mxu0
    %v2316 = vadd.f32 0.0, %v2315
    %v2317 = vpop.f32.mrf.mxu0
    %v2318 = vadd.f32 0.0, %v2317
    %2319 = vmatmul.bf16.gmra.mxu0 %v2273
    %v2320 = vpop.f32.mrf.mxu0
    %v2321 = vadd.f32 0.0, %v2320
    %v2322 = vpop.f32.mrf.mxu0
    %v2323 = vadd.f32 0.0, %v2322
    %2324 = vmatmul.bf16.gmra.mxu0 %v2276
    %v2325 = vpop.f32.mrf.mxu0
    %v2326 = vadd.f32 0.0, %v2325
    %v2327 = vpop.f32.mrf.mxu0
    %v2328 = vadd.f32 0.0, %v2327
    %2329 = vmatmul.bf16.gmra.mxu0 %v2279
    %v2330 = vpop.f32.mrf.mxu0
    %v2331 = vadd.f32 0.0, %v2330
    %v2332 = vpop.f32.mrf.mxu0
    %v2333 = vadd.f32 0.0, %v2332
    %2334 = vmatmul.bf16.gmra.mxu0 %v2282
    %v2335 = vpop.f32.mrf.mxu0
    %v2336 = vadd.f32 0.0, %v2335
    %v2337 = vpop.f32.mrf.mxu0
    %v2338 = vadd.f32 0.0, %v2337
    %2339 = vmatmul.bf16.gmra.mxu0 %v2285
    %v2340 = vpop.f32.mrf.mxu0
    %v2341 = vadd.f32 0.0, %v2340
    %v2342 = vpop.f32.mrf.mxu0
    %v2343 = vadd.f32 0.0, %v2342
    %2344 = vmatmul.bf16.gmra.mxu0 %v2288
    %v2345 = vpop.f32.mrf.mxu0
    %v2346 = vadd.f32 0.0, %v2345
    %v2347 = vpop.f32.mrf.mxu0
    %v2348 = vadd.f32 0.0, %v2347
    %2349 = vmatmul.bf16.gmra.mxu0 %v2291
    %v2350 = vpop.f32.mrf.mxu0
    %v2351 = vadd.f32 0.0, %v2350
    %v2352 = vpop.f32.mrf.mxu0
    %v2353 = vadd.f32 0.0, %v2352
    %2354 = vdwg.mxu0
    %v2355 = vadd.f32 %v2155, %v2306
    %v2356 = vadd.f32 %v2156, %v2308
    %v2357 = vadd.f32 %v2157, %v2311
    %v2358 = vadd.f32 %v2158, %v2313
    %v2359 = vadd.f32 %v2159, %v2316
    %v2360 = vadd.f32 %v2160, %v2318
    %v2361 = vadd.f32 %v2161, %v2321
    %v2362 = vadd.f32 %v2162, %v2323
    %v2363 = vadd.f32 %v2163, %v2326
    %v2364 = vadd.f32 %v2164, %v2328
    %v2365 = vadd.f32 %v2165, %v2331
    %v2366 = vadd.f32 %v2166, %v2333
    %v2367 = vadd.f32 %v2167, %v2336
    %v2368 = vadd.f32 %v2168, %v2338
    %v2369 = vadd.f32 %v2169, %v2341
    %v2370 = vadd.f32 %v2170, %v2343
    %v2371 = vadd.f32 %v2171, %v2346
    %v2372 = vadd.f32 %v2172, %v2348
    %v2373 = vadd.f32 %v2173, %v2351
    %v2374 = vadd.f32 %v2174, %v2353
    %v2375 = vld [vmem:[%s4] sm:$0xff]
    %v2376 = vld [vmem:[%s4 + $0x8] sm:$0xff]
    %v2377 = vld [vmem:[%s4 + $0x10] sm:$0xff]
    %v2378 = vld [vmem:[%s4 + $0x18] sm:$0xff]
    %v2379 = vld [vmem:[%s4 + $0x20] sm:$0xff]
    %v2380 = vld [vmem:[%s4 + $0x28] sm:$0xff]
    %v2381 = vld [vmem:[%s4 + $0x30] sm:$0xff]
    %v2382 = vld [vmem:[%s4 + $0x38] sm:$0xff]
    %v2383 = vld [vmem:[%s4 + $0x40] sm:$0xff]
    %v2384 = vld [vmem:[%s4 + $0x48] sm:$0xff]
    %v2385 = vld [vmem:[%s4 + $0x50] sm:$0xff]
    %v2386 = vld [vmem:[%s4 + $0x58] sm:$0xff]
    %v2387 = vld [vmem:[%s4 + $0x60] sm:$0xff]
    %v2388 = vld [vmem:[%s4 + $0x68] sm:$0xff]
    %v2389 = vld [vmem:[%s4 + $0x70] sm:$0xff]
    %v2390 = vld [vmem:[%s4 + $0x78] sm:$0xff]
    %v2391 = vld [vmem:[%s4 + $0x80] sm:$0xff]
    %v2392 = vld [vmem:[%s4 + $0x88] sm:$0xff]
    %v2393 = vld [vmem:[%s4 + $0x90] sm:$0xff]
    %v2394 = vld [vmem:[%s4 + $0x98] sm:$0xff]
    %2396 = vset.pattern.permute.xlu0 0
    %2397 = vperm.xlu0 %2396, %v2375
    %v2398 = vpop.permute.xlu0 %2397
    %2401 = vset.pattern.permute.xlu0 0
    %2402 = vperm.xlu0 %2401, %v2376
    %v2403 = vpop.permute.xlu0 %2402
    %2406 = vset.pattern.permute.xlu0 0
    %2407 = vperm.xlu0 %2406, %v2377
    %v2408 = vpop.permute.xlu0 %2407
    %2411 = vset.pattern.permute.xlu0 0
    %2412 = vperm.xlu0 %2411, %v2378
    %v2413 = vpop.permute.xlu0 %2412
    %2416 = vset.pattern.permute.xlu0 0
    %2417 = vperm.xlu0 %2416, %v2379
    %v2418 = vpop.permute.xlu0 %2417
    %2421 = vset.pattern.permute.xlu0 0
    %2422 = vperm.xlu0 %2421, %v2380
    %v2423 = vpop.permute.xlu0 %2422
    %2426 = vset.pattern.permute.xlu0 0
    %2427 = vperm.xlu0 %2426, %v2381
    %v2428 = vpop.permute.xlu0 %2427
    %2431 = vset.pattern.permute.xlu0 0
    %2432 = vperm.xlu0 %2431, %v2382
    %v2433 = vpop.permute.xlu0 %2432
    %2436 = vset.pattern.permute.xlu0 0
    %2437 = vperm.xlu0 %2436, %v2383
    %v2438 = vpop.permute.xlu0 %2437
    %2441 = vset.pattern.permute.xlu0 0
    %2442 = vperm.xlu0 %2441, %v2384
    %v2443 = vpop.permute.xlu0 %2442
    %2446 = vset.pattern.permute.xlu0 0
    %2447 = vperm.xlu0 %2446, %v2385
    %v2448 = vpop.permute.xlu0 %2447
    %2451 = vset.pattern.permute.xlu0 0
    %2452 = vperm.xlu0 %2451, %v2386
    %v2453 = vpop.permute.xlu0 %2452
    %2456 = vset.pattern.permute.xlu0 0
    %2457 = vperm.xlu0 %2456, %v2387
    %v2458 = vpop.permute.xlu0 %2457
    %2461 = vset.pattern.permute.xlu0 0
    %2462 = vperm.xlu0 %2461, %v2388
    %v2463 = vpop.permute.xlu0 %2462
    %2466 = vset.pattern.permute.xlu0 0
    %2467 = vperm.xlu0 %2466, %v2389
    %v2468 = vpop.permute.xlu0 %2467
    %2471 = vset.pattern.permute.xlu0 0
    %2472 = vperm.xlu0 %2471, %v2390
    %v2473 = vpop.permute.xlu0 %2472
    %2476 = vset.pattern.permute.xlu0 0
    %2477 = vperm.xlu0 %2476, %v2391
    %v2478 = vpop.permute.xlu0 %2477
    %2481 = vset.pattern.permute.xlu0 0
    %2482 = vperm.xlu0 %2481, %v2392
    %v2483 = vpop.permute.xlu0 %2482
    %2486 = vset.pattern.permute.xlu0 0
    %2487 = vperm.xlu0 %2486, %v2393
    %v2488 = vpop.permute.xlu0 %2487
    %2491 = vset.pattern.permute.xlu0 0
    %2492 = vperm.xlu0 %2491, %v2394
    %v2493 = vpop.permute.xlu0 %2492
    %v2495 = vadd.f32 %v2355, %v2398
    %v2496 = vadd.f32 %v2356, %v2403
    %v2497 = vadd.f32 %v2357, %v2408
    %v2498 = vadd.f32 %v2358, %v2413
    %v2499 = vadd.f32 %v2359, %v2418
    %v2500 = vadd.f32 %v2360, %v2423
    %v2501 = vadd.f32 %v2361, %v2428
    %v2502 = vadd.f32 %v2362, %v2433
    %v2503 = vadd.f32 %v2363, %v2438
    %v2504 = vadd.f32 %v2364, %v2443
    %v2505 = vadd.f32 %v2365, %v2448
    %v2506 = vadd.f32 %v2366, %v2453
    %v2507 = vadd.f32 %v2367, %v2458
    %v2508 = vadd.f32 %v2368, %v2463
    %v2509 = vadd.f32 %v2369, %v2468
    %v2510 = vadd.f32 %v2370, %v2473
    %v2511 = vadd.f32 %v2371, %v2478
    %v2512 = vadd.f32 %v2372, %v2483
    %v2513 = vadd.f32 %v2373, %v2488
    %v2514 = vadd.f32 %v2374, %v2493
    %v2515 = vmax.f32 %v2495, 0.0
    %v2516 = vmax.f32 %v2496, 0.0
    %v2517 = vmax.f32 %v2497, 0.0
    %v2518 = vmax.f32 %v2498, 0.0
    %v2519 = vmax.f32 %v2499, 0.0
    %v2520 = vmax.f32 %v2500, 0.0
    %v2521 = vmax.f32 %v2501, 0.0
    %v2522 = vmax.f32 %v2502, 0.0
    %v2523 = vmax.f32 %v2503, 0.0
    %v2524 = vmax.f32 %v2504, 0.0
    %v2525 = vmax.f32 %v2505, 0.0
    %v2526 = vmax.f32 %v2506, 0.0
    %v2527 = vmax.f32 %v2507, 0.0
    %v2528 = vmax.f32 %v2508, 0.0
    %v2529 = vmax.f32 %v2509, 0.0
    %v2530 = vmax.f32 %v2510, 0.0
    %v2531 = vmax.f32 %v2511, 0.0
    %v2532 = vmax.f32 %v2512, 0.0
    %v2533 = vmax.f32 %v2513, 0.0
    %v2534 = vmax.f32 %v2514, 0.0
    %vm2535 = vcmask 80896
    %2536 = vst.msk [vmem:[#allocation3] sm:$0xff] %vm2535, %v2515
    %2537 = vst.msk [vmem:[#allocation3 + $0x8] sm:$0xff] %vm2535, %v2516
    %2538 = vst.msk [vmem:[#allocation3 + $0x10] sm:$0xff] %vm2535, %v2517
    %2539 = vst.msk [vmem:[#allocation3 + $0x18] sm:$0xff] %vm2535, %v2518
    %2540 = vst.msk [vmem:[#allocation3 + $0x20] sm:$0xff] %vm2535, %v2519
    %2541 = vst.msk [vmem:[#allocation3 + $0x28] sm:$0xff] %vm2535, %v2520
    %2542 = vst.msk [vmem:[#allocation3 + $0x30] sm:$0xff] %vm2535, %v2521
    %2543 = vst.msk [vmem:[#allocation3 + $0x38] sm:$0xff] %vm2535, %v2522
    %2544 = vst.msk [vmem:[#allocation3 + $0x40] sm:$0xff] %vm2535, %v2523
    %2545 = vst.msk [vmem:[#allocation3 + $0x48] sm:$0xff] %vm2535, %v2524
    %2546 = vst.msk [vmem:[#allocation3 + $0x50] sm:$0xff] %vm2535, %v2525
    %2547 = vst.msk [vmem:[#allocation3 + $0x58] sm:$0xff] %vm2535, %v2526
    %2548 = vst.msk [vmem:[#allocation3 + $0x60] sm:$0xff] %vm2535, %v2527
    %2549 = vst.msk [vmem:[#allocation3 + $0x68] sm:$0xff] %vm2535, %v2528
    %2550 = vst.msk [vmem:[#allocation3 + $0x70] sm:$0xff] %vm2535, %v2529
    %2551 = vst.msk [vmem:[#allocation3 + $0x78] sm:$0xff] %vm2535, %v2530
    %2552 = vst.msk [vmem:[#allocation3 + $0x80] sm:$0xff] %vm2535, %v2531
    %2553 = vst.msk [vmem:[#allocation3 + $0x88] sm:$0xff] %vm2535, %v2532
    %2554 = vst.msk [vmem:[#allocation3 + $0x90] sm:$0xff] %vm2535, %v2533
    %2555 = vst.msk [vmem:[#allocation3 + $0x98] sm:$0xff] %vm2535, %v2534
    %v2556 = vld [vmem:[#allocation3] ss:$2 sm:$0xff]
    %s2557 = scalar_lea.vmem [#allocation3], 16
    %v2558 = vld [vmem:[%s2557] ss:$2 sm:$0xff]
    %s2559 = scalar_lea.vmem [#allocation3], 32
    %v2560 = vld [vmem:[%s2559] ss:$2 sm:$0xff]
    %s2561 = scalar_lea.vmem [#allocation3], 48
    %v2562 = vld [vmem:[%s2561] ss:$2 sm:$0xff]
    %s2563 = scalar_lea.vmem [#allocation3], 64
    %v2564 = vld [vmem:[%s2563] ss:$2 sm:$0xff]
    %s2565 = scalar_lea.vmem [#allocation3], 80
    %v2566 = vld [vmem:[%s2565] ss:$2 sm:$0xff]
    %s2567 = scalar_lea.vmem [#allocation3], 96
    %v2568 = vld [vmem:[%s2567] ss:$2 sm:$0xff]
    %s2569 = scalar_lea.vmem [#allocation3], 112
    %v2570 = vld [vmem:[%s2569] ss:$2 sm:$0xff]
    %s2571 = scalar_lea.vmem [#allocation3], 128
    %v2572 = vld [vmem:[%s2571] ss:$2 sm:$0xff]
    %s2573 = scalar_lea.vmem [#allocation3], 144
    %v2574 = vld [vmem:[%s2573] ss:$2 sm:$0xff]
    %s2575 = scalar_lea.vmem [#allocation3], 1
    %v2576 = vld [vmem:[%s2575] ss:$2 sm:$0xff]
    %s2577 = scalar_lea.vmem [#allocation3], 17
    %v2578 = vld [vmem:[%s2577] ss:$2 sm:$0xff]
    %s2579 = scalar_lea.vmem [#allocation3], 33
    %v2580 = vld [vmem:[%s2579] ss:$2 sm:$0xff]
    %s2581 = scalar_lea.vmem [#allocation3], 49
    %v2582 = vld [vmem:[%s2581] ss:$2 sm:$0xff]
    %s2583 = scalar_lea.vmem [#allocation3], 65
    %v2584 = vld [vmem:[%s2583] ss:$2 sm:$0xff]
    %s2585 = scalar_lea.vmem [#allocation3], 81
    %v2586 = vld [vmem:[%s2585] ss:$2 sm:$0xff]
    %s2587 = scalar_lea.vmem [#allocation3], 97
    %v2588 = vld [vmem:[%s2587] ss:$2 sm:$0xff]
    %s2589 = scalar_lea.vmem [#allocation3], 113
    %v2590 = vld [vmem:[%s2589] ss:$2 sm:$0xff]
    %s2591 = scalar_lea.vmem [#allocation3], 129
    %v2592 = vld [vmem:[%s2591] ss:$2 sm:$0xff]
    %s2593 = scalar_lea.vmem [#allocation3], 145
    %v2594 = vld [vmem:[%s2593] ss:$2 sm:$0xff]
    %v2595 = vmax.f32 %v2556, %v2576
    %v2596 = vmax.f32 %v2558, %v2578
    %v2597 = vmax.f32 %v2560, %v2580
    %v2598 = vmax.f32 %v2562, %v2582
    %v2599 = vmax.f32 %v2564, %v2584
    %v2600 = vmax.f32 %v2566, %v2586
    %v2601 = vmax.f32 %v2568, %v2588
    %v2602 = vmax.f32 %v2570, %v2590
    %v2603 = vmax.f32 %v2572, %v2592
    %v2604 = vmax.f32 %v2574, %v2594
    %v2605 = vpack.c.bf16 %v2596, %v2595
    %v2606 = vpack.c.bf16 %v2598, %v2597
    %v2607 = vpack.c.bf16 %v2600, %v2599
    %v2608 = vpack.c.bf16 %v2602, %v2601
    %v2609 = vpack.c.bf16 %v2604, %v2603
    %v2611 = vsel %vm2535, %v2605, 0
    %v2614 = vsel %vm2535, %v2606, 0
    %v2617 = vsel %vm2535, %v2607, 0
    %v2620 = vsel %vm2535, %v2608, 0
    %v2623 = vsel %vm2535, %v2609, 0
    %vm2625 = vcmask 1044480
    %v2627 = vsel %vm2625, %v41, 0
    %2629 = vmatpush.bf16.msra.mxu0 0
    %2630 = vmatpush.bf16.msra.mxu0 0
    %2631 = vmatpush.bf16.msra.mxu0 0
    %2632 = vmatpush.bf16.msra.mxu0 0
    %2633 = vmatpush.bf16.msra.mxu0 0
    %2634 = vmatpush.bf16.msra.mxu0 0
    %2635 = vmatpush.bf16.msra.mxu0 0
    %2636 = vmatpush.bf16.msra.mxu0 %v2627
    %2637 = vmatmul.bf16.gmra.mxu0 %v2611
    %v2638 = vpop.f32.mrf.mxu0
    %v2639 = vadd.f32 0.0, %v2638
    %v2640 = vpop.f32.mrf.mxu0
    %v2641 = vadd.f32 0.0, %v2640
    %2642 = vmatmul.bf16.gmra.mxu0 %v2614
    %v2643 = vpop.f32.mrf.mxu0
    %v2644 = vadd.f32 0.0, %v2643
    %v2645 = vpop.f32.mrf.mxu0
    %v2646 = vadd.f32 0.0, %v2645
    %2647 = vmatmul.bf16.gmra.mxu0 %v2617
    %v2648 = vpop.f32.mrf.mxu0
    %v2649 = vadd.f32 0.0, %v2648
    %v2650 = vpop.f32.mrf.mxu0
    %v2651 = vadd.f32 0.0, %v2650
    %2652 = vmatmul.bf16.gmra.mxu0 %v2620
    %v2653 = vpop.f32.mrf.mxu0
    %v2654 = vadd.f32 0.0, %v2653
    %v2655 = vpop.f32.mrf.mxu0
    %v2656 = vadd.f32 0.0, %v2655
    %2657 = vmatmul.bf16.gmra.mxu0 %v2623
    %v2658 = vpop.f32.mrf.mxu0
    %v2659 = vadd.f32 0.0, %v2658
    %v2660 = vpop.f32.mrf.mxu0
    %v2661 = vadd.f32 0.0, %v2660
    %2662 = vdwg.mxu0
    %v2664 = vsel %vm2625, %v56, 0
    %2666 = vmatpush.bf16.msra.mxu0 0
    %2667 = vmatpush.bf16.msra.mxu0 0
    %2668 = vmatpush.bf16.msra.mxu0 0
    %2669 = vmatpush.bf16.msra.mxu0 0
    %2670 = vmatpush.bf16.msra.mxu0 0
    %2671 = vmatpush.bf16.msra.mxu0 0
    %2672 = vmatpush.bf16.msra.mxu0 0
    %2673 = vmatpush.bf16.msra.mxu0 %v2664
    %2674 = vmatmul.bf16.gmra.mxu0 %v2611
    %v2675 = vpop.f32.mrf.mxu0
    %v2676 = vadd.f32 0.0, %v2675
    %v2677 = vpop.f32.mrf.mxu0
    %v2678 = vadd.f32 0.0, %v2677
    %2679 = vmatmul.bf16.gmra.mxu0 %v2614
    %v2680 = vpop.f32.mrf.mxu0
    %v2681 = vadd.f32 0.0, %v2680
    %v2682 = vpop.f32.mrf.mxu0
    %v2683 = vadd.f32 0.0, %v2682
    %2684 = vmatmul.bf16.gmra.mxu0 %v2617
    %v2685 = vpop.f32.mrf.mxu0
    %v2686 = vadd.f32 0.0, %v2685
    %v2687 = vpop.f32.mrf.mxu0
    %v2688 = vadd.f32 0.0, %v2687
    %2689 = vmatmul.bf16.gmra.mxu0 %v2620
    %v2690 = vpop.f32.mrf.mxu0
    %v2691 = vadd.f32 0.0, %v2690
    %v2692 = vpop.f32.mrf.mxu0
    %v2693 = vadd.f32 0.0, %v2692
    %2694 = vmatmul.bf16.gmra.mxu0 %v2623
    %v2695 = vpop.f32.mrf.mxu0
    %v2696 = vadd.f32 0.0, %v2695
    %v2697 = vpop.f32.mrf.mxu0
    %v2698 = vadd.f32 0.0, %v2697
    %2699 = vdwg.mxu0
    %v2700 = vmax.f32 %v2639, %v2676
    %v2701 = vmax.f32 %v2641, %v2678
    %v2702 = vmax.f32 %v2644, %v2681
    %v2703 = vmax.f32 %v2646, %v2683
    %v2704 = vmax.f32 %v2649, %v2686
    %v2705 = vmax.f32 %v2651, %v2688
    %v2706 = vmax.f32 %v2654, %v2691
    %v2707 = vmax.f32 %v2656, %v2693
    %v2708 = vmax.f32 %v2659, %v2696
    %v2709 = vmax.f32 %v2661, %v2698
    %v2710 = vpack.c.bf16 %v2700, %v2700
    %v2711 = vpack.c.bf16 %v2701, %v2701
    %v2712 = vpack.c.bf16 %v2702, %v2702
    %v2713 = vpack.c.bf16 %v2703, %v2703
    %v2714 = vpack.c.bf16 %v2704, %v2704
    %v2715 = vpack.c.bf16 %v2705, %v2705
    %v2716 = vpack.c.bf16 %v2706, %v2706
    %v2717 = vpack.c.bf16 %v2707, %v2707
    %v2718 = vpack.c.bf16 %v2708, %v2708
    %v2719 = vpack.c.bf16 %v2709, %v2709
    %s2720 = smul.u32 %s59, 80
    %s2721 = sshra.s32 %s2720, 3
    %s2722 = sand.u32 %s2720, 7
    %s2723 = smul.addr %s2721, 4
    %s2724 = scalar_lea.vmem %s5, %s2723
    %vm2725 = vcmask 35840
    %2726 = vst.msk [vmem:[%s2724] sm:$0xf] %vm2725, %v2710
    %2727 = vst.msk [vmem:[%s2724 + $0x4] sm:$0xf] %vm2725, %v2711
    %2728 = vst.msk [vmem:[%s2724 + $0x8] sm:$0xf] %vm2725, %v2712
    %2729 = vst.msk [vmem:[%s2724 + $0xc] sm:$0xf] %vm2725, %v2713
    %2730 = vst.msk [vmem:[%s2724 + $0x10] sm:$0xf] %vm2725, %v2714
    %2731 = vst.msk [vmem:[%s2724 + $0x14] sm:$0xf] %vm2725, %v2715
    %2732 = vst.msk [vmem:[%s2724 + $0x18] sm:$0xf] %vm2725, %v2716
    %2733 = vst.msk [vmem:[%s2724 + $0x1c] sm:$0xf] %vm2725, %v2717
    %2734 = vst.msk [vmem:[%s2724 + $0x20] sm:$0xf] %vm2725, %v2718
    %2735 = vst.msk [vmem:[%s2724 + $0x24] sm:$0xf] %vm2725, %v2719
  $region26: #{lenet_forward.2} parent=0 // loop_footer
    %s63 = sadd.s32 1, %s59
  $region27: #{lenet_forward.2} parent=0 // loop_footer_branch
    %58 = sbr.rel target = $region23
  $region28: #{lenet_forward.2} parent=0 // loop_exit
    _
  // Predicated region
  $region29: #{lenet_forward.2} parent=0 // pred_check
    _
  $region30: #{lenet_forward.2} parent=0 // pred_check_branch
    %2737 = sbr.rel (0) target = $region32
  $region31: #{lenet_forward.2} parent=0 // pred_region
    _
  $region32: #{lenet_forward.2} parent=0 // pred_fallthru
    _
  // Predicated region
  $region33: #{lenet_forward.2} parent=0 // pred_check
    _
  $region34: #{lenet_forward.2} parent=0 // pred_check_branch
    %2739 = sbr.rel (0) target = $region36
  $region35: #{lenet_forward.2} parent=0 // pred_region
    _
  $region36: #{lenet_forward.2} parent=0 // pred_fallthru
    _

</llo_original>
